<compile_context>
chip_gen: v7x
topology: tpu7x:2x2x1
jax: 0.10.0
libtpu: 0.0.40
codegen_flags: <defaults>
</compile_context>

<pallas_src>
import jax
import jax.numpy as jnp
from jax.experimental import pallas as pl
from jax.experimental.pallas import tpu as pltpu

EPS = 1e-5         # nn.BatchNorm1d default eps
NEG_SLOPE = 0.01   # nn.LeakyReLU default negative_slope

D_IN, D1, D2, D3 = 2048, 1024, 512, 64
D_2D, D_3D = 21 * 2, 21
D_HEAD_PAD = 128   # lane-dense fused-head output width


def _quantize_cols_int8(w):
    """Symmetric per-output-column int8 quantization.  Returns (q, scale)."""
    s = jnp.max(jnp.abs(w), axis=0, keepdims=True) / 127.0
    s = jnp.maximum(s, jnp.float32(1e-30))
    q = jnp.clip(jnp.round(w / s), -127.0, 127.0).astype(jnp.int8)
    return q, s


def _bn_lrelu(h, gamma, beta):
    """Training-mode BatchNorm1d (batch mean, biased batch var) + LeakyReLU.

    Two-pass variance, folded scale; all math in f32.  Per-feature scale
    invariance of this op is what lets the kernel skip the int8 dequant scales
    and the Linear biases for blocks 1-3.
    """
    mean = jnp.mean(h, axis=0, keepdims=True)
    c = h - mean
    var = jnp.mean(c * c, axis=0, keepdims=True)
    s = gamma * jax.lax.rsqrt(var + EPS)
    y = c * s + beta
    return jnp.where(y > 0, y, NEG_SLOPE * y)


def joints_kernel(x_ref, w1_ref, g1_ref, be1_ref,
                  w2_ref, g2_ref, be2_ref,
                  w3_ref, g3_ref, be3_ref,
                  wh_ref, bh_ref,
                  out_ref):
    x = x_ref[...]                                           # (n, 2048) bf16

    # Block 1: Linear(2048 -> 1024) [int8 weights, scale/bias cancelled by BN]
    h = jnp.dot(x, w1_ref[...].astype(jnp.bfloat16),
                preferred_element_type=jnp.float32)
    h = _bn_lrelu(h, g1_ref[...], be1_ref[...])

    # Block 2: Linear(1024 -> 512) + BN + LeakyReLU
    h = jnp.dot(h.astype(jnp.bfloat16), w2_ref[...].astype(jnp.bfloat16),
                preferred_element_type=jnp.float32)
    h = _bn_lrelu(h, g2_ref[...], be2_ref[...])

    # Block 3: Linear(512 -> 64) + BN + LeakyReLU
    h = jnp.dot(h.astype(jnp.bfloat16), w3_ref[...].astype(jnp.bfloat16),
                preferred_element_type=jnp.float32)
    h = _bn_lrelu(h, g3_ref[...], be3_ref[...])

    # Fused heads: one (64, 128)-padded bf16 matmul -> lane-dense output store.
    z = jnp.dot(h.astype(jnp.bfloat16), wh_ref[...],
                preferred_element_type=jnp.float32) + bh_ref[...]
    out_ref[...] = 1.0 / (1.0 + jnp.exp(-z))


def joints_forward(x, packed):
    (w1, g1, be1, w2, g2, be2, w3, g3, be3, wh, bh) = packed
    n = x.shape[0]
    x = x.astype(jnp.bfloat16)   # halve the x stream; LHS is bf16 on the MXU

    vmem_spec = pl.BlockSpec(memory_space=pltpu.MemorySpace.VMEM)

    flops = 2 * n * (D_IN * D1 + D1 * D2 + D2 * D3 + D3 * D_HEAD_PAD)
    bytes_accessed = (
        x.size * 2                                   # x, bf16
        + w1.size + w2.size + w3.size                # int8 weights
        + 2 * wh.size                                # bf16 fused head
        + 4 * (g1.size + be1.size + g2.size + be2.size
               + g3.size + be3.size + bh.size)
        + 4 * n * D_HEAD_PAD)

    out = pl.pallas_call(
        joints_kernel,
        out_shape=jax.ShapeDtypeStruct((n, D_HEAD_PAD), jnp.float32),
        in_specs=[vmem_spec] * 12,
        out_specs=vmem_spec,
        compiler_params=pltpu.CompilerParams(
            vmem_limit_bytes=32 * 1024 * 1024,
        ),
        cost_estimate=pl.CostEstimate(
            flops=flops,
            transcendentals=n * D_HEAD_PAD + (D1 + D2 + D3),
            bytes_accessed=bytes_accessed,
        ),
    )(x, w1, g1, be1, w2, g2, be2, w3, g3, be3, wh, bh)

    # Slice the real 42 / 21 head columns out of the lane-dense padded slab.
    return out[:, :D_2D], out[:, D_2D:D_2D + D_3D]


def init_params(key):
    """Deterministic synthetic parameters (shapes from Joints.__init__), f32."""
    dims = [(D_IN, D1), (D1, D2), (D2, D3)]
    params = []
    keys = jax.random.split(key, 16)
    ki = 0
    for (fin, fout) in dims:
        w = jax.random.normal(keys[ki], (fin, fout), jnp.float32) * (1.0 / jnp.sqrt(fin)); ki += 1
        b = jax.random.normal(keys[ki], (1, fout), jnp.float32) * 0.01; ki += 1
        gamma = 1.0 + 0.1 * jax.random.normal(keys[ki], (1, fout), jnp.float32); ki += 1
        beta = 0.1 * jax.random.normal(keys[ki], (1, fout), jnp.float32); ki += 1
        params += [w, b, gamma, beta]
    w4 = jax.random.normal(keys[ki], (D3, D_2D), jnp.float32) * (1.0 / 8.0); ki += 1
    b4 = jax.random.normal(keys[ki], (1, D_2D), jnp.float32) * 0.01; ki += 1
    w5 = jax.random.normal(keys[ki], (D3, D_3D), jnp.float32) * (1.0 / 8.0); ki += 1
    b5 = jax.random.normal(keys[ki], (1, D_3D), jnp.float32) * 0.01; ki += 1
    params += [w4, b4, w5, b5]
    return tuple(params)


def pack_params(params):
    """Kernel-layout params:
      * W1/W2/W3 -> int8 (per-output-column scales dropped: training-mode BN is
        per-feature scale-invariant, so BN normalization cancels them exactly).
      * b1..b3 dropped (cancelled by the BN batch-mean subtraction).
      * Heads fused + zero-padded to a lane-dense (64, 128) bf16 weight.
    """
    (w1, b1, g1, be1, w2, b2, g2, be2, w3, b3, g3, be3, w4, b4, w5, b5) = params
    del b1, b2, b3  # exactly cancelled by training-mode BN mean subtraction
    q1, _ = _quantize_cols_int8(w1)
    q2, _ = _quantize_cols_int8(w2)
    q3, _ = _quantize_cols_int8(w3)
    wh = jnp.zeros((D3, D_HEAD_PAD), jnp.float32)
    wh = wh.at[:, :D_2D].set(w4).at[:, D_2D:D_2D + D_3D].set(w5)
    bh = jnp.zeros((1, D_HEAD_PAD), jnp.float32)
    bh = bh.at[:, :D_2D].set(b4).at[:, D_2D:D_2D + D_3D].set(b5)
    return (q1, g1, be1, q2, g2, be2, q3, g3, be3, wh.astype(jnp.bfloat16), bh)


def joints_reference(x, params, quantize_weights=True):
    """Pure-JAX, PyTorch-faithful reference (full biases, dequant scales,
    training-mode two-pass BN).  With quantize_weights=True it uses the same
    int8 / bf16 weight quantization the kernel uses for its MXU operands, so
    the comparison also verifies the scale / bias cancellation numerically."""
    (w1, b1, g1, be1, w2, b2, g2, be2, w3, b3, g3, be3, w4, b4, w5, b5) = params

    def maybe_q(w):
        if not quantize_weights:
            return w
        q, s = _quantize_cols_int8(w)
        return q.astype(jnp.float32) * s

    def lin(h, w, b):
        return jnp.dot(h.astype(jnp.bfloat16).astype(jnp.float32), w,
                       preferred_element_type=jnp.float32,
                       precision=jax.lax.Precision.HIGHEST) + b

    def head(h, w, b):
        return jnp.dot(h.astype(jnp.bfloat16), w.astype(jnp.bfloat16),
                       preferred_element_type=jnp.float32) + b

    def bn_lrelu(h, gamma, beta):
        mean = jnp.mean(h, axis=0, keepdims=True)
        c = h - mean
        var = jnp.mean(c * c, axis=0, keepdims=True)
        y = c * jax.lax.rsqrt(var + EPS) * gamma + beta
        return jnp.where(y > 0, y, NEG_SLOPE * y)

    h = bn_lrelu(lin(x, maybe_q(w1), b1), g1, be1)
    h = bn_lrelu(lin(h, maybe_q(w2), b2), g2, be2)
    h = bn_lrelu(lin(h, maybe_q(w3), b3), g3, be3)
    return jax.nn.sigmoid(head(h, w4, b4)), jax.nn.sigmoid(head(h, w5, b5))


if __name__ == "__main__":
    key = jax.random.PRNGKey(0)
    kx, kp = jax.random.split(key)

    N = 8  # small batch
    x = jax.random.normal(kx, (N, D_IN), jnp.float32)
    params = init_params(kp)
    packed = pack_params(params)

    twod, threed = joints_forward(x, packed)
    jax.block_until_ready((twod, threed))
    assert twod.shape == (N, D_2D) and threed.shape == (N, D_3D)

    # Tight check: reference with the same intended int8/bf16 quantization
    # (this also validates the BN scale / bias cancellation used in-kernel).
    r2d, r3d = joints_reference(x, params, quantize_weights=True)
    assert jnp.allclose(twod, r2d, atol=5e-3, rtol=5e-3)
    assert jnp.allclose(threed, r3d, atol=5e-3, rtol=5e-3)

    # Loose check: unquantized f32 module semantics (quantization error budget).
    f2d, f3d = joints_reference(x, params, quantize_weights=False)
    assert jnp.allclose(twod, f2d, atol=5e-2, rtol=5e-2)
    assert jnp.allclose(threed, f3d, atol=5e-2, rtol=5e-2)

    print("KERNEL_OK")
</pallas_src>

<mosaic_0001>
module attributes {stable_mosaic.version = 11 : i64} {
  func.func @joints_kernel(%arg0: memref<8x2048xbf16, #tpu.memory_space<vmem>>, %arg1: memref<2048x1024xi8, #tpu.memory_space<vmem>>, %arg2: memref<1x1024xf32, #tpu.memory_space<vmem>>, %arg3: memref<1x1024xf32, #tpu.memory_space<vmem>>, %arg4: memref<1024x512xi8, #tpu.memory_space<vmem>>, %arg5: memref<1x512xf32, #tpu.memory_space<vmem>>, %arg6: memref<1x512xf32, #tpu.memory_space<vmem>>, %arg7: memref<512x64xi8, #tpu.memory_space<vmem>>, %arg8: memref<1x64xf32, #tpu.memory_space<vmem>>, %arg9: memref<1x64xf32, #tpu.memory_space<vmem>>, %arg10: memref<64x128xbf16, #tpu.memory_space<vmem>>, %arg11: memref<1x128xf32, #tpu.memory_space<vmem>>, %arg12: memref<8x128xf32, #tpu.memory_space<vmem>>) attributes {dimension_semantics = [], scalar_prefetch = 0 : i64, scratch_operands = 0 : i64, tpu.core_type = #tpu.core_type<tc>} {
    %c0 = arith.constant 0 : index
    %c0_0 = arith.constant 0 : index
    %0 = vector.load %arg0[%c0, %c0_0] : memref<8x2048xbf16, #tpu.memory_space<vmem>>, vector<8x2048xbf16>
    %c0_1 = arith.constant 0 : index
    %c0_2 = arith.constant 0 : index
    %1 = vector.load %arg1[%c0_1, %c0_2] : memref<2048x1024xi8, #tpu.memory_space<vmem>>, vector<2048x1024xi8>
    %2 = arith.sitofp %1 : vector<2048x1024xi8> to vector<2048x1024xbf16>
    %cst = arith.constant dense<0.000000e+00> : vector<8x1024xf32>
    %3 = tpu.matmul %0, %2, %cst {dimension_numbers = #tpu.dot_dimension_numbers<[1], [0], [0], [1], [0, 0, 1, 1], [], []>} : vector<8x2048xbf16>, vector<2048x1024xbf16>, vector<8x1024xf32> -> vector<8x1024xf32>
    %c0_3 = arith.constant 0 : index
    %c0_4 = arith.constant 0 : index
    %4 = vector.load %arg2[%c0_3, %c0_4] : memref<1x1024xf32, #tpu.memory_space<vmem>>, vector<1x1024xf32>
    %c0_5 = arith.constant 0 : index
    %c0_6 = arith.constant 0 : index
    %5 = vector.load %arg3[%c0_5, %c0_6] : memref<1x1024xf32, #tpu.memory_space<vmem>>, vector<1x1024xf32>
    %cst_7 = arith.constant dense<0.000000e+00> : vector<1024xf32>
    %6 = vector.multi_reduction <add>, %3, %cst_7 [0] : vector<8x1024xf32> to vector<1024xf32>
    %7 = vector.shape_cast %6 : vector<1024xf32> to vector<1x1024xf32>
    %cst_8 = arith.constant 8.000000e+00 : f32
    %8 = vector.broadcast %cst_8 : f32 to vector<1x1024xf32>
    %9 = arith.divf %7, %8 : vector<1x1024xf32>
    %10 = vector.broadcast %9 : vector<1x1024xf32> to vector<8x1024xf32>
    %11 = arith.subf %3, %10 : vector<8x1024xf32>
    %12 = arith.mulf %11, %11 : vector<8x1024xf32>
    %cst_9 = arith.constant dense<0.000000e+00> : vector<1024xf32>
    %13 = vector.multi_reduction <add>, %12, %cst_9 [0] : vector<8x1024xf32> to vector<1024xf32>
    %14 = vector.shape_cast %13 : vector<1024xf32> to vector<1x1024xf32>
    %cst_10 = arith.constant 8.000000e+00 : f32
    %15 = vector.broadcast %cst_10 : f32 to vector<1x1024xf32>
    %16 = arith.divf %14, %15 : vector<1x1024xf32>
    %cst_11 = arith.constant 9.99999974E-6 : f32
    %17 = vector.broadcast %cst_11 : f32 to vector<1x1024xf32>
    %18 = arith.addf %16, %17 : vector<1x1024xf32>
    %19 = math.rsqrt %18 : vector<1x1024xf32>
    %20 = arith.mulf %4, %19 : vector<1x1024xf32>
    %21 = vector.broadcast %20 : vector<1x1024xf32> to vector<8x1024xf32>
    %22 = arith.mulf %11, %21 : vector<8x1024xf32>
    %23 = vector.broadcast %5 : vector<1x1024xf32> to vector<8x1024xf32>
    %24 = arith.addf %22, %23 : vector<8x1024xf32>
    %cst_12 = arith.constant 0.000000e+00 : f32
    %25 = vector.broadcast %cst_12 : f32 to vector<8x1024xf32>
    %26 = arith.cmpf ogt, %24, %25 : vector<8x1024xf32>
    %cst_13 = arith.constant 0.00999999977 : f32
    %27 = vector.broadcast %cst_13 : f32 to vector<8x1024xf32>
    %28 = arith.mulf %27, %24 : vector<8x1024xf32>
    %29 = arith.select %26, %24, %28 : vector<8x1024xi1>, vector<8x1024xf32>
    %30 = arith.truncf %29 : vector<8x1024xf32> to vector<8x1024xbf16>
    %c0_14 = arith.constant 0 : index
    %c0_15 = arith.constant 0 : index
    %31 = vector.load %arg4[%c0_14, %c0_15] : memref<1024x512xi8, #tpu.memory_space<vmem>>, vector<1024x512xi8>
    %32 = arith.sitofp %31 : vector<1024x512xi8> to vector<1024x512xbf16>
    %cst_16 = arith.constant dense<0.000000e+00> : vector<8x512xf32>
    %33 = tpu.matmul %30, %32, %cst_16 {dimension_numbers = #tpu.dot_dimension_numbers<[1], [0], [0], [1], [0, 0, 1, 1], [], []>} : vector<8x1024xbf16>, vector<1024x512xbf16>, vector<8x512xf32> -> vector<8x512xf32>
    %c0_17 = arith.constant 0 : index
    %c0_18 = arith.constant 0 : index
    %34 = vector.load %arg5[%c0_17, %c0_18] : memref<1x512xf32, #tpu.memory_space<vmem>>, vector<1x512xf32>
    %c0_19 = arith.constant 0 : index
    %c0_20 = arith.constant 0 : index
    %35 = vector.load %arg6[%c0_19, %c0_20] : memref<1x512xf32, #tpu.memory_space<vmem>>, vector<1x512xf32>
    %cst_21 = arith.constant dense<0.000000e+00> : vector<512xf32>
    %36 = vector.multi_reduction <add>, %33, %cst_21 [0] : vector<8x512xf32> to vector<512xf32>
    %37 = vector.shape_cast %36 : vector<512xf32> to vector<1x512xf32>
    %cst_22 = arith.constant 8.000000e+00 : f32
    %38 = vector.broadcast %cst_22 : f32 to vector<1x512xf32>
    %39 = arith.divf %37, %38 : vector<1x512xf32>
    %40 = vector.broadcast %39 : vector<1x512xf32> to vector<8x512xf32>
    %41 = arith.subf %33, %40 : vector<8x512xf32>
    %42 = arith.mulf %41, %41 : vector<8x512xf32>
    %cst_23 = arith.constant dense<0.000000e+00> : vector<512xf32>
    %43 = vector.multi_reduction <add>, %42, %cst_23 [0] : vector<8x512xf32> to vector<512xf32>
    %44 = vector.shape_cast %43 : vector<512xf32> to vector<1x512xf32>
    %cst_24 = arith.constant 8.000000e+00 : f32
    %45 = vector.broadcast %cst_24 : f32 to vector<1x512xf32>
    %46 = arith.divf %44, %45 : vector<1x512xf32>
    %cst_25 = arith.constant 9.99999974E-6 : f32
    %47 = vector.broadcast %cst_25 : f32 to vector<1x512xf32>
    %48 = arith.addf %46, %47 : vector<1x512xf32>
    %49 = math.rsqrt %48 : vector<1x512xf32>
    %50 = arith.mulf %34, %49 : vector<1x512xf32>
    %51 = vector.broadcast %50 : vector<1x512xf32> to vector<8x512xf32>
    %52 = arith.mulf %41, %51 : vector<8x512xf32>
    %53 = vector.broadcast %35 : vector<1x512xf32> to vector<8x512xf32>
    %54 = arith.addf %52, %53 : vector<8x512xf32>
    %cst_26 = arith.constant 0.000000e+00 : f32
    %55 = vector.broadcast %cst_26 : f32 to vector<8x512xf32>
    %56 = arith.cmpf ogt, %54, %55 : vector<8x512xf32>
    %cst_27 = arith.constant 0.00999999977 : f32
    %57 = vector.broadcast %cst_27 : f32 to vector<8x512xf32>
    %58 = arith.mulf %57, %54 : vector<8x512xf32>
    %59 = arith.select %56, %54, %58 : vector<8x512xi1>, vector<8x512xf32>
    %60 = arith.truncf %59 : vector<8x512xf32> to vector<8x512xbf16>
    %c0_28 = arith.constant 0 : index
    %c0_29 = arith.constant 0 : index
    %61 = vector.load %arg7[%c0_28, %c0_29] : memref<512x64xi8, #tpu.memory_space<vmem>>, vector<512x64xi8>
    %62 = arith.sitofp %61 : vector<512x64xi8> to vector<512x64xbf16>
    %cst_30 = arith.constant dense<0.000000e+00> : vector<8x64xf32>
    %63 = tpu.matmul %60, %62, %cst_30 {dimension_numbers = #tpu.dot_dimension_numbers<[1], [0], [0], [1], [0, 0, 1, 1], [], []>} : vector<8x512xbf16>, vector<512x64xbf16>, vector<8x64xf32> -> vector<8x64xf32>
    %c0_31 = arith.constant 0 : index
    %c0_32 = arith.constant 0 : index
    %64 = vector.load %arg8[%c0_31, %c0_32] : memref<1x64xf32, #tpu.memory_space<vmem>>, vector<1x64xf32>
    %c0_33 = arith.constant 0 : index
    %c0_34 = arith.constant 0 : index
    %65 = vector.load %arg9[%c0_33, %c0_34] : memref<1x64xf32, #tpu.memory_space<vmem>>, vector<1x64xf32>
    %cst_35 = arith.constant dense<0.000000e+00> : vector<64xf32>
    %66 = vector.multi_reduction <add>, %63, %cst_35 [0] : vector<8x64xf32> to vector<64xf32>
    %67 = vector.shape_cast %66 : vector<64xf32> to vector<1x64xf32>
    %cst_36 = arith.constant 8.000000e+00 : f32
    %68 = vector.broadcast %cst_36 : f32 to vector<1x64xf32>
    %69 = arith.divf %67, %68 : vector<1x64xf32>
    %70 = vector.broadcast %69 : vector<1x64xf32> to vector<8x64xf32>
    %71 = arith.subf %63, %70 : vector<8x64xf32>
    %72 = arith.mulf %71, %71 : vector<8x64xf32>
    %cst_37 = arith.constant dense<0.000000e+00> : vector<64xf32>
    %73 = vector.multi_reduction <add>, %72, %cst_37 [0] : vector<8x64xf32> to vector<64xf32>
    %74 = vector.shape_cast %73 : vector<64xf32> to vector<1x64xf32>
    %cst_38 = arith.constant 8.000000e+00 : f32
    %75 = vector.broadcast %cst_38 : f32 to vector<1x64xf32>
    %76 = arith.divf %74, %75 : vector<1x64xf32>
    %cst_39 = arith.constant 9.99999974E-6 : f32
    %77 = vector.broadcast %cst_39 : f32 to vector<1x64xf32>
    %78 = arith.addf %76, %77 : vector<1x64xf32>
    %79 = math.rsqrt %78 : vector<1x64xf32>
    %80 = arith.mulf %64, %79 : vector<1x64xf32>
    %81 = vector.broadcast %80 : vector<1x64xf32> to vector<8x64xf32>
    %82 = arith.mulf %71, %81 : vector<8x64xf32>
    %83 = vector.broadcast %65 : vector<1x64xf32> to vector<8x64xf32>
    %84 = arith.addf %82, %83 : vector<8x64xf32>
    %cst_40 = arith.constant 0.000000e+00 : f32
    %85 = vector.broadcast %cst_40 : f32 to vector<8x64xf32>
    %86 = arith.cmpf ogt, %84, %85 : vector<8x64xf32>
    %cst_41 = arith.constant 0.00999999977 : f32
    %87 = vector.broadcast %cst_41 : f32 to vector<8x64xf32>
    %88 = arith.mulf %87, %84 : vector<8x64xf32>
    %89 = arith.select %86, %84, %88 : vector<8x64xi1>, vector<8x64xf32>
    %90 = arith.truncf %89 : vector<8x64xf32> to vector<8x64xbf16>
    %c0_42 = arith.constant 0 : index
    %c0_43 = arith.constant 0 : index
    %91 = vector.load %arg10[%c0_42, %c0_43] : memref<64x128xbf16, #tpu.memory_space<vmem>>, vector<64x128xbf16>
    %cst_44 = arith.constant dense<0.000000e+00> : vector<8x128xf32>
    %92 = tpu.matmul %90, %91, %cst_44 {dimension_numbers = #tpu.dot_dimension_numbers<[1], [0], [0], [1], [0, 0, 1, 1], [], []>} : vector<8x64xbf16>, vector<64x128xbf16>, vector<8x128xf32> -> vector<8x128xf32>
    %c0_45 = arith.constant 0 : index
    %c0_46 = arith.constant 0 : index
    %93 = vector.load %arg11[%c0_45, %c0_46] : memref<1x128xf32, #tpu.memory_space<vmem>>, vector<1x128xf32>
    %94 = vector.broadcast %93 : vector<1x128xf32> to vector<8x128xf32>
    %95 = arith.addf %92, %94 : vector<8x128xf32>
    %cst_47 = arith.constant 0.000000e+00 : f32
    %96 = vector.broadcast %cst_47 : f32 to vector<8x128xf32>
    %97 = arith.subf %96, %95 : vector<8x128xf32>
    %98 = math.exp %97 : vector<8x128xf32>
    %cst_48 = arith.constant 1.000000e+00 : f32
    %99 = vector.broadcast %cst_48 : f32 to vector<8x128xf32>
    %100 = arith.addf %99, %98 : vector<8x128xf32>
    %cst_49 = arith.constant 1.000000e+00 : f32
    %101 = vector.broadcast %cst_49 : f32 to vector<8x128xf32>
    %102 = arith.divf %101, %100 : vector<8x128xf32>
    %c0_50 = arith.constant 0 : index
    %c0_51 = arith.constant 0 : index
    %103 = vector.load %arg12[%c0_50, %c0_51] : memref<8x128xf32, #tpu.memory_space<vmem>>, vector<8x128xf32>
    tpu.vector_store %arg12[%c0_50, %c0_51], %102 {strides = array<i32>} : memref<8x128xf32, #tpu.memory_space<vmem>>, vector<8x128xf32>,
    return
  }
}

</mosaic_0001>

<llo_original>
// kernel: tpu_custom_call.1
$region0: #{tpu_custom_call.1}
  #allocation0 [shape = 'u32[]', space=smem, size = 0x4, offset = 0x4, fixed_abs, tag = 'smem constant byte address 0x4 - core index']
  #allocation1 [shape = 'u32[144,128]{1,0:T(1,128)}', space=vmem, size = 0x12000, scoped, tag = 'internal scratch']
  %s0 = inlined_call_operand.hbm [shape: bf16[8,2048], index: 0, kind: input, shape index: {}]
  %s1 = inlined_call_operand.hbm [shape: s8[2048,1024], index: 1, kind: input, shape index: {}]
  %s2 = inlined_call_operand.hbm [shape: f32[1,1024], index: 2, kind: input, shape index: {}]
  %s3 = inlined_call_operand.hbm [shape: f32[1,1024], index: 3, kind: input, shape index: {}]
  %s4 = inlined_call_operand.hbm [shape: s8[1024,512], index: 4, kind: input, shape index: {}]
  %s5 = inlined_call_operand.hbm [shape: f32[1,512], index: 5, kind: input, shape index: {}]
  %s6 = inlined_call_operand.hbm [shape: f32[1,512], index: 6, kind: input, shape index: {}]
  %s7 = inlined_call_operand.vmem [shape: s8[512,64], index: 7, kind: input, shape index: {}]
  %s8 = inlined_call_operand.hbm [shape: f32[1,64], index: 8, kind: input, shape index: {}]
  %s9 = inlined_call_operand.hbm [shape: f32[1,64], index: 9, kind: input, shape index: {}]
  %s10 = inlined_call_operand.hbm [shape: bf16[64,128], index: 10, kind: input, shape index: {}]
  %s11 = inlined_call_operand.hbm [shape: f32[1,128], index: 11, kind: input, shape index: {}]
  %s12 = inlined_call_operand.hbm [shape: f32[8,128], index: 12, kind: output, shape index: {}]
  %s13 = sld [smem:[#allocation0]]
  $region102: #{tpu_custom_call.1} parent=0
    _
  %s15 = ssub.s32 1, %s13
  %s16 = scalar_select 0, %s15, %s13
  $region1: #{tpu_custom_call.1} parent=0
    #allocation2 [shape = 'u8[32768]{0}', space=vmem, size = 0x8000, scoped, tag = 'input window, operand 0, single buffered']
    #allocation3 [shape = 's32[1]{0}', space=sflag, size = 0x4, scoped, tag = 'scoped memory for tpu_custom_call.1']
    #allocation4 [shape = 's32[1]{0}', space=sflag, size = 0x4, scoped, tag = 'scoped memory for tpu_custom_call.1']
    #allocation5 [shape = 'u8[2097152]{0}', space=vmem, size = 0x200000, scoped, tag = 'input window, operand 1, single buffered']
    #allocation6 [shape = 's32[1]{0}', space=sflag, size = 0x4, scoped, tag = 'scoped memory for tpu_custom_call.1']
    #allocation7 [shape = 'u8[4096]{0}', space=vmem, size = 0x1000, scoped, tag = 'input window, operand 2, single buffered']
    #allocation8 [shape = 'u8[4096]{0}', space=vmem, size = 0x1000, scoped, tag = 'input window, operand 3, single buffered']
    #allocation9 [shape = 's32[1]{0}', space=sflag, size = 0x4, scoped, tag = 'scoped memory for tpu_custom_call.1']
    #allocation10 [shape = 'u8[524288]{0}', space=vmem, size = 0x80000, scoped, tag = 'input window, operand 4, single buffered']
    #allocation11 [shape = 'u8[2048]{0}', space=vmem, size = 0x800, scoped, tag = 'input window, operand 5, single buffered']
    #allocation12 [shape = 's32[1]{0}', space=sflag, size = 0x4, scoped, tag = 'scoped memory for tpu_custom_call.1']
    #allocation13 [shape = 'u8[2048]{0}', space=vmem, size = 0x800, scoped, tag = 'input window, operand 6, single buffered']
    #allocation14 [shape = 'u8[512]{0}', space=vmem, size = 0x400, scoped, tag = 'input window, operand 8, single buffered']
    #allocation15 [shape = 's32[1]{0}', space=sflag, size = 0x4, scoped, tag = 'scoped memory for tpu_custom_call.1']
    #allocation16 [shape = 'u8[512]{0}', space=vmem, size = 0x400, scoped, tag = 'input window, operand 9, single buffered']
    #allocation17 [shape = 'u8[16384]{0}', space=vmem, size = 0x4000, scoped, tag = 'input window, operand 10, single buffered']
    #allocation18 [shape = 's32[1]{0}', space=sflag, size = 0x4, scoped, tag = 'scoped memory for tpu_custom_call.1']
    #allocation19 [shape = 'u8[512]{0}', space=vmem, size = 0x400, scoped, tag = 'input window, operand 11, single buffered']
    #allocation20 [shape = 'u8[4096]{0}', space=vmem, size = 0x1000, scoped, tag = 'output window, operand 0, single buffered']
    %17 = vsyncpa [#allocation3], 0
    %18 = vsyncpa [#allocation6], 0
    %19 = vsyncpa [#allocation9], 0
    %20 = vsyncpa [#allocation12], 0
    %21 = vsyncpa [#allocation15], 0
    %22 = vsyncpa [#allocation18], 0
    %23 = vsyncpa [#allocation4], 0
    // Predicated region
    $region2: #{tpu_custom_call.1} parent=1 // pred_check
      _
    $region3: #{tpu_custom_call.1} parent=1 // pred_check_branch
      %25 = sbr.rel (0) target = $region5
    $region4: #{tpu_custom_call.1} parent=1 // pred_region
      %s27 = ssub.s32 1024, 1024
      %28 = vsyncadd [#allocation3], %s27
      %s30 = sshll.u32 [#allocation2], 4
      %s31 = int_to_ptr.vmem [resolvable:$true] %s30
      %33 = dma.hbm_to_vmem [thread:$0]  %s0, 1024, %s31, [#allocation3]
    $region5: #{tpu_custom_call.1} parent=1 // pred_fallthru
      _
    // Predicated region
    $region6: #{tpu_custom_call.1} parent=1 // pred_check
      _
    $region7: #{tpu_custom_call.1} parent=1 // pred_check_branch
      %35 = sbr.rel (0) target = $region9
    $region8: #{tpu_custom_call.1} parent=1 // pred_region
      %s37 = ssub.s32 65536, 65536
      %38 = vsyncadd [#allocation6], %s37
      %s39 = sshll.u32 [#allocation5], 4
      %s40 = int_to_ptr.vmem [resolvable:$true] %s39
      %45 = dma.hbm_to_vmem [thread:$0]  %s1, 65536, %s40, [#allocation6], 1024, 1024, 64
    $region9: #{tpu_custom_call.1} parent=1 // pred_fallthru
      _
    // Predicated region
    $region10: #{tpu_custom_call.1} parent=1 // pred_check
      _
    $region11: #{tpu_custom_call.1} parent=1 // pred_check_branch
      %47 = sbr.rel (0) target = $region13
    $region12: #{tpu_custom_call.1} parent=1 // pred_region
      %s49 = ssub.s32 128, 128
      %50 = vsyncadd [#allocation6], %s49
      %s52 = sshll.u32 [#allocation7], 4
      %s53 = int_to_ptr.vmem [resolvable:$true] %s52
      %55 = dma.hbm_to_vmem [thread:$0]  %s2, 128, %s53, [#allocation6]
    $region13: #{tpu_custom_call.1} parent=1 // pred_fallthru
      _
    // Predicated region
    $region14: #{tpu_custom_call.1} parent=1 // pred_check
      _
    $region15: #{tpu_custom_call.1} parent=1 // pred_check_branch
      %57 = sbr.rel (0) target = $region17
    $region16: #{tpu_custom_call.1} parent=1 // pred_region
      %s59 = ssub.s32 128, 128
      %60 = vsyncadd [#allocation9], %s59
      %s62 = sshll.u32 [#allocation8], 4
      %s63 = int_to_ptr.vmem [resolvable:$true] %s62
      %65 = dma.hbm_to_vmem [thread:$0]  %s3, 128, %s63, [#allocation9]
    $region17: #{tpu_custom_call.1} parent=1 // pred_fallthru
      _
    // Predicated region
    $region18: #{tpu_custom_call.1} parent=1 // pred_check
      _
    $region19: #{tpu_custom_call.1} parent=1 // pred_check_branch
      %67 = sbr.rel (0) target = $region21
    $region20: #{tpu_custom_call.1} parent=1 // pred_region
      %s69 = ssub.s32 16384, 16384
      %70 = vsyncadd [#allocation9], %s69
      %s71 = sshll.u32 [#allocation10], 4
      %s72 = int_to_ptr.vmem [resolvable:$true] %s71
      %77 = dma.hbm_to_vmem [thread:$0]  %s4, 16384, %s72, [#allocation9], 512, 512, 32
    $region21: #{tpu_custom_call.1} parent=1 // pred_fallthru
      _
    // Predicated region
    $region22: #{tpu_custom_call.1} parent=1 // pred_check
      _
    $region23: #{tpu_custom_call.1} parent=1 // pred_check_branch
      %79 = sbr.rel (0) target = $region25
    $region24: #{tpu_custom_call.1} parent=1 // pred_region
      %s81 = ssub.s32 64, 64
      %82 = vsyncadd [#allocation12], %s81
      %s84 = sshll.u32 [#allocation11], 4
      %s85 = int_to_ptr.vmem [resolvable:$true] %s84
      %87 = dma.hbm_to_vmem [thread:$0]  %s5, 64, %s85, [#allocation12]
    $region25: #{tpu_custom_call.1} parent=1 // pred_fallthru
      _
    // Predicated region
    $region26: #{tpu_custom_call.1} parent=1 // pred_check
      _
    $region27: #{tpu_custom_call.1} parent=1 // pred_check_branch
      %89 = sbr.rel (0) target = $region29
    $region28: #{tpu_custom_call.1} parent=1 // pred_region
      %s91 = ssub.s32 64, 64
      %92 = vsyncadd [#allocation12], %s91
      %s94 = sshll.u32 [#allocation13], 4
      %s95 = int_to_ptr.vmem [resolvable:$true] %s94
      %97 = dma.hbm_to_vmem [thread:$0]  %s6, 64, %s95, [#allocation12]
    $region29: #{tpu_custom_call.1} parent=1 // pred_fallthru
      _
    // Predicated region
    $region30: #{tpu_custom_call.1} parent=1 // pred_check
      _
    $region31: #{tpu_custom_call.1} parent=1 // pred_check_branch
      %99 = sbr.rel (0) target = $region33
    $region32: #{tpu_custom_call.1} parent=1 // pred_region
      _
    $region33: #{tpu_custom_call.1} parent=1 // pred_fallthru
      _
    // Predicated region
    $region34: #{tpu_custom_call.1} parent=1 // pred_check
      _
    $region35: #{tpu_custom_call.1} parent=1 // pred_check_branch
      %101 = sbr.rel (0) target = $region37
    $region36: #{tpu_custom_call.1} parent=1 // pred_region
      %s103 = ssub.s32 16, 16
      %104 = vsyncadd [#allocation15], %s103
      %s106 = sshll.u32 [#allocation14], 4
      %s107 = int_to_ptr.vmem [resolvable:$true] %s106
      %109 = dma.hbm_to_vmem [thread:$0]  %s8, 16, %s107, [#allocation15]
    $region37: #{tpu_custom_call.1} parent=1 // pred_fallthru
      _
    // Predicated region
    $region38: #{tpu_custom_call.1} parent=1 // pred_check
      _
    $region39: #{tpu_custom_call.1} parent=1 // pred_check_branch
      %111 = sbr.rel (0) target = $region41
    $region40: #{tpu_custom_call.1} parent=1 // pred_region
      %s113 = ssub.s32 16, 16
      %114 = vsyncadd [#allocation15], %s113
      %s116 = sshll.u32 [#allocation16], 4
      %s117 = int_to_ptr.vmem [resolvable:$true] %s116
      %119 = dma.hbm_to_vmem [thread:$0]  %s9, 16, %s117, [#allocation15]
    $region41: #{tpu_custom_call.1} parent=1 // pred_fallthru
      _
    // Predicated region
    $region42: #{tpu_custom_call.1} parent=1 // pred_check
      _
    $region43: #{tpu_custom_call.1} parent=1 // pred_check_branch
      %121 = sbr.rel (0) target = $region45
    $region44: #{tpu_custom_call.1} parent=1 // pred_region
      %s123 = ssub.s32 512, 512
      %124 = vsyncadd [#allocation18], %s123
      %s125 = sshll.u32 [#allocation17], 4
      %s126 = int_to_ptr.vmem [resolvable:$true] %s125
      %131 = dma.hbm_to_vmem [thread:$0]  %s10, 512, %s126, [#allocation18], 64, 64, 4
    $region45: #{tpu_custom_call.1} parent=1 // pred_fallthru
      _
    // Predicated region
    $region46: #{tpu_custom_call.1} parent=1 // pred_check
      _
    $region47: #{tpu_custom_call.1} parent=1 // pred_check_branch
      %133 = sbr.rel (0) target = $region49
    $region48: #{tpu_custom_call.1} parent=1 // pred_region
      %s135 = ssub.s32 16, 16
      %136 = vsyncadd [#allocation18], %s135
      %s138 = sshll.u32 [#allocation19], 4
      %s139 = int_to_ptr.vmem [resolvable:$true] %s138
      %141 = dma.hbm_to_vmem [thread:$0]  %s11, 16, %s139, [#allocation18]
    $region49: #{tpu_custom_call.1} parent=1 // pred_fallthru
      _
    // Predicated region
    $region50: #{tpu_custom_call.1} parent=1 // pred_check
      _
    $region51: #{tpu_custom_call.1} parent=1 // pred_check_branch
      %143 = sbr.rel (0) target = $region53
    $region52: #{tpu_custom_call.1} parent=1 // pred_region
      %144 = dma.done [#allocation3], 1024
    $region53: #{tpu_custom_call.1} parent=1 // pred_fallthru
      _
    // Predicated region
    $region54: #{tpu_custom_call.1} parent=1 // pred_check
      _
    $region55: #{tpu_custom_call.1} parent=1 // pred_check_branch
      %146 = sbr.rel (0) target = $region57
    $region56: #{tpu_custom_call.1} parent=1 // pred_region
      %147 = dma.done [#allocation6], 65536
    $region57: #{tpu_custom_call.1} parent=1 // pred_fallthru
      _
    // Predicated region
    $region58: #{tpu_custom_call.1} parent=1 // pred_check
      _
    $region59: #{tpu_custom_call.1} parent=1 // pred_check_branch
      %149 = sbr.rel (0) target = $region61
    $region60: #{tpu_custom_call.1} parent=1 // pred_region
      %150 = dma.done [#allocation6], 128
    $region61: #{tpu_custom_call.1} parent=1 // pred_fallthru
      _
    // Predicated region
    $region62: #{tpu_custom_call.1} parent=1 // pred_check
      _
    $region63: #{tpu_custom_call.1} parent=1 // pred_check_branch
      %152 = sbr.rel (0) target = $region65
    $region64: #{tpu_custom_call.1} parent=1 // pred_region
      %153 = dma.done [#allocation9], 128
    $region65: #{tpu_custom_call.1} parent=1 // pred_fallthru
      _
    // Predicated region
    $region66: #{tpu_custom_call.1} parent=1 // pred_check
      _
    $region67: #{tpu_custom_call.1} parent=1 // pred_check_branch
      %155 = sbr.rel (0) target = $region69
    $region68: #{tpu_custom_call.1} parent=1 // pred_region
      %156 = dma.done [#allocation9], 16384
    $region69: #{tpu_custom_call.1} parent=1 // pred_fallthru
      _
    // Predicated region
    $region70: #{tpu_custom_call.1} parent=1 // pred_check
      _
    $region71: #{tpu_custom_call.1} parent=1 // pred_check_branch
      %158 = sbr.rel (0) target = $region73
    $region72: #{tpu_custom_call.1} parent=1 // pred_region
      %159 = dma.done [#allocation12], 64
    $region73: #{tpu_custom_call.1} parent=1 // pred_fallthru
      _
    // Predicated region
    $region74: #{tpu_custom_call.1} parent=1 // pred_check
      _
    $region75: #{tpu_custom_call.1} parent=1 // pred_check_branch
      %161 = sbr.rel (0) target = $region77
    $region76: #{tpu_custom_call.1} parent=1 // pred_region
      %162 = dma.done [#allocation12], 64
    $region77: #{tpu_custom_call.1} parent=1 // pred_fallthru
      _
    // Predicated region
    $region78: #{tpu_custom_call.1} parent=1 // pred_check
      _
    $region79: #{tpu_custom_call.1} parent=1 // pred_check_branch
      %164 = sbr.rel (0) target = $region81
    $region80: #{tpu_custom_call.1} parent=1 // pred_region
      %165 = dma.done [#allocation15], 16
    $region81: #{tpu_custom_call.1} parent=1 // pred_fallthru
      _
    // Predicated region
    $region82: #{tpu_custom_call.1} parent=1 // pred_check
      _
    $region83: #{tpu_custom_call.1} parent=1 // pred_check_branch
      %167 = sbr.rel (0) target = $region85
    $region84: #{tpu_custom_call.1} parent=1 // pred_region
      %168 = dma.done [#allocation15], 16
    $region85: #{tpu_custom_call.1} parent=1 // pred_fallthru
      _
    // Predicated region
    $region86: #{tpu_custom_call.1} parent=1 // pred_check
      _
    $region87: #{tpu_custom_call.1} parent=1 // pred_check_branch
      %170 = sbr.rel (0) target = $region89
    $region88: #{tpu_custom_call.1} parent=1 // pred_region
      %171 = dma.done [#allocation18], 512
    $region89: #{tpu_custom_call.1} parent=1 // pred_fallthru
      _
    // Predicated region
    $region90: #{tpu_custom_call.1} parent=1 // pred_check
      _
    $region91: #{tpu_custom_call.1} parent=1 // pred_check_branch
      %173 = sbr.rel (0) target = $region93
    $region92: #{tpu_custom_call.1} parent=1 // pred_region
      %174 = dma.done [#allocation18], 16
    $region93: #{tpu_custom_call.1} parent=1 // pred_fallthru
      _
    %v176 = vld [vmem:[#allocation2] sm:$0xff]
    %v177 = vld [vmem:[#allocation2 + $0x8] sm:$0xff]
    %v178 = vld [vmem:[#allocation2 + $0x10] sm:$0xff]
    %v179 = vld [vmem:[#allocation2 + $0x18] sm:$0xff]
    %v180 = vld [vmem:[#allocation2 + $0x20] sm:$0xff]
    %v181 = vld [vmem:[#allocation2 + $0x28] sm:$0xff]
    %v182 = vld [vmem:[#allocation2 + $0x30] sm:$0xff]
    %v183 = vld [vmem:[#allocation2 + $0x38] sm:$0xff]
    %v184 = vld [vmem:[#allocation5] sm:$0xff]
    %v185 = vld [vmem:[#allocation5 + $0x8] sm:$0xff]
    %v186 = vld [vmem:[#allocation5 + $0x10] sm:$0xff]
    %v187 = vld [vmem:[#allocation5 + $0x18] sm:$0xff]
    %v188 = vld [vmem:[#allocation5 + $0x20] sm:$0xff]
    %v189 = vld [vmem:[#allocation5 + $0x28] sm:$0xff]
    %v190 = vld [vmem:[#allocation5 + $0x30] sm:$0xff]
    %v191 = vld [vmem:[#allocation5 + $0x38] sm:$0xff]
    %v192 = vld [vmem:[#allocation5 + $0x40] sm:$0xff]
    %v193 = vld [vmem:[#allocation5 + $0x48] sm:$0xff]
    %v194 = vld [vmem:[#allocation5 + $0x50] sm:$0xff]
    %v195 = vld [vmem:[#allocation5 + $0x58] sm:$0xff]
    %v196 = vld [vmem:[#allocation5 + $0x60] sm:$0xff]
    %v197 = vld [vmem:[#allocation5 + $0x68] sm:$0xff]
    %v198 = vld [vmem:[#allocation5 + $0x70] sm:$0xff]
    %v199 = vld [vmem:[#allocation5 + $0x78] sm:$0xff]
    %v200 = vld [vmem:[#allocation5 + $0x80] sm:$0xff]
    %v201 = vld [vmem:[#allocation5 + $0x88] sm:$0xff]
    %v202 = vld [vmem:[#allocation5 + $0x90] sm:$0xff]
    %v203 = vld [vmem:[#allocation5 + $0x98] sm:$0xff]
    %v204 = vld [vmem:[#allocation5 + $0xa0] sm:$0xff]
    %v205 = vld [vmem:[#allocation5 + $0xa8] sm:$0xff]
    %v206 = vld [vmem:[#allocation5 + $0xb0] sm:$0xff]
    %v207 = vld [vmem:[#allocation5 + $0xb8] sm:$0xff]
    %v208 = vld [vmem:[#allocation5 + $0xc0] sm:$0xff]
    %v209 = vld [vmem:[#allocation5 + $0xc8] sm:$0xff]
    %v210 = vld [vmem:[#allocation5 + $0xd0] sm:$0xff]
    %v211 = vld [vmem:[#allocation5 + $0xd8] sm:$0xff]
    %v212 = vld [vmem:[#allocation5 + $0xe0] sm:$0xff]
    %v213 = vld [vmem:[#allocation5 + $0xe8] sm:$0xff]
    %v214 = vld [vmem:[#allocation5 + $0xf0] sm:$0xff]
    %v215 = vld [vmem:[#allocation5 + $0xf8] sm:$0xff]
    %v216 = vld [vmem:[#allocation5 + $0x100] sm:$0xff]
    %v217 = vld [vmem:[#allocation5 + $0x108] sm:$0xff]
    %v218 = vld [vmem:[#allocation5 + $0x110] sm:$0xff]
    %v219 = vld [vmem:[#allocation5 + $0x118] sm:$0xff]
    %v220 = vld [vmem:[#allocation5 + $0x120] sm:$0xff]
    %v221 = vld [vmem:[#allocation5 + $0x128] sm:$0xff]
    %v222 = vld [vmem:[#allocation5 + $0x130] sm:$0xff]
    %v223 = vld [vmem:[#allocation5 + $0x138] sm:$0xff]
    %v224 = vld [vmem:[#allocation5 + $0x140] sm:$0xff]
    %v225 = vld [vmem:[#allocation5 + $0x148] sm:$0xff]
    %v226 = vld [vmem:[#allocation5 + $0x150] sm:$0xff]
    %v227 = vld [vmem:[#allocation5 + $0x158] sm:$0xff]
    %v228 = vld [vmem:[#allocation5 + $0x160] sm:$0xff]
    %v229 = vld [vmem:[#allocation5 + $0x168] sm:$0xff]
    %v230 = vld [vmem:[#allocation5 + $0x170] sm:$0xff]
    %v231 = vld [vmem:[#allocation5 + $0x178] sm:$0xff]
    %v232 = vld [vmem:[#allocation5 + $0x180] sm:$0xff]
    %v233 = vld [vmem:[#allocation5 + $0x188] sm:$0xff]
    %v234 = vld [vmem:[#allocation5 + $0x190] sm:$0xff]
    %v235 = vld [vmem:[#allocation5 + $0x198] sm:$0xff]
    %v236 = vld [vmem:[#allocation5 + $0x1a0] sm:$0xff]
    %v237 = vld [vmem:[#allocation5 + $0x1a8] sm:$0xff]
    %v238 = vld [vmem:[#allocation5 + $0x1b0] sm:$0xff]
    %v239 = vld [vmem:[#allocation5 + $0x1b8] sm:$0xff]
    %v240 = vld [vmem:[#allocation5 + $0x1c0] sm:$0xff]
    %v241 = vld [vmem:[#allocation5 + $0x1c8] sm:$0xff]
    %v242 = vld [vmem:[#allocation5 + $0x1d0] sm:$0xff]
    %v243 = vld [vmem:[#allocation5 + $0x1d8] sm:$0xff]
    %v244 = vld [vmem:[#allocation5 + $0x1e0] sm:$0xff]
    %v245 = vld [vmem:[#allocation5 + $0x1e8] sm:$0xff]
    %v246 = vld [vmem:[#allocation5 + $0x1f0] sm:$0xff]
    %v247 = vld [vmem:[#allocation5 + $0x1f8] sm:$0xff]
    %v248 = vld [vmem:[#allocation5 + $0x200] sm:$0xff]
    %v249 = vld [vmem:[#allocation5 + $0x208] sm:$0xff]
    %v250 = vld [vmem:[#allocation5 + $0x210] sm:$0xff]
    %v251 = vld [vmem:[#allocation5 + $0x218] sm:$0xff]
    %v252 = vld [vmem:[#allocation5 + $0x220] sm:$0xff]
    %v253 = vld [vmem:[#allocation5 + $0x228] sm:$0xff]
    %v254 = vld [vmem:[#allocation5 + $0x230] sm:$0xff]
    %v255 = vld [vmem:[#allocation5 + $0x238] sm:$0xff]
    %v256 = vld [vmem:[#allocation5 + $0x240] sm:$0xff]
    %v257 = vld [vmem:[#allocation5 + $0x248] sm:$0xff]
    %v258 = vld [vmem:[#allocation5 + $0x250] sm:$0xff]
    %v259 = vld [vmem:[#allocation5 + $0x258] sm:$0xff]
    %v260 = vld [vmem:[#allocation5 + $0x260] sm:$0xff]
    %v261 = vld [vmem:[#allocation5 + $0x268] sm:$0xff]
    %v262 = vld [vmem:[#allocation5 + $0x270] sm:$0xff]
    %v263 = vld [vmem:[#allocation5 + $0x278] sm:$0xff]
    %v264 = vld [vmem:[#allocation5 + $0x280] sm:$0xff]
    %v265 = vld [vmem:[#allocation5 + $0x288] sm:$0xff]
    %v266 = vld [vmem:[#allocation5 + $0x290] sm:$0xff]
    %v267 = vld [vmem:[#allocation5 + $0x298] sm:$0xff]
    %v268 = vld [vmem:[#allocation5 + $0x2a0] sm:$0xff]
    %v269 = vld [vmem:[#allocation5 + $0x2a8] sm:$0xff]
    %v270 = vld [vmem:[#allocation5 + $0x2b0] sm:$0xff]
    %v271 = vld [vmem:[#allocation5 + $0x2b8] sm:$0xff]
    %v272 = vld [vmem:[#allocation5 + $0x2c0] sm:$0xff]
    %v273 = vld [vmem:[#allocation5 + $0x2c8] sm:$0xff]
    %v274 = vld [vmem:[#allocation5 + $0x2d0] sm:$0xff]
    %v275 = vld [vmem:[#allocation5 + $0x2d8] sm:$0xff]
    %v276 = vld [vmem:[#allocation5 + $0x2e0] sm:$0xff]
    %v277 = vld [vmem:[#allocation5 + $0x2e8] sm:$0xff]
    %v278 = vld [vmem:[#allocation5 + $0x2f0] sm:$0xff]
    %v279 = vld [vmem:[#allocation5 + $0x2f8] sm:$0xff]
    %v280 = vld [vmem:[#allocation5 + $0x300] sm:$0xff]
    %v281 = vld [vmem:[#allocation5 + $0x308] sm:$0xff]
    %v282 = vld [vmem:[#allocation5 + $0x310] sm:$0xff]
    %v283 = vld [vmem:[#allocation5 + $0x318] sm:$0xff]
    %v284 = vld [vmem:[#allocation5 + $0x320] sm:$0xff]
    %v285 = vld [vmem:[#allocation5 + $0x328] sm:$0xff]
    %v286 = vld [vmem:[#allocation5 + $0x330] sm:$0xff]
    %v287 = vld [vmem:[#allocation5 + $0x338] sm:$0xff]
    %v288 = vld [vmem:[#allocation5 + $0x340] sm:$0xff]
    %v289 = vld [vmem:[#allocation5 + $0x348] sm:$0xff]
    %v290 = vld [vmem:[#allocation5 + $0x350] sm:$0xff]
    %v291 = vld [vmem:[#allocation5 + $0x358] sm:$0xff]
    %v292 = vld [vmem:[#allocation5 + $0x360] sm:$0xff]
    %v293 = vld [vmem:[#allocation5 + $0x368] sm:$0xff]
    %v294 = vld [vmem:[#allocation5 + $0x370] sm:$0xff]
    %v295 = vld [vmem:[#allocation5 + $0x378] sm:$0xff]
    %v296 = vld [vmem:[#allocation5 + $0x380] sm:$0xff]
    %v297 = vld [vmem:[#allocation5 + $0x388] sm:$0xff]
    %v298 = vld [vmem:[#allocation5 + $0x390] sm:$0xff]
    %v299 = vld [vmem:[#allocation5 + $0x398] sm:$0xff]
    %v300 = vld [vmem:[#allocation5 + $0x3a0] sm:$0xff]
    %v301 = vld [vmem:[#allocation5 + $0x3a8] sm:$0xff]
    %v302 = vld [vmem:[#allocation5 + $0x3b0] sm:$0xff]
    %v303 = vld [vmem:[#allocation5 + $0x3b8] sm:$0xff]
    %v304 = vld [vmem:[#allocation5 + $0x3c0] sm:$0xff]
    %v305 = vld [vmem:[#allocation5 + $0x3c8] sm:$0xff]
    %v306 = vld [vmem:[#allocation5 + $0x3d0] sm:$0xff]
    %v307 = vld [vmem:[#allocation5 + $0x3d8] sm:$0xff]
    %v308 = vld [vmem:[#allocation5 + $0x3e0] sm:$0xff]
    %v309 = vld [vmem:[#allocation5 + $0x3e8] sm:$0xff]
    %v310 = vld [vmem:[#allocation5 + $0x3f0] sm:$0xff]
    %v311 = vld [vmem:[#allocation5 + $0x3f8] sm:$0xff]
    %v312 = vld [vmem:[#allocation5 + $0x400] sm:$0xff]
    %v313 = vld [vmem:[#allocation5 + $0x408] sm:$0xff]
    %v314 = vld [vmem:[#allocation5 + $0x410] sm:$0xff]
    %v315 = vld [vmem:[#allocation5 + $0x418] sm:$0xff]
    %v316 = vld [vmem:[#allocation5 + $0x420] sm:$0xff]
    %v317 = vld [vmem:[#allocation5 + $0x428] sm:$0xff]
    %v318 = vld [vmem:[#allocation5 + $0x430] sm:$0xff]
    %v319 = vld [vmem:[#allocation5 + $0x438] sm:$0xff]
    %v320 = vld [vmem:[#allocation5 + $0x440] sm:$0xff]
    %v321 = vld [vmem:[#allocation5 + $0x448] sm:$0xff]
    %v322 = vld [vmem:[#allocation5 + $0x450] sm:$0xff]
    %v323 = vld [vmem:[#allocation5 + $0x458] sm:$0xff]
    %v324 = vld [vmem:[#allocation5 + $0x460] sm:$0xff]
    %v325 = vld [vmem:[#allocation5 + $0x468] sm:$0xff]
    %v326 = vld [vmem:[#allocation5 + $0x470] sm:$0xff]
    %v327 = vld [vmem:[#allocation5 + $0x478] sm:$0xff]
    %v328 = vld [vmem:[#allocation5 + $0x480] sm:$0xff]
    %v329 = vld [vmem:[#allocation5 + $0x488] sm:$0xff]
    %v330 = vld [vmem:[#allocation5 + $0x490] sm:$0xff]
    %v331 = vld [vmem:[#allocation5 + $0x498] sm:$0xff]
    %v332 = vld [vmem:[#allocation5 + $0x4a0] sm:$0xff]
    %v333 = vld [vmem:[#allocation5 + $0x4a8] sm:$0xff]
    %v334 = vld [vmem:[#allocation5 + $0x4b0] sm:$0xff]
    %v335 = vld [vmem:[#allocation5 + $0x4b8] sm:$0xff]
    %v336 = vld [vmem:[#allocation5 + $0x4c0] sm:$0xff]
    %v337 = vld [vmem:[#allocation5 + $0x4c8] sm:$0xff]
    %v338 = vld [vmem:[#allocation5 + $0x4d0] sm:$0xff]
    %v339 = vld [vmem:[#allocation5 + $0x4d8] sm:$0xff]
    %v340 = vld [vmem:[#allocation5 + $0x4e0] sm:$0xff]
    %v341 = vld [vmem:[#allocation5 + $0x4e8] sm:$0xff]
    %v342 = vld [vmem:[#allocation5 + $0x4f0] sm:$0xff]
    %v343 = vld [vmem:[#allocation5 + $0x4f8] sm:$0xff]
    %v344 = vld [vmem:[#allocation5 + $0x500] sm:$0xff]
    %v345 = vld [vmem:[#allocation5 + $0x508] sm:$0xff]
    %v346 = vld [vmem:[#allocation5 + $0x510] sm:$0xff]
    %v347 = vld [vmem:[#allocation5 + $0x518] sm:$0xff]
    %v348 = vld [vmem:[#allocation5 + $0x520] sm:$0xff]
    %v349 = vld [vmem:[#allocation5 + $0x528] sm:$0xff]
    %v350 = vld [vmem:[#allocation5 + $0x530] sm:$0xff]
    %v351 = vld [vmem:[#allocation5 + $0x538] sm:$0xff]
    %v352 = vld [vmem:[#allocation5 + $0x540] sm:$0xff]
    %v353 = vld [vmem:[#allocation5 + $0x548] sm:$0xff]
    %v354 = vld [vmem:[#allocation5 + $0x550] sm:$0xff]
    %v355 = vld [vmem:[#allocation5 + $0x558] sm:$0xff]
    %v356 = vld [vmem:[#allocation5 + $0x560] sm:$0xff]
    %v357 = vld [vmem:[#allocation5 + $0x568] sm:$0xff]
    %v358 = vld [vmem:[#allocation5 + $0x570] sm:$0xff]
    %v359 = vld [vmem:[#allocation5 + $0x578] sm:$0xff]
    %v360 = vld [vmem:[#allocation5 + $0x580] sm:$0xff]
    %v361 = vld [vmem:[#allocation5 + $0x588] sm:$0xff]
    %v362 = vld [vmem:[#allocation5 + $0x590] sm:$0xff]
    %v363 = vld [vmem:[#allocation5 + $0x598] sm:$0xff]
    %v364 = vld [vmem:[#allocation5 + $0x5a0] sm:$0xff]
    %v365 = vld [vmem:[#allocation5 + $0x5a8] sm:$0xff]
    %v366 = vld [vmem:[#allocation5 + $0x5b0] sm:$0xff]
    %v367 = vld [vmem:[#allocation5 + $0x5b8] sm:$0xff]
    %v368 = vld [vmem:[#allocation5 + $0x5c0] sm:$0xff]
    %v369 = vld [vmem:[#allocation5 + $0x5c8] sm:$0xff]
    %v370 = vld [vmem:[#allocation5 + $0x5d0] sm:$0xff]
    %v371 = vld [vmem:[#allocation5 + $0x5d8] sm:$0xff]
    %v372 = vld [vmem:[#allocation5 + $0x5e0] sm:$0xff]
    %v373 = vld [vmem:[#allocation5 + $0x5e8] sm:$0xff]
    %v374 = vld [vmem:[#allocation5 + $0x5f0] sm:$0xff]
    %v375 = vld [vmem:[#allocation5 + $0x5f8] sm:$0xff]
    %v376 = vld [vmem:[#allocation5 + $0x600] sm:$0xff]
    %v377 = vld [vmem:[#allocation5 + $0x608] sm:$0xff]
    %v378 = vld [vmem:[#allocation5 + $0x610] sm:$0xff]
    %v379 = vld [vmem:[#allocation5 + $0x618] sm:$0xff]
    %v380 = vld [vmem:[#allocation5 + $0x620] sm:$0xff]
    %v381 = vld [vmem:[#allocation5 + $0x628] sm:$0xff]
    %v382 = vld [vmem:[#allocation5 + $0x630] sm:$0xff]
    %v383 = vld [vmem:[#allocation5 + $0x638] sm:$0xff]
    %v384 = vld [vmem:[#allocation5 + $0x640] sm:$0xff]
    %v385 = vld [vmem:[#allocation5 + $0x648] sm:$0xff]
    %v386 = vld [vmem:[#allocation5 + $0x650] sm:$0xff]
    %v387 = vld [vmem:[#allocation5 + $0x658] sm:$0xff]
    %v388 = vld [vmem:[#allocation5 + $0x660] sm:$0xff]
    %v389 = vld [vmem:[#allocation5 + $0x668] sm:$0xff]
    %v390 = vld [vmem:[#allocation5 + $0x670] sm:$0xff]
    %v391 = vld [vmem:[#allocation5 + $0x678] sm:$0xff]
    %v392 = vld [vmem:[#allocation5 + $0x680] sm:$0xff]
    %v393 = vld [vmem:[#allocation5 + $0x688] sm:$0xff]
    %v394 = vld [vmem:[#allocation5 + $0x690] sm:$0xff]
    %v395 = vld [vmem:[#allocation5 + $0x698] sm:$0xff]
    %v396 = vld [vmem:[#allocation5 + $0x6a0] sm:$0xff]
    %v397 = vld [vmem:[#allocation5 + $0x6a8] sm:$0xff]
    %v398 = vld [vmem:[#allocation5 + $0x6b0] sm:$0xff]
    %v399 = vld [vmem:[#allocation5 + $0x6b8] sm:$0xff]
    %v400 = vld [vmem:[#allocation5 + $0x6c0] sm:$0xff]
    %v401 = vld [vmem:[#allocation5 + $0x6c8] sm:$0xff]
    %v402 = vld [vmem:[#allocation5 + $0x6d0] sm:$0xff]
    %v403 = vld [vmem:[#allocation5 + $0x6d8] sm:$0xff]
    %v404 = vld [vmem:[#allocation5 + $0x6e0] sm:$0xff]
    %v405 = vld [vmem:[#allocation5 + $0x6e8] sm:$0xff]
    %v406 = vld [vmem:[#allocation5 + $0x6f0] sm:$0xff]
    %v407 = vld [vmem:[#allocation5 + $0x6f8] sm:$0xff]
    %v408 = vld [vmem:[#allocation5 + $0x700] sm:$0xff]
    %v409 = vld [vmem:[#allocation5 + $0x708] sm:$0xff]
    %v410 = vld [vmem:[#allocation5 + $0x710] sm:$0xff]
    %v411 = vld [vmem:[#allocation5 + $0x718] sm:$0xff]
    %v412 = vld [vmem:[#allocation5 + $0x720] sm:$0xff]
    %v413 = vld [vmem:[#allocation5 + $0x728] sm:$0xff]
    %v414 = vld [vmem:[#allocation5 + $0x730] sm:$0xff]
    %v415 = vld [vmem:[#allocation5 + $0x738] sm:$0xff]
    %v416 = vld [vmem:[#allocation5 + $0x740] sm:$0xff]
    %v417 = vld [vmem:[#allocation5 + $0x748] sm:$0xff]
    %v418 = vld [vmem:[#allocation5 + $0x750] sm:$0xff]
    %v419 = vld [vmem:[#allocation5 + $0x758] sm:$0xff]
    %v420 = vld [vmem:[#allocation5 + $0x760] sm:$0xff]
    %v421 = vld [vmem:[#allocation5 + $0x768] sm:$0xff]
    %v422 = vld [vmem:[#allocation5 + $0x770] sm:$0xff]
    %v423 = vld [vmem:[#allocation5 + $0x778] sm:$0xff]
    %v424 = vld [vmem:[#allocation5 + $0x780] sm:$0xff]
    %v425 = vld [vmem:[#allocation5 + $0x788] sm:$0xff]
    %v426 = vld [vmem:[#allocation5 + $0x790] sm:$0xff]
    %v427 = vld [vmem:[#allocation5 + $0x798] sm:$0xff]
    %v428 = vld [vmem:[#allocation5 + $0x7a0] sm:$0xff]
    %v429 = vld [vmem:[#allocation5 + $0x7a8] sm:$0xff]
    %v430 = vld [vmem:[#allocation5 + $0x7b0] sm:$0xff]
    %v431 = vld [vmem:[#allocation5 + $0x7b8] sm:$0xff]
    %v432 = vld [vmem:[#allocation5 + $0x7c0] sm:$0xff]
    %v433 = vld [vmem:[#allocation5 + $0x7c8] sm:$0xff]
    %v434 = vld [vmem:[#allocation5 + $0x7d0] sm:$0xff]
    %v435 = vld [vmem:[#allocation5 + $0x7d8] sm:$0xff]
    %v436 = vld [vmem:[#allocation5 + $0x7e0] sm:$0xff]
    %v437 = vld [vmem:[#allocation5 + $0x7e8] sm:$0xff]
    %v438 = vld [vmem:[#allocation5 + $0x7f0] sm:$0xff]
    %v439 = vld [vmem:[#allocation5 + $0x7f8] sm:$0xff]
    %v440 = vld [vmem:[#allocation5 + $0x800] sm:$0xff]
    %v441 = vld [vmem:[#allocation5 + $0x808] sm:$0xff]
    %v442 = vld [vmem:[#allocation5 + $0x810] sm:$0xff]
    %v443 = vld [vmem:[#allocation5 + $0x818] sm:$0xff]
    %v444 = vld [vmem:[#allocation5 + $0x820] sm:$0xff]
    %v445 = vld [vmem:[#allocation5 + $0x828] sm:$0xff]
    %v446 = vld [vmem:[#allocation5 + $0x830] sm:$0xff]
    %v447 = vld [vmem:[#allocation5 + $0x838] sm:$0xff]
    %v448 = vld [vmem:[#allocation5 + $0x840] sm:$0xff]
    %v449 = vld [vmem:[#allocation5 + $0x848] sm:$0xff]
    %v450 = vld [vmem:[#allocation5 + $0x850] sm:$0xff]
    %v451 = vld [vmem:[#allocation5 + $0x858] sm:$0xff]
    %v452 = vld [vmem:[#allocation5 + $0x860] sm:$0xff]
    %v453 = vld [vmem:[#allocation5 + $0x868] sm:$0xff]
    %v454 = vld [vmem:[#allocation5 + $0x870] sm:$0xff]
    %v455 = vld [vmem:[#allocation5 + $0x878] sm:$0xff]
    %v456 = vld [vmem:[#allocation5 + $0x880] sm:$0xff]
    %v457 = vld [vmem:[#allocation5 + $0x888] sm:$0xff]
    %v458 = vld [vmem:[#allocation5 + $0x890] sm:$0xff]
    %v459 = vld [vmem:[#allocation5 + $0x898] sm:$0xff]
    %v460 = vld [vmem:[#allocation5 + $0x8a0] sm:$0xff]
    %v461 = vld [vmem:[#allocation5 + $0x8a8] sm:$0xff]
    %v462 = vld [vmem:[#allocation5 + $0x8b0] sm:$0xff]
    %v463 = vld [vmem:[#allocation5 + $0x8b8] sm:$0xff]
    %v464 = vld [vmem:[#allocation5 + $0x8c0] sm:$0xff]
    %v465 = vld [vmem:[#allocation5 + $0x8c8] sm:$0xff]
    %v466 = vld [vmem:[#allocation5 + $0x8d0] sm:$0xff]
    %v467 = vld [vmem:[#allocation5 + $0x8d8] sm:$0xff]
    %v468 = vld [vmem:[#allocation5 + $0x8e0] sm:$0xff]
    %v469 = vld [vmem:[#allocation5 + $0x8e8] sm:$0xff]
    %v470 = vld [vmem:[#allocation5 + $0x8f0] sm:$0xff]
    %v471 = vld [vmem:[#allocation5 + $0x8f8] sm:$0xff]
    %v472 = vld [vmem:[#allocation5 + $0x900] sm:$0xff]
    %v473 = vld [vmem:[#allocation5 + $0x908] sm:$0xff]
    %v474 = vld [vmem:[#allocation5 + $0x910] sm:$0xff]
    %v475 = vld [vmem:[#allocation5 + $0x918] sm:$0xff]
    %v476 = vld [vmem:[#allocation5 + $0x920] sm:$0xff]
    %v477 = vld [vmem:[#allocation5 + $0x928] sm:$0xff]
    %v478 = vld [vmem:[#allocation5 + $0x930] sm:$0xff]
    %v479 = vld [vmem:[#allocation5 + $0x938] sm:$0xff]
    %v480 = vld [vmem:[#allocation5 + $0x940] sm:$0xff]
    %v481 = vld [vmem:[#allocation5 + $0x948] sm:$0xff]
    %v482 = vld [vmem:[#allocation5 + $0x950] sm:$0xff]
    %v483 = vld [vmem:[#allocation5 + $0x958] sm:$0xff]
    %v484 = vld [vmem:[#allocation5 + $0x960] sm:$0xff]
    %v485 = vld [vmem:[#allocation5 + $0x968] sm:$0xff]
    %v486 = vld [vmem:[#allocation5 + $0x970] sm:$0xff]
    %v487 = vld [vmem:[#allocation5 + $0x978] sm:$0xff]
    %v488 = vld [vmem:[#allocation5 + $0x980] sm:$0xff]
    %v489 = vld [vmem:[#allocation5 + $0x988] sm:$0xff]
    %v490 = vld [vmem:[#allocation5 + $0x990] sm:$0xff]
    %v491 = vld [vmem:[#allocation5 + $0x998] sm:$0xff]
    %v492 = vld [vmem:[#allocation5 + $0x9a0] sm:$0xff]
    %v493 = vld [vmem:[#allocation5 + $0x9a8] sm:$0xff]
    %v494 = vld [vmem:[#allocation5 + $0x9b0] sm:$0xff]
    %v495 = vld [vmem:[#allocation5 + $0x9b8] sm:$0xff]
    %v496 = vld [vmem:[#allocation5 + $0x9c0] sm:$0xff]
    %v497 = vld [vmem:[#allocation5 + $0x9c8] sm:$0xff]
    %v498 = vld [vmem:[#allocation5 + $0x9d0] sm:$0xff]
    %v499 = vld [vmem:[#allocation5 + $0x9d8] sm:$0xff]
    %v500 = vld [vmem:[#allocation5 + $0x9e0] sm:$0xff]
    %v501 = vld [vmem:[#allocation5 + $0x9e8] sm:$0xff]
    %v502 = vld [vmem:[#allocation5 + $0x9f0] sm:$0xff]
    %v503 = vld [vmem:[#allocation5 + $0x9f8] sm:$0xff]
    %v504 = vld [vmem:[#allocation5 + $0xa00] sm:$0xff]
    %v505 = vld [vmem:[#allocation5 + $0xa08] sm:$0xff]
    %v506 = vld [vmem:[#allocation5 + $0xa10] sm:$0xff]
    %v507 = vld [vmem:[#allocation5 + $0xa18] sm:$0xff]
    %v508 = vld [vmem:[#allocation5 + $0xa20] sm:$0xff]
    %v509 = vld [vmem:[#allocation5 + $0xa28] sm:$0xff]
    %v510 = vld [vmem:[#allocation5 + $0xa30] sm:$0xff]
    %v511 = vld [vmem:[#allocation5 + $0xa38] sm:$0xff]
    %v512 = vld [vmem:[#allocation5 + $0xa40] sm:$0xff]
    %v513 = vld [vmem:[#allocation5 + $0xa48] sm:$0xff]
    %v514 = vld [vmem:[#allocation5 + $0xa50] sm:$0xff]
    %v515 = vld [vmem:[#allocation5 + $0xa58] sm:$0xff]
    %v516 = vld [vmem:[#allocation5 + $0xa60] sm:$0xff]
    %v517 = vld [vmem:[#allocation5 + $0xa68] sm:$0xff]
    %v518 = vld [vmem:[#allocation5 + $0xa70] sm:$0xff]
    %v519 = vld [vmem:[#allocation5 + $0xa78] sm:$0xff]
    %v520 = vld [vmem:[#allocation5 + $0xa80] sm:$0xff]
    %v521 = vld [vmem:[#allocation5 + $0xa88] sm:$0xff]
    %v522 = vld [vmem:[#allocation5 + $0xa90] sm:$0xff]
    %v523 = vld [vmem:[#allocation5 + $0xa98] sm:$0xff]
    %v524 = vld [vmem:[#allocation5 + $0xaa0] sm:$0xff]
    %v525 = vld [vmem:[#allocation5 + $0xaa8] sm:$0xff]
    %v526 = vld [vmem:[#allocation5 + $0xab0] sm:$0xff]
    %v527 = vld [vmem:[#allocation5 + $0xab8] sm:$0xff]
    %v528 = vld [vmem:[#allocation5 + $0xac0] sm:$0xff]
    %v529 = vld [vmem:[#allocation5 + $0xac8] sm:$0xff]
    %v530 = vld [vmem:[#allocation5 + $0xad0] sm:$0xff]
    %v531 = vld [vmem:[#allocation5 + $0xad8] sm:$0xff]
    %v532 = vld [vmem:[#allocation5 + $0xae0] sm:$0xff]
    %v533 = vld [vmem:[#allocation5 + $0xae8] sm:$0xff]
    %v534 = vld [vmem:[#allocation5 + $0xaf0] sm:$0xff]
    %v535 = vld [vmem:[#allocation5 + $0xaf8] sm:$0xff]
    %v536 = vld [vmem:[#allocation5 + $0xb00] sm:$0xff]
    %v537 = vld [vmem:[#allocation5 + $0xb08] sm:$0xff]
    %v538 = vld [vmem:[#allocation5 + $0xb10] sm:$0xff]
    %v539 = vld [vmem:[#allocation5 + $0xb18] sm:$0xff]
    %v540 = vld [vmem:[#allocation5 + $0xb20] sm:$0xff]
    %v541 = vld [vmem:[#allocation5 + $0xb28] sm:$0xff]
    %v542 = vld [vmem:[#allocation5 + $0xb30] sm:$0xff]
    %v543 = vld [vmem:[#allocation5 + $0xb38] sm:$0xff]
    %v544 = vld [vmem:[#allocation5 + $0xb40] sm:$0xff]
    %v545 = vld [vmem:[#allocation5 + $0xb48] sm:$0xff]
    %v546 = vld [vmem:[#allocation5 + $0xb50] sm:$0xff]
    %v547 = vld [vmem:[#allocation5 + $0xb58] sm:$0xff]
    %v548 = vld [vmem:[#allocation5 + $0xb60] sm:$0xff]
    %v549 = vld [vmem:[#allocation5 + $0xb68] sm:$0xff]
    %v550 = vld [vmem:[#allocation5 + $0xb70] sm:$0xff]
    %v551 = vld [vmem:[#allocation5 + $0xb78] sm:$0xff]
    %v552 = vld [vmem:[#allocation5 + $0xb80] sm:$0xff]
    %v553 = vld [vmem:[#allocation5 + $0xb88] sm:$0xff]
    %v554 = vld [vmem:[#allocation5 + $0xb90] sm:$0xff]
    %v555 = vld [vmem:[#allocation5 + $0xb98] sm:$0xff]
    %v556 = vld [vmem:[#allocation5 + $0xba0] sm:$0xff]
    %v557 = vld [vmem:[#allocation5 + $0xba8] sm:$0xff]
    %v558 = vld [vmem:[#allocation5 + $0xbb0] sm:$0xff]
    %v559 = vld [vmem:[#allocation5 + $0xbb8] sm:$0xff]
    %v560 = vld [vmem:[#allocation5 + $0xbc0] sm:$0xff]
    %v561 = vld [vmem:[#allocation5 + $0xbc8] sm:$0xff]
    %v562 = vld [vmem:[#allocation5 + $0xbd0] sm:$0xff]
    %v563 = vld [vmem:[#allocation5 + $0xbd8] sm:$0xff]
    %v564 = vld [vmem:[#allocation5 + $0xbe0] sm:$0xff]
    %v565 = vld [vmem:[#allocation5 + $0xbe8] sm:$0xff]
    %v566 = vld [vmem:[#allocation5 + $0xbf0] sm:$0xff]
    %v567 = vld [vmem:[#allocation5 + $0xbf8] sm:$0xff]
    %v568 = vld [vmem:[#allocation5 + $0xc00] sm:$0xff]
    %v569 = vld [vmem:[#allocation5 + $0xc08] sm:$0xff]
    %v570 = vld [vmem:[#allocation5 + $0xc10] sm:$0xff]
    %v571 = vld [vmem:[#allocation5 + $0xc18] sm:$0xff]
    %v572 = vld [vmem:[#allocation5 + $0xc20] sm:$0xff]
    %v573 = vld [vmem:[#allocation5 + $0xc28] sm:$0xff]
    %v574 = vld [vmem:[#allocation5 + $0xc30] sm:$0xff]
    %v575 = vld [vmem:[#allocation5 + $0xc38] sm:$0xff]
    %v576 = vld [vmem:[#allocation5 + $0xc40] sm:$0xff]
    %v577 = vld [vmem:[#allocation5 + $0xc48] sm:$0xff]
    %v578 = vld [vmem:[#allocation5 + $0xc50] sm:$0xff]
    %v579 = vld [vmem:[#allocation5 + $0xc58] sm:$0xff]
    %v580 = vld [vmem:[#allocation5 + $0xc60] sm:$0xff]
    %v581 = vld [vmem:[#allocation5 + $0xc68] sm:$0xff]
    %v582 = vld [vmem:[#allocation5 + $0xc70] sm:$0xff]
    %v583 = vld [vmem:[#allocation5 + $0xc78] sm:$0xff]
    %v584 = vld [vmem:[#allocation5 + $0xc80] sm:$0xff]
    %v585 = vld [vmem:[#allocation5 + $0xc88] sm:$0xff]
    %v586 = vld [vmem:[#allocation5 + $0xc90] sm:$0xff]
    %v587 = vld [vmem:[#allocation5 + $0xc98] sm:$0xff]
    %v588 = vld [vmem:[#allocation5 + $0xca0] sm:$0xff]
    %v589 = vld [vmem:[#allocation5 + $0xca8] sm:$0xff]
    %v590 = vld [vmem:[#allocation5 + $0xcb0] sm:$0xff]
    %v591 = vld [vmem:[#allocation5 + $0xcb8] sm:$0xff]
    %v592 = vld [vmem:[#allocation5 + $0xcc0] sm:$0xff]
    %v593 = vld [vmem:[#allocation5 + $0xcc8] sm:$0xff]
    %v594 = vld [vmem:[#allocation5 + $0xcd0] sm:$0xff]
    %v595 = vld [vmem:[#allocation5 + $0xcd8] sm:$0xff]
    %v596 = vld [vmem:[#allocation5 + $0xce0] sm:$0xff]
    %v597 = vld [vmem:[#allocation5 + $0xce8] sm:$0xff]
    %v598 = vld [vmem:[#allocation5 + $0xcf0] sm:$0xff]
    %v599 = vld [vmem:[#allocation5 + $0xcf8] sm:$0xff]
    %v600 = vld [vmem:[#allocation5 + $0xd00] sm:$0xff]
    %v601 = vld [vmem:[#allocation5 + $0xd08] sm:$0xff]
    %v602 = vld [vmem:[#allocation5 + $0xd10] sm:$0xff]
    %v603 = vld [vmem:[#allocation5 + $0xd18] sm:$0xff]
    %v604 = vld [vmem:[#allocation5 + $0xd20] sm:$0xff]
    %v605 = vld [vmem:[#allocation5 + $0xd28] sm:$0xff]
    %v606 = vld [vmem:[#allocation5 + $0xd30] sm:$0xff]
    %v607 = vld [vmem:[#allocation5 + $0xd38] sm:$0xff]
    %v608 = vld [vmem:[#allocation5 + $0xd40] sm:$0xff]
    %v609 = vld [vmem:[#allocation5 + $0xd48] sm:$0xff]
    %v610 = vld [vmem:[#allocation5 + $0xd50] sm:$0xff]
    %v611 = vld [vmem:[#allocation5 + $0xd58] sm:$0xff]
    %v612 = vld [vmem:[#allocation5 + $0xd60] sm:$0xff]
    %v613 = vld [vmem:[#allocation5 + $0xd68] sm:$0xff]
    %v614 = vld [vmem:[#allocation5 + $0xd70] sm:$0xff]
    %v615 = vld [vmem:[#allocation5 + $0xd78] sm:$0xff]
    %v616 = vld [vmem:[#allocation5 + $0xd80] sm:$0xff]
    %v617 = vld [vmem:[#allocation5 + $0xd88] sm:$0xff]
    %v618 = vld [vmem:[#allocation5 + $0xd90] sm:$0xff]
    %v619 = vld [vmem:[#allocation5 + $0xd98] sm:$0xff]
    %v620 = vld [vmem:[#allocation5 + $0xda0] sm:$0xff]
    %v621 = vld [vmem:[#allocation5 + $0xda8] sm:$0xff]
    %v622 = vld [vmem:[#allocation5 + $0xdb0] sm:$0xff]
    %v623 = vld [vmem:[#allocation5 + $0xdb8] sm:$0xff]
    %v624 = vld [vmem:[#allocation5 + $0xdc0] sm:$0xff]
    %v625 = vld [vmem:[#allocation5 + $0xdc8] sm:$0xff]
    %v626 = vld [vmem:[#allocation5 + $0xdd0] sm:$0xff]
    %v627 = vld [vmem:[#allocation5 + $0xdd8] sm:$0xff]
    %v628 = vld [vmem:[#allocation5 + $0xde0] sm:$0xff]
    %v629 = vld [vmem:[#allocation5 + $0xde8] sm:$0xff]
    %v630 = vld [vmem:[#allocation5 + $0xdf0] sm:$0xff]
    %v631 = vld [vmem:[#allocation5 + $0xdf8] sm:$0xff]
    %v632 = vld [vmem:[#allocation5 + $0xe00] sm:$0xff]
    %v633 = vld [vmem:[#allocation5 + $0xe08] sm:$0xff]
    %v634 = vld [vmem:[#allocation5 + $0xe10] sm:$0xff]
    %v635 = vld [vmem:[#allocation5 + $0xe18] sm:$0xff]
    %v636 = vld [vmem:[#allocation5 + $0xe20] sm:$0xff]
    %v637 = vld [vmem:[#allocation5 + $0xe28] sm:$0xff]
    %v638 = vld [vmem:[#allocation5 + $0xe30] sm:$0xff]
    %v639 = vld [vmem:[#allocation5 + $0xe38] sm:$0xff]
    %v640 = vld [vmem:[#allocation5 + $0xe40] sm:$0xff]
    %v641 = vld [vmem:[#allocation5 + $0xe48] sm:$0xff]
    %v642 = vld [vmem:[#allocation5 + $0xe50] sm:$0xff]
    %v643 = vld [vmem:[#allocation5 + $0xe58] sm:$0xff]
    %v644 = vld [vmem:[#allocation5 + $0xe60] sm:$0xff]
    %v645 = vld [vmem:[#allocation5 + $0xe68] sm:$0xff]
    %v646 = vld [vmem:[#allocation5 + $0xe70] sm:$0xff]
    %v647 = vld [vmem:[#allocation5 + $0xe78] sm:$0xff]
    %v648 = vld [vmem:[#allocation5 + $0xe80] sm:$0xff]
    %v649 = vld [vmem:[#allocation5 + $0xe88] sm:$0xff]
    %v650 = vld [vmem:[#allocation5 + $0xe90] sm:$0xff]
    %v651 = vld [vmem:[#allocation5 + $0xe98] sm:$0xff]
    %v652 = vld [vmem:[#allocation5 + $0xea0] sm:$0xff]
    %v653 = vld [vmem:[#allocation5 + $0xea8] sm:$0xff]
    %v654 = vld [vmem:[#allocation5 + $0xeb0] sm:$0xff]
    %v655 = vld [vmem:[#allocation5 + $0xeb8] sm:$0xff]
    %v656 = vld [vmem:[#allocation5 + $0xec0] sm:$0xff]
    %v657 = vld [vmem:[#allocation5 + $0xec8] sm:$0xff]
    %v658 = vld [vmem:[#allocation5 + $0xed0] sm:$0xff]
    %v659 = vld [vmem:[#allocation5 + $0xed8] sm:$0xff]
    %v660 = vld [vmem:[#allocation5 + $0xee0] sm:$0xff]
    %v661 = vld [vmem:[#allocation5 + $0xee8] sm:$0xff]
    %v662 = vld [vmem:[#allocation5 + $0xef0] sm:$0xff]
    %v663 = vld [vmem:[#allocation5 + $0xef8] sm:$0xff]
    %v664 = vld [vmem:[#allocation5 + $0xf00] sm:$0xff]
    %v665 = vld [vmem:[#allocation5 + $0xf08] sm:$0xff]
    %v666 = vld [vmem:[#allocation5 + $0xf10] sm:$0xff]
    %v667 = vld [vmem:[#allocation5 + $0xf18] sm:$0xff]
    %v668 = vld [vmem:[#allocation5 + $0xf20] sm:$0xff]
    %v669 = vld [vmem:[#allocation5 + $0xf28] sm:$0xff]
    %v670 = vld [vmem:[#allocation5 + $0xf30] sm:$0xff]
    %v671 = vld [vmem:[#allocation5 + $0xf38] sm:$0xff]
    %v672 = vld [vmem:[#allocation5 + $0xf40] sm:$0xff]
    %v673 = vld [vmem:[#allocation5 + $0xf48] sm:$0xff]
    %v674 = vld [vmem:[#allocation5 + $0xf50] sm:$0xff]
    %v675 = vld [vmem:[#allocation5 + $0xf58] sm:$0xff]
    %v676 = vld [vmem:[#allocation5 + $0xf60] sm:$0xff]
    %v677 = vld [vmem:[#allocation5 + $0xf68] sm:$0xff]
    %v678 = vld [vmem:[#allocation5 + $0xf70] sm:$0xff]
    %v679 = vld [vmem:[#allocation5 + $0xf78] sm:$0xff]
    %v680 = vld [vmem:[#allocation5 + $0xf80] sm:$0xff]
    %v681 = vld [vmem:[#allocation5 + $0xf88] sm:$0xff]
    %v682 = vld [vmem:[#allocation5 + $0xf90] sm:$0xff]
    %v683 = vld [vmem:[#allocation5 + $0xf98] sm:$0xff]
    %v684 = vld [vmem:[#allocation5 + $0xfa0] sm:$0xff]
    %v685 = vld [vmem:[#allocation5 + $0xfa8] sm:$0xff]
    %v686 = vld [vmem:[#allocation5 + $0xfb0] sm:$0xff]
    %v687 = vld [vmem:[#allocation5 + $0xfb8] sm:$0xff]
    %v688 = vld [vmem:[#allocation5 + $0xfc0] sm:$0xff]
    %v689 = vld [vmem:[#allocation5 + $0xfc8] sm:$0xff]
    %v690 = vld [vmem:[#allocation5 + $0xfd0] sm:$0xff]
    %v691 = vld [vmem:[#allocation5 + $0xfd8] sm:$0xff]
    %v692 = vld [vmem:[#allocation5 + $0xfe0] sm:$0xff]
    %v693 = vld [vmem:[#allocation5 + $0xfe8] sm:$0xff]
    %v694 = vld [vmem:[#allocation5 + $0xff0] sm:$0xff]
    %v695 = vld [vmem:[#allocation5 + $0xff8] sm:$0xff]
    %v696 = vunpack.c.l.s8.bf16 %v184
    %v697 = vunpack.c.l.s8.bf16 %v185
    %v698 = vunpack.c.l.s8.bf16 %v186
    %v699 = vunpack.c.l.s8.bf16 %v187
    %v700 = vunpack.c.l.s8.bf16 %v188
    %v701 = vunpack.c.l.s8.bf16 %v189
    %v702 = vunpack.c.l.s8.bf16 %v190
    %v703 = vunpack.c.l.s8.bf16 %v191
    %v704 = vunpack.c.h.s8.bf16 %v184
    %v705 = vunpack.c.h.s8.bf16 %v185
    %v706 = vunpack.c.h.s8.bf16 %v186
    %v707 = vunpack.c.h.s8.bf16 %v187
    %v708 = vunpack.c.h.s8.bf16 %v188
    %v709 = vunpack.c.h.s8.bf16 %v189
    %v710 = vunpack.c.h.s8.bf16 %v190
    %v711 = vunpack.c.h.s8.bf16 %v191
    %v712 = vunpack.c.l.s8.bf16 %v192
    %v713 = vunpack.c.l.s8.bf16 %v193
    %v714 = vunpack.c.l.s8.bf16 %v194
    %v715 = vunpack.c.l.s8.bf16 %v195
    %v716 = vunpack.c.l.s8.bf16 %v196
    %v717 = vunpack.c.l.s8.bf16 %v197
    %v718 = vunpack.c.l.s8.bf16 %v198
    %v719 = vunpack.c.l.s8.bf16 %v199
    %v720 = vunpack.c.h.s8.bf16 %v192
    %v721 = vunpack.c.h.s8.bf16 %v193
    %v722 = vunpack.c.h.s8.bf16 %v194
    %v723 = vunpack.c.h.s8.bf16 %v195
    %v724 = vunpack.c.h.s8.bf16 %v196
    %v725 = vunpack.c.h.s8.bf16 %v197
    %v726 = vunpack.c.h.s8.bf16 %v198
    %v727 = vunpack.c.h.s8.bf16 %v199
    %v728 = vunpack.c.l.s8.bf16 %v200
    %v729 = vunpack.c.l.s8.bf16 %v201
    %v730 = vunpack.c.l.s8.bf16 %v202
    %v731 = vunpack.c.l.s8.bf16 %v203
    %v732 = vunpack.c.l.s8.bf16 %v204
    %v733 = vunpack.c.l.s8.bf16 %v205
    %v734 = vunpack.c.l.s8.bf16 %v206
    %v735 = vunpack.c.l.s8.bf16 %v207
    %v736 = vunpack.c.h.s8.bf16 %v200
    %v737 = vunpack.c.h.s8.bf16 %v201
    %v738 = vunpack.c.h.s8.bf16 %v202
    %v739 = vunpack.c.h.s8.bf16 %v203
    %v740 = vunpack.c.h.s8.bf16 %v204
    %v741 = vunpack.c.h.s8.bf16 %v205
    %v742 = vunpack.c.h.s8.bf16 %v206
    %v743 = vunpack.c.h.s8.bf16 %v207
    %v744 = vunpack.c.l.s8.bf16 %v208
    %v745 = vunpack.c.l.s8.bf16 %v209
    %v746 = vunpack.c.l.s8.bf16 %v210
    %v747 = vunpack.c.l.s8.bf16 %v211
    %v748 = vunpack.c.l.s8.bf16 %v212
    %v749 = vunpack.c.l.s8.bf16 %v213
    %v750 = vunpack.c.l.s8.bf16 %v214
    %v751 = vunpack.c.l.s8.bf16 %v215
    %v752 = vunpack.c.h.s8.bf16 %v208
    %v753 = vunpack.c.h.s8.bf16 %v209
    %v754 = vunpack.c.h.s8.bf16 %v210
    %v755 = vunpack.c.h.s8.bf16 %v211
    %v756 = vunpack.c.h.s8.bf16 %v212
    %v757 = vunpack.c.h.s8.bf16 %v213
    %v758 = vunpack.c.h.s8.bf16 %v214
    %v759 = vunpack.c.h.s8.bf16 %v215
    %v760 = vunpack.c.l.s8.bf16 %v216
    %v761 = vunpack.c.l.s8.bf16 %v217
    %v762 = vunpack.c.l.s8.bf16 %v218
    %v763 = vunpack.c.l.s8.bf16 %v219
    %v764 = vunpack.c.l.s8.bf16 %v220
    %v765 = vunpack.c.l.s8.bf16 %v221
    %v766 = vunpack.c.l.s8.bf16 %v222
    %v767 = vunpack.c.l.s8.bf16 %v223
    %v768 = vunpack.c.h.s8.bf16 %v216
    %v769 = vunpack.c.h.s8.bf16 %v217
    %v770 = vunpack.c.h.s8.bf16 %v218
    %v771 = vunpack.c.h.s8.bf16 %v219
    %v772 = vunpack.c.h.s8.bf16 %v220
    %v773 = vunpack.c.h.s8.bf16 %v221
    %v774 = vunpack.c.h.s8.bf16 %v222
    %v775 = vunpack.c.h.s8.bf16 %v223
    %v776 = vunpack.c.l.s8.bf16 %v224
    %v777 = vunpack.c.l.s8.bf16 %v225
    %v778 = vunpack.c.l.s8.bf16 %v226
    %v779 = vunpack.c.l.s8.bf16 %v227
    %v780 = vunpack.c.l.s8.bf16 %v228
    %v781 = vunpack.c.l.s8.bf16 %v229
    %v782 = vunpack.c.l.s8.bf16 %v230
    %v783 = vunpack.c.l.s8.bf16 %v231
    %v784 = vunpack.c.h.s8.bf16 %v224
    %v785 = vunpack.c.h.s8.bf16 %v225
    %v786 = vunpack.c.h.s8.bf16 %v226
    %v787 = vunpack.c.h.s8.bf16 %v227
    %v788 = vunpack.c.h.s8.bf16 %v228
    %v789 = vunpack.c.h.s8.bf16 %v229
    %v790 = vunpack.c.h.s8.bf16 %v230
    %v791 = vunpack.c.h.s8.bf16 %v231
    %v792 = vunpack.c.l.s8.bf16 %v232
    %v793 = vunpack.c.l.s8.bf16 %v233
    %v794 = vunpack.c.l.s8.bf16 %v234
    %v795 = vunpack.c.l.s8.bf16 %v235
    %v796 = vunpack.c.l.s8.bf16 %v236
    %v797 = vunpack.c.l.s8.bf16 %v237
    %v798 = vunpack.c.l.s8.bf16 %v238
    %v799 = vunpack.c.l.s8.bf16 %v239
    %v800 = vunpack.c.h.s8.bf16 %v232
    %v801 = vunpack.c.h.s8.bf16 %v233
    %v802 = vunpack.c.h.s8.bf16 %v234
    %v803 = vunpack.c.h.s8.bf16 %v235
    %v804 = vunpack.c.h.s8.bf16 %v236
    %v805 = vunpack.c.h.s8.bf16 %v237
    %v806 = vunpack.c.h.s8.bf16 %v238
    %v807 = vunpack.c.h.s8.bf16 %v239
    %v808 = vunpack.c.l.s8.bf16 %v240
    %v809 = vunpack.c.l.s8.bf16 %v241
    %v810 = vunpack.c.l.s8.bf16 %v242
    %v811 = vunpack.c.l.s8.bf16 %v243
    %v812 = vunpack.c.l.s8.bf16 %v244
    %v813 = vunpack.c.l.s8.bf16 %v245
    %v814 = vunpack.c.l.s8.bf16 %v246
    %v815 = vunpack.c.l.s8.bf16 %v247
    %v816 = vunpack.c.h.s8.bf16 %v240
    %v817 = vunpack.c.h.s8.bf16 %v241
    %v818 = vunpack.c.h.s8.bf16 %v242
    %v819 = vunpack.c.h.s8.bf16 %v243
    %v820 = vunpack.c.h.s8.bf16 %v244
    %v821 = vunpack.c.h.s8.bf16 %v245
    %v822 = vunpack.c.h.s8.bf16 %v246
    %v823 = vunpack.c.h.s8.bf16 %v247
    %v824 = vunpack.c.l.s8.bf16 %v248
    %v825 = vunpack.c.l.s8.bf16 %v249
    %v826 = vunpack.c.l.s8.bf16 %v250
    %v827 = vunpack.c.l.s8.bf16 %v251
    %v828 = vunpack.c.l.s8.bf16 %v252
    %v829 = vunpack.c.l.s8.bf16 %v253
    %v830 = vunpack.c.l.s8.bf16 %v254
    %v831 = vunpack.c.l.s8.bf16 %v255
    %v832 = vunpack.c.h.s8.bf16 %v248
    %v833 = vunpack.c.h.s8.bf16 %v249
    %v834 = vunpack.c.h.s8.bf16 %v250
    %v835 = vunpack.c.h.s8.bf16 %v251
    %v836 = vunpack.c.h.s8.bf16 %v252
    %v837 = vunpack.c.h.s8.bf16 %v253
    %v838 = vunpack.c.h.s8.bf16 %v254
    %v839 = vunpack.c.h.s8.bf16 %v255
    %v840 = vunpack.c.l.s8.bf16 %v256
    %v841 = vunpack.c.l.s8.bf16 %v257
    %v842 = vunpack.c.l.s8.bf16 %v258
    %v843 = vunpack.c.l.s8.bf16 %v259
    %v844 = vunpack.c.l.s8.bf16 %v260
    %v845 = vunpack.c.l.s8.bf16 %v261
    %v846 = vunpack.c.l.s8.bf16 %v262
    %v847 = vunpack.c.l.s8.bf16 %v263
    %v848 = vunpack.c.h.s8.bf16 %v256
    %v849 = vunpack.c.h.s8.bf16 %v257
    %v850 = vunpack.c.h.s8.bf16 %v258
    %v851 = vunpack.c.h.s8.bf16 %v259
    %v852 = vunpack.c.h.s8.bf16 %v260
    %v853 = vunpack.c.h.s8.bf16 %v261
    %v854 = vunpack.c.h.s8.bf16 %v262
    %v855 = vunpack.c.h.s8.bf16 %v263
    %v856 = vunpack.c.l.s8.bf16 %v264
    %v857 = vunpack.c.l.s8.bf16 %v265
    %v858 = vunpack.c.l.s8.bf16 %v266
    %v859 = vunpack.c.l.s8.bf16 %v267
    %v860 = vunpack.c.l.s8.bf16 %v268
    %v861 = vunpack.c.l.s8.bf16 %v269
    %v862 = vunpack.c.l.s8.bf16 %v270
    %v863 = vunpack.c.l.s8.bf16 %v271
    %v864 = vunpack.c.h.s8.bf16 %v264
    %v865 = vunpack.c.h.s8.bf16 %v265
    %v866 = vunpack.c.h.s8.bf16 %v266
    %v867 = vunpack.c.h.s8.bf16 %v267
    %v868 = vunpack.c.h.s8.bf16 %v268
    %v869 = vunpack.c.h.s8.bf16 %v269
    %v870 = vunpack.c.h.s8.bf16 %v270
    %v871 = vunpack.c.h.s8.bf16 %v271
    %v872 = vunpack.c.l.s8.bf16 %v272
    %v873 = vunpack.c.l.s8.bf16 %v273
    %v874 = vunpack.c.l.s8.bf16 %v274
    %v875 = vunpack.c.l.s8.bf16 %v275
    %v876 = vunpack.c.l.s8.bf16 %v276
    %v877 = vunpack.c.l.s8.bf16 %v277
    %v878 = vunpack.c.l.s8.bf16 %v278
    %v879 = vunpack.c.l.s8.bf16 %v279
    %v880 = vunpack.c.h.s8.bf16 %v272
    %v881 = vunpack.c.h.s8.bf16 %v273
    %v882 = vunpack.c.h.s8.bf16 %v274
    %v883 = vunpack.c.h.s8.bf16 %v275
    %v884 = vunpack.c.h.s8.bf16 %v276
    %v885 = vunpack.c.h.s8.bf16 %v277
    %v886 = vunpack.c.h.s8.bf16 %v278
    %v887 = vunpack.c.h.s8.bf16 %v279
    %v888 = vunpack.c.l.s8.bf16 %v280
    %v889 = vunpack.c.l.s8.bf16 %v281
    %v890 = vunpack.c.l.s8.bf16 %v282
    %v891 = vunpack.c.l.s8.bf16 %v283
    %v892 = vunpack.c.l.s8.bf16 %v284
    %v893 = vunpack.c.l.s8.bf16 %v285
    %v894 = vunpack.c.l.s8.bf16 %v286
    %v895 = vunpack.c.l.s8.bf16 %v287
    %v896 = vunpack.c.h.s8.bf16 %v280
    %v897 = vunpack.c.h.s8.bf16 %v281
    %v898 = vunpack.c.h.s8.bf16 %v282
    %v899 = vunpack.c.h.s8.bf16 %v283
    %v900 = vunpack.c.h.s8.bf16 %v284
    %v901 = vunpack.c.h.s8.bf16 %v285
    %v902 = vunpack.c.h.s8.bf16 %v286
    %v903 = vunpack.c.h.s8.bf16 %v287
    %v904 = vunpack.c.l.s8.bf16 %v288
    %v905 = vunpack.c.l.s8.bf16 %v289
    %v906 = vunpack.c.l.s8.bf16 %v290
    %v907 = vunpack.c.l.s8.bf16 %v291
    %v908 = vunpack.c.l.s8.bf16 %v292
    %v909 = vunpack.c.l.s8.bf16 %v293
    %v910 = vunpack.c.l.s8.bf16 %v294
    %v911 = vunpack.c.l.s8.bf16 %v295
    %v912 = vunpack.c.h.s8.bf16 %v288
    %v913 = vunpack.c.h.s8.bf16 %v289
    %v914 = vunpack.c.h.s8.bf16 %v290
    %v915 = vunpack.c.h.s8.bf16 %v291
    %v916 = vunpack.c.h.s8.bf16 %v292
    %v917 = vunpack.c.h.s8.bf16 %v293
    %v918 = vunpack.c.h.s8.bf16 %v294
    %v919 = vunpack.c.h.s8.bf16 %v295
    %v920 = vunpack.c.l.s8.bf16 %v296
    %v921 = vunpack.c.l.s8.bf16 %v297
    %v922 = vunpack.c.l.s8.bf16 %v298
    %v923 = vunpack.c.l.s8.bf16 %v299
    %v924 = vunpack.c.l.s8.bf16 %v300
    %v925 = vunpack.c.l.s8.bf16 %v301
    %v926 = vunpack.c.l.s8.bf16 %v302
    %v927 = vunpack.c.l.s8.bf16 %v303
    %v928 = vunpack.c.h.s8.bf16 %v296
    %v929 = vunpack.c.h.s8.bf16 %v297
    %v930 = vunpack.c.h.s8.bf16 %v298
    %v931 = vunpack.c.h.s8.bf16 %v299
    %v932 = vunpack.c.h.s8.bf16 %v300
    %v933 = vunpack.c.h.s8.bf16 %v301
    %v934 = vunpack.c.h.s8.bf16 %v302
    %v935 = vunpack.c.h.s8.bf16 %v303
    %v936 = vunpack.c.l.s8.bf16 %v304
    %v937 = vunpack.c.l.s8.bf16 %v305
    %v938 = vunpack.c.l.s8.bf16 %v306
    %v939 = vunpack.c.l.s8.bf16 %v307
    %v940 = vunpack.c.l.s8.bf16 %v308
    %v941 = vunpack.c.l.s8.bf16 %v309
    %v942 = vunpack.c.l.s8.bf16 %v310
    %v943 = vunpack.c.l.s8.bf16 %v311
    %v944 = vunpack.c.h.s8.bf16 %v304
    %v945 = vunpack.c.h.s8.bf16 %v305
    %v946 = vunpack.c.h.s8.bf16 %v306
    %v947 = vunpack.c.h.s8.bf16 %v307
    %v948 = vunpack.c.h.s8.bf16 %v308
    %v949 = vunpack.c.h.s8.bf16 %v309
    %v950 = vunpack.c.h.s8.bf16 %v310
    %v951 = vunpack.c.h.s8.bf16 %v311
    %v952 = vunpack.c.l.s8.bf16 %v312
    %v953 = vunpack.c.l.s8.bf16 %v313
    %v954 = vunpack.c.l.s8.bf16 %v314
    %v955 = vunpack.c.l.s8.bf16 %v315
    %v956 = vunpack.c.l.s8.bf16 %v316
    %v957 = vunpack.c.l.s8.bf16 %v317
    %v958 = vunpack.c.l.s8.bf16 %v318
    %v959 = vunpack.c.l.s8.bf16 %v319
    %v960 = vunpack.c.h.s8.bf16 %v312
    %v961 = vunpack.c.h.s8.bf16 %v313
    %v962 = vunpack.c.h.s8.bf16 %v314
    %v963 = vunpack.c.h.s8.bf16 %v315
    %v964 = vunpack.c.h.s8.bf16 %v316
    %v965 = vunpack.c.h.s8.bf16 %v317
    %v966 = vunpack.c.h.s8.bf16 %v318
    %v967 = vunpack.c.h.s8.bf16 %v319
    %v968 = vunpack.c.l.s8.bf16 %v320
    %v969 = vunpack.c.l.s8.bf16 %v321
    %v970 = vunpack.c.l.s8.bf16 %v322
    %v971 = vunpack.c.l.s8.bf16 %v323
    %v972 = vunpack.c.l.s8.bf16 %v324
    %v973 = vunpack.c.l.s8.bf16 %v325
    %v974 = vunpack.c.l.s8.bf16 %v326
    %v975 = vunpack.c.l.s8.bf16 %v327
    %v976 = vunpack.c.h.s8.bf16 %v320
    %v977 = vunpack.c.h.s8.bf16 %v321
    %v978 = vunpack.c.h.s8.bf16 %v322
    %v979 = vunpack.c.h.s8.bf16 %v323
    %v980 = vunpack.c.h.s8.bf16 %v324
    %v981 = vunpack.c.h.s8.bf16 %v325
    %v982 = vunpack.c.h.s8.bf16 %v326
    %v983 = vunpack.c.h.s8.bf16 %v327
    %v984 = vunpack.c.l.s8.bf16 %v328
    %v985 = vunpack.c.l.s8.bf16 %v329
    %v986 = vunpack.c.l.s8.bf16 %v330
    %v987 = vunpack.c.l.s8.bf16 %v331
    %v988 = vunpack.c.l.s8.bf16 %v332
    %v989 = vunpack.c.l.s8.bf16 %v333
    %v990 = vunpack.c.l.s8.bf16 %v334
    %v991 = vunpack.c.l.s8.bf16 %v335
    %v992 = vunpack.c.h.s8.bf16 %v328
    %v993 = vunpack.c.h.s8.bf16 %v329
    %v994 = vunpack.c.h.s8.bf16 %v330
    %v995 = vunpack.c.h.s8.bf16 %v331
    %v996 = vunpack.c.h.s8.bf16 %v332
    %v997 = vunpack.c.h.s8.bf16 %v333
    %v998 = vunpack.c.h.s8.bf16 %v334
    %v999 = vunpack.c.h.s8.bf16 %v335
    %v1000 = vunpack.c.l.s8.bf16 %v336
    %v1001 = vunpack.c.l.s8.bf16 %v337
    %v1002 = vunpack.c.l.s8.bf16 %v338
    %v1003 = vunpack.c.l.s8.bf16 %v339
    %v1004 = vunpack.c.l.s8.bf16 %v340
    %v1005 = vunpack.c.l.s8.bf16 %v341
    %v1006 = vunpack.c.l.s8.bf16 %v342
    %v1007 = vunpack.c.l.s8.bf16 %v343
    %v1008 = vunpack.c.h.s8.bf16 %v336
    %v1009 = vunpack.c.h.s8.bf16 %v337
    %v1010 = vunpack.c.h.s8.bf16 %v338
    %v1011 = vunpack.c.h.s8.bf16 %v339
    %v1012 = vunpack.c.h.s8.bf16 %v340
    %v1013 = vunpack.c.h.s8.bf16 %v341
    %v1014 = vunpack.c.h.s8.bf16 %v342
    %v1015 = vunpack.c.h.s8.bf16 %v343
    %v1016 = vunpack.c.l.s8.bf16 %v344
    %v1017 = vunpack.c.l.s8.bf16 %v345
    %v1018 = vunpack.c.l.s8.bf16 %v346
    %v1019 = vunpack.c.l.s8.bf16 %v347
    %v1020 = vunpack.c.l.s8.bf16 %v348
    %v1021 = vunpack.c.l.s8.bf16 %v349
    %v1022 = vunpack.c.l.s8.bf16 %v350
    %v1023 = vunpack.c.l.s8.bf16 %v351
    %v1024 = vunpack.c.h.s8.bf16 %v344
    %v1025 = vunpack.c.h.s8.bf16 %v345
    %v1026 = vunpack.c.h.s8.bf16 %v346
    %v1027 = vunpack.c.h.s8.bf16 %v347
    %v1028 = vunpack.c.h.s8.bf16 %v348
    %v1029 = vunpack.c.h.s8.bf16 %v349
    %v1030 = vunpack.c.h.s8.bf16 %v350
    %v1031 = vunpack.c.h.s8.bf16 %v351
    %v1032 = vunpack.c.l.s8.bf16 %v352
    %v1033 = vunpack.c.l.s8.bf16 %v353
    %v1034 = vunpack.c.l.s8.bf16 %v354
    %v1035 = vunpack.c.l.s8.bf16 %v355
    %v1036 = vunpack.c.l.s8.bf16 %v356
    %v1037 = vunpack.c.l.s8.bf16 %v357
    %v1038 = vunpack.c.l.s8.bf16 %v358
    %v1039 = vunpack.c.l.s8.bf16 %v359
    %v1040 = vunpack.c.h.s8.bf16 %v352
    %v1041 = vunpack.c.h.s8.bf16 %v353
    %v1042 = vunpack.c.h.s8.bf16 %v354
    %v1043 = vunpack.c.h.s8.bf16 %v355
    %v1044 = vunpack.c.h.s8.bf16 %v356
    %v1045 = vunpack.c.h.s8.bf16 %v357
    %v1046 = vunpack.c.h.s8.bf16 %v358
    %v1047 = vunpack.c.h.s8.bf16 %v359
    %v1048 = vunpack.c.l.s8.bf16 %v360
    %v1049 = vunpack.c.l.s8.bf16 %v361
    %v1050 = vunpack.c.l.s8.bf16 %v362
    %v1051 = vunpack.c.l.s8.bf16 %v363
    %v1052 = vunpack.c.l.s8.bf16 %v364
    %v1053 = vunpack.c.l.s8.bf16 %v365
    %v1054 = vunpack.c.l.s8.bf16 %v366
    %v1055 = vunpack.c.l.s8.bf16 %v367
    %v1056 = vunpack.c.h.s8.bf16 %v360
    %v1057 = vunpack.c.h.s8.bf16 %v361
    %v1058 = vunpack.c.h.s8.bf16 %v362
    %v1059 = vunpack.c.h.s8.bf16 %v363
    %v1060 = vunpack.c.h.s8.bf16 %v364
    %v1061 = vunpack.c.h.s8.bf16 %v365
    %v1062 = vunpack.c.h.s8.bf16 %v366
    %v1063 = vunpack.c.h.s8.bf16 %v367
    %v1064 = vunpack.c.l.s8.bf16 %v368
    %v1065 = vunpack.c.l.s8.bf16 %v369
    %v1066 = vunpack.c.l.s8.bf16 %v370
    %v1067 = vunpack.c.l.s8.bf16 %v371
    %v1068 = vunpack.c.l.s8.bf16 %v372
    %v1069 = vunpack.c.l.s8.bf16 %v373
    %v1070 = vunpack.c.l.s8.bf16 %v374
    %v1071 = vunpack.c.l.s8.bf16 %v375
    %v1072 = vunpack.c.h.s8.bf16 %v368
    %v1073 = vunpack.c.h.s8.bf16 %v369
    %v1074 = vunpack.c.h.s8.bf16 %v370
    %v1075 = vunpack.c.h.s8.bf16 %v371
    %v1076 = vunpack.c.h.s8.bf16 %v372
    %v1077 = vunpack.c.h.s8.bf16 %v373
    %v1078 = vunpack.c.h.s8.bf16 %v374
    %v1079 = vunpack.c.h.s8.bf16 %v375
    %v1080 = vunpack.c.l.s8.bf16 %v376
    %v1081 = vunpack.c.l.s8.bf16 %v377
    %v1082 = vunpack.c.l.s8.bf16 %v378
    %v1083 = vunpack.c.l.s8.bf16 %v379
    %v1084 = vunpack.c.l.s8.bf16 %v380
    %v1085 = vunpack.c.l.s8.bf16 %v381
    %v1086 = vunpack.c.l.s8.bf16 %v382
    %v1087 = vunpack.c.l.s8.bf16 %v383
    %v1088 = vunpack.c.h.s8.bf16 %v376
    %v1089 = vunpack.c.h.s8.bf16 %v377
    %v1090 = vunpack.c.h.s8.bf16 %v378
    %v1091 = vunpack.c.h.s8.bf16 %v379
    %v1092 = vunpack.c.h.s8.bf16 %v380
    %v1093 = vunpack.c.h.s8.bf16 %v381
    %v1094 = vunpack.c.h.s8.bf16 %v382
    %v1095 = vunpack.c.h.s8.bf16 %v383
    %v1096 = vunpack.c.l.s8.bf16 %v384
    %v1097 = vunpack.c.l.s8.bf16 %v385
    %v1098 = vunpack.c.l.s8.bf16 %v386
    %v1099 = vunpack.c.l.s8.bf16 %v387
    %v1100 = vunpack.c.l.s8.bf16 %v388
    %v1101 = vunpack.c.l.s8.bf16 %v389
    %v1102 = vunpack.c.l.s8.bf16 %v390
    %v1103 = vunpack.c.l.s8.bf16 %v391
    %v1104 = vunpack.c.h.s8.bf16 %v384
    %v1105 = vunpack.c.h.s8.bf16 %v385
    %v1106 = vunpack.c.h.s8.bf16 %v386
    %v1107 = vunpack.c.h.s8.bf16 %v387
    %v1108 = vunpack.c.h.s8.bf16 %v388
    %v1109 = vunpack.c.h.s8.bf16 %v389
    %v1110 = vunpack.c.h.s8.bf16 %v390
    %v1111 = vunpack.c.h.s8.bf16 %v391
    %v1112 = vunpack.c.l.s8.bf16 %v392
    %v1113 = vunpack.c.l.s8.bf16 %v393
    %v1114 = vunpack.c.l.s8.bf16 %v394
    %v1115 = vunpack.c.l.s8.bf16 %v395
    %v1116 = vunpack.c.l.s8.bf16 %v396
    %v1117 = vunpack.c.l.s8.bf16 %v397
    %v1118 = vunpack.c.l.s8.bf16 %v398
    %v1119 = vunpack.c.l.s8.bf16 %v399
    %v1120 = vunpack.c.h.s8.bf16 %v392
    %v1121 = vunpack.c.h.s8.bf16 %v393
    %v1122 = vunpack.c.h.s8.bf16 %v394
    %v1123 = vunpack.c.h.s8.bf16 %v395
    %v1124 = vunpack.c.h.s8.bf16 %v396
    %v1125 = vunpack.c.h.s8.bf16 %v397
    %v1126 = vunpack.c.h.s8.bf16 %v398
    %v1127 = vunpack.c.h.s8.bf16 %v399
    %v1128 = vunpack.c.l.s8.bf16 %v400
    %v1129 = vunpack.c.l.s8.bf16 %v401
    %v1130 = vunpack.c.l.s8.bf16 %v402
    %v1131 = vunpack.c.l.s8.bf16 %v403
    %v1132 = vunpack.c.l.s8.bf16 %v404
    %v1133 = vunpack.c.l.s8.bf16 %v405
    %v1134 = vunpack.c.l.s8.bf16 %v406
    %v1135 = vunpack.c.l.s8.bf16 %v407
    %v1136 = vunpack.c.h.s8.bf16 %v400
    %v1137 = vunpack.c.h.s8.bf16 %v401
    %v1138 = vunpack.c.h.s8.bf16 %v402
    %v1139 = vunpack.c.h.s8.bf16 %v403
    %v1140 = vunpack.c.h.s8.bf16 %v404
    %v1141 = vunpack.c.h.s8.bf16 %v405
    %v1142 = vunpack.c.h.s8.bf16 %v406
    %v1143 = vunpack.c.h.s8.bf16 %v407
    %v1144 = vunpack.c.l.s8.bf16 %v408
    %v1145 = vunpack.c.l.s8.bf16 %v409
    %v1146 = vunpack.c.l.s8.bf16 %v410
    %v1147 = vunpack.c.l.s8.bf16 %v411
    %v1148 = vunpack.c.l.s8.bf16 %v412
    %v1149 = vunpack.c.l.s8.bf16 %v413
    %v1150 = vunpack.c.l.s8.bf16 %v414
    %v1151 = vunpack.c.l.s8.bf16 %v415
    %v1152 = vunpack.c.h.s8.bf16 %v408
    %v1153 = vunpack.c.h.s8.bf16 %v409
    %v1154 = vunpack.c.h.s8.bf16 %v410
    %v1155 = vunpack.c.h.s8.bf16 %v411
    %v1156 = vunpack.c.h.s8.bf16 %v412
    %v1157 = vunpack.c.h.s8.bf16 %v413
    %v1158 = vunpack.c.h.s8.bf16 %v414
    %v1159 = vunpack.c.h.s8.bf16 %v415
    %v1160 = vunpack.c.l.s8.bf16 %v416
    %v1161 = vunpack.c.l.s8.bf16 %v417
    %v1162 = vunpack.c.l.s8.bf16 %v418
    %v1163 = vunpack.c.l.s8.bf16 %v419
    %v1164 = vunpack.c.l.s8.bf16 %v420
    %v1165 = vunpack.c.l.s8.bf16 %v421
    %v1166 = vunpack.c.l.s8.bf16 %v422
    %v1167 = vunpack.c.l.s8.bf16 %v423
    %v1168 = vunpack.c.h.s8.bf16 %v416
    %v1169 = vunpack.c.h.s8.bf16 %v417
    %v1170 = vunpack.c.h.s8.bf16 %v418
    %v1171 = vunpack.c.h.s8.bf16 %v419
    %v1172 = vunpack.c.h.s8.bf16 %v420
    %v1173 = vunpack.c.h.s8.bf16 %v421
    %v1174 = vunpack.c.h.s8.bf16 %v422
    %v1175 = vunpack.c.h.s8.bf16 %v423
    %v1176 = vunpack.c.l.s8.bf16 %v424
    %v1177 = vunpack.c.l.s8.bf16 %v425
    %v1178 = vunpack.c.l.s8.bf16 %v426
    %v1179 = vunpack.c.l.s8.bf16 %v427
    %v1180 = vunpack.c.l.s8.bf16 %v428
    %v1181 = vunpack.c.l.s8.bf16 %v429
    %v1182 = vunpack.c.l.s8.bf16 %v430
    %v1183 = vunpack.c.l.s8.bf16 %v431
    %v1184 = vunpack.c.h.s8.bf16 %v424
    %v1185 = vunpack.c.h.s8.bf16 %v425
    %v1186 = vunpack.c.h.s8.bf16 %v426
    %v1187 = vunpack.c.h.s8.bf16 %v427
    %v1188 = vunpack.c.h.s8.bf16 %v428
    %v1189 = vunpack.c.h.s8.bf16 %v429
    %v1190 = vunpack.c.h.s8.bf16 %v430
    %v1191 = vunpack.c.h.s8.bf16 %v431
    %v1192 = vunpack.c.l.s8.bf16 %v432
    %v1193 = vunpack.c.l.s8.bf16 %v433
    %v1194 = vunpack.c.l.s8.bf16 %v434
    %v1195 = vunpack.c.l.s8.bf16 %v435
    %v1196 = vunpack.c.l.s8.bf16 %v436
    %v1197 = vunpack.c.l.s8.bf16 %v437
    %v1198 = vunpack.c.l.s8.bf16 %v438
    %v1199 = vunpack.c.l.s8.bf16 %v439
    %v1200 = vunpack.c.h.s8.bf16 %v432
    %v1201 = vunpack.c.h.s8.bf16 %v433
    %v1202 = vunpack.c.h.s8.bf16 %v434
    %v1203 = vunpack.c.h.s8.bf16 %v435
    %v1204 = vunpack.c.h.s8.bf16 %v436
    %v1205 = vunpack.c.h.s8.bf16 %v437
    %v1206 = vunpack.c.h.s8.bf16 %v438
    %v1207 = vunpack.c.h.s8.bf16 %v439
    %v1208 = vunpack.c.l.s8.bf16 %v440
    %v1209 = vunpack.c.l.s8.bf16 %v441
    %v1210 = vunpack.c.l.s8.bf16 %v442
    %v1211 = vunpack.c.l.s8.bf16 %v443
    %v1212 = vunpack.c.l.s8.bf16 %v444
    %v1213 = vunpack.c.l.s8.bf16 %v445
    %v1214 = vunpack.c.l.s8.bf16 %v446
    %v1215 = vunpack.c.l.s8.bf16 %v447
    %v1216 = vunpack.c.h.s8.bf16 %v440
    %v1217 = vunpack.c.h.s8.bf16 %v441
    %v1218 = vunpack.c.h.s8.bf16 %v442
    %v1219 = vunpack.c.h.s8.bf16 %v443
    %v1220 = vunpack.c.h.s8.bf16 %v444
    %v1221 = vunpack.c.h.s8.bf16 %v445
    %v1222 = vunpack.c.h.s8.bf16 %v446
    %v1223 = vunpack.c.h.s8.bf16 %v447
    %v1224 = vunpack.c.l.s8.bf16 %v448
    %v1225 = vunpack.c.l.s8.bf16 %v449
    %v1226 = vunpack.c.l.s8.bf16 %v450
    %v1227 = vunpack.c.l.s8.bf16 %v451
    %v1228 = vunpack.c.l.s8.bf16 %v452
    %v1229 = vunpack.c.l.s8.bf16 %v453
    %v1230 = vunpack.c.l.s8.bf16 %v454
    %v1231 = vunpack.c.l.s8.bf16 %v455
    %v1232 = vunpack.c.h.s8.bf16 %v448
    %v1233 = vunpack.c.h.s8.bf16 %v449
    %v1234 = vunpack.c.h.s8.bf16 %v450
    %v1235 = vunpack.c.h.s8.bf16 %v451
    %v1236 = vunpack.c.h.s8.bf16 %v452
    %v1237 = vunpack.c.h.s8.bf16 %v453
    %v1238 = vunpack.c.h.s8.bf16 %v454
    %v1239 = vunpack.c.h.s8.bf16 %v455
    %v1240 = vunpack.c.l.s8.bf16 %v456
    %v1241 = vunpack.c.l.s8.bf16 %v457
    %v1242 = vunpack.c.l.s8.bf16 %v458
    %v1243 = vunpack.c.l.s8.bf16 %v459
    %v1244 = vunpack.c.l.s8.bf16 %v460
    %v1245 = vunpack.c.l.s8.bf16 %v461
    %v1246 = vunpack.c.l.s8.bf16 %v462
    %v1247 = vunpack.c.l.s8.bf16 %v463
    %v1248 = vunpack.c.h.s8.bf16 %v456
    %v1249 = vunpack.c.h.s8.bf16 %v457
    %v1250 = vunpack.c.h.s8.bf16 %v458
    %v1251 = vunpack.c.h.s8.bf16 %v459
    %v1252 = vunpack.c.h.s8.bf16 %v460
    %v1253 = vunpack.c.h.s8.bf16 %v461
    %v1254 = vunpack.c.h.s8.bf16 %v462
    %v1255 = vunpack.c.h.s8.bf16 %v463
    %v1256 = vunpack.c.l.s8.bf16 %v464
    %v1257 = vunpack.c.l.s8.bf16 %v465
    %v1258 = vunpack.c.l.s8.bf16 %v466
    %v1259 = vunpack.c.l.s8.bf16 %v467
    %v1260 = vunpack.c.l.s8.bf16 %v468
    %v1261 = vunpack.c.l.s8.bf16 %v469
    %v1262 = vunpack.c.l.s8.bf16 %v470
    %v1263 = vunpack.c.l.s8.bf16 %v471
    %v1264 = vunpack.c.h.s8.bf16 %v464
    %v1265 = vunpack.c.h.s8.bf16 %v465
    %v1266 = vunpack.c.h.s8.bf16 %v466
    %v1267 = vunpack.c.h.s8.bf16 %v467
    %v1268 = vunpack.c.h.s8.bf16 %v468
    %v1269 = vunpack.c.h.s8.bf16 %v469
    %v1270 = vunpack.c.h.s8.bf16 %v470
    %v1271 = vunpack.c.h.s8.bf16 %v471
    %v1272 = vunpack.c.l.s8.bf16 %v472
    %v1273 = vunpack.c.l.s8.bf16 %v473
    %v1274 = vunpack.c.l.s8.bf16 %v474
    %v1275 = vunpack.c.l.s8.bf16 %v475
    %v1276 = vunpack.c.l.s8.bf16 %v476
    %v1277 = vunpack.c.l.s8.bf16 %v477
    %v1278 = vunpack.c.l.s8.bf16 %v478
    %v1279 = vunpack.c.l.s8.bf16 %v479
    %v1280 = vunpack.c.h.s8.bf16 %v472
    %v1281 = vunpack.c.h.s8.bf16 %v473
    %v1282 = vunpack.c.h.s8.bf16 %v474
    %v1283 = vunpack.c.h.s8.bf16 %v475
    %v1284 = vunpack.c.h.s8.bf16 %v476
    %v1285 = vunpack.c.h.s8.bf16 %v477
    %v1286 = vunpack.c.h.s8.bf16 %v478
    %v1287 = vunpack.c.h.s8.bf16 %v479
    %v1288 = vunpack.c.l.s8.bf16 %v480
    %v1289 = vunpack.c.l.s8.bf16 %v481
    %v1290 = vunpack.c.l.s8.bf16 %v482
    %v1291 = vunpack.c.l.s8.bf16 %v483
    %v1292 = vunpack.c.l.s8.bf16 %v484
    %v1293 = vunpack.c.l.s8.bf16 %v485
    %v1294 = vunpack.c.l.s8.bf16 %v486
    %v1295 = vunpack.c.l.s8.bf16 %v487
    %v1296 = vunpack.c.h.s8.bf16 %v480
    %v1297 = vunpack.c.h.s8.bf16 %v481
    %v1298 = vunpack.c.h.s8.bf16 %v482
    %v1299 = vunpack.c.h.s8.bf16 %v483
    %v1300 = vunpack.c.h.s8.bf16 %v484
    %v1301 = vunpack.c.h.s8.bf16 %v485
    %v1302 = vunpack.c.h.s8.bf16 %v486
    %v1303 = vunpack.c.h.s8.bf16 %v487
    %v1304 = vunpack.c.l.s8.bf16 %v488
    %v1305 = vunpack.c.l.s8.bf16 %v489
    %v1306 = vunpack.c.l.s8.bf16 %v490
    %v1307 = vunpack.c.l.s8.bf16 %v491
    %v1308 = vunpack.c.l.s8.bf16 %v492
    %v1309 = vunpack.c.l.s8.bf16 %v493
    %v1310 = vunpack.c.l.s8.bf16 %v494
    %v1311 = vunpack.c.l.s8.bf16 %v495
    %v1312 = vunpack.c.h.s8.bf16 %v488
    %v1313 = vunpack.c.h.s8.bf16 %v489
    %v1314 = vunpack.c.h.s8.bf16 %v490
    %v1315 = vunpack.c.h.s8.bf16 %v491
    %v1316 = vunpack.c.h.s8.bf16 %v492
    %v1317 = vunpack.c.h.s8.bf16 %v493
    %v1318 = vunpack.c.h.s8.bf16 %v494
    %v1319 = vunpack.c.h.s8.bf16 %v495
    %v1320 = vunpack.c.l.s8.bf16 %v496
    %v1321 = vunpack.c.l.s8.bf16 %v497
    %v1322 = vunpack.c.l.s8.bf16 %v498
    %v1323 = vunpack.c.l.s8.bf16 %v499
    %v1324 = vunpack.c.l.s8.bf16 %v500
    %v1325 = vunpack.c.l.s8.bf16 %v501
    %v1326 = vunpack.c.l.s8.bf16 %v502
    %v1327 = vunpack.c.l.s8.bf16 %v503
    %v1328 = vunpack.c.h.s8.bf16 %v496
    %v1329 = vunpack.c.h.s8.bf16 %v497
    %v1330 = vunpack.c.h.s8.bf16 %v498
    %v1331 = vunpack.c.h.s8.bf16 %v499
    %v1332 = vunpack.c.h.s8.bf16 %v500
    %v1333 = vunpack.c.h.s8.bf16 %v501
    %v1334 = vunpack.c.h.s8.bf16 %v502
    %v1335 = vunpack.c.h.s8.bf16 %v503
    %v1336 = vunpack.c.l.s8.bf16 %v504
    %v1337 = vunpack.c.l.s8.bf16 %v505
    %v1338 = vunpack.c.l.s8.bf16 %v506
    %v1339 = vunpack.c.l.s8.bf16 %v507
    %v1340 = vunpack.c.l.s8.bf16 %v508
    %v1341 = vunpack.c.l.s8.bf16 %v509
    %v1342 = vunpack.c.l.s8.bf16 %v510
    %v1343 = vunpack.c.l.s8.bf16 %v511
    %v1344 = vunpack.c.h.s8.bf16 %v504
    %v1345 = vunpack.c.h.s8.bf16 %v505
    %v1346 = vunpack.c.h.s8.bf16 %v506
    %v1347 = vunpack.c.h.s8.bf16 %v507
    %v1348 = vunpack.c.h.s8.bf16 %v508
    %v1349 = vunpack.c.h.s8.bf16 %v509
    %v1350 = vunpack.c.h.s8.bf16 %v510
    %v1351 = vunpack.c.h.s8.bf16 %v511
    %v1352 = vunpack.c.l.s8.bf16 %v512
    %v1353 = vunpack.c.l.s8.bf16 %v513
    %v1354 = vunpack.c.l.s8.bf16 %v514
    %v1355 = vunpack.c.l.s8.bf16 %v515
    %v1356 = vunpack.c.l.s8.bf16 %v516
    %v1357 = vunpack.c.l.s8.bf16 %v517
    %v1358 = vunpack.c.l.s8.bf16 %v518
    %v1359 = vunpack.c.l.s8.bf16 %v519
    %v1360 = vunpack.c.h.s8.bf16 %v512
    %v1361 = vunpack.c.h.s8.bf16 %v513
    %v1362 = vunpack.c.h.s8.bf16 %v514
    %v1363 = vunpack.c.h.s8.bf16 %v515
    %v1364 = vunpack.c.h.s8.bf16 %v516
    %v1365 = vunpack.c.h.s8.bf16 %v517
    %v1366 = vunpack.c.h.s8.bf16 %v518
    %v1367 = vunpack.c.h.s8.bf16 %v519
    %v1368 = vunpack.c.l.s8.bf16 %v520
    %v1369 = vunpack.c.l.s8.bf16 %v521
    %v1370 = vunpack.c.l.s8.bf16 %v522
    %v1371 = vunpack.c.l.s8.bf16 %v523
    %v1372 = vunpack.c.l.s8.bf16 %v524
    %v1373 = vunpack.c.l.s8.bf16 %v525
    %v1374 = vunpack.c.l.s8.bf16 %v526
    %v1375 = vunpack.c.l.s8.bf16 %v527
    %v1376 = vunpack.c.h.s8.bf16 %v520
    %v1377 = vunpack.c.h.s8.bf16 %v521
    %v1378 = vunpack.c.h.s8.bf16 %v522
    %v1379 = vunpack.c.h.s8.bf16 %v523
    %v1380 = vunpack.c.h.s8.bf16 %v524
    %v1381 = vunpack.c.h.s8.bf16 %v525
    %v1382 = vunpack.c.h.s8.bf16 %v526
    %v1383 = vunpack.c.h.s8.bf16 %v527
    %v1384 = vunpack.c.l.s8.bf16 %v528
    %v1385 = vunpack.c.l.s8.bf16 %v529
    %v1386 = vunpack.c.l.s8.bf16 %v530
    %v1387 = vunpack.c.l.s8.bf16 %v531
    %v1388 = vunpack.c.l.s8.bf16 %v532
    %v1389 = vunpack.c.l.s8.bf16 %v533
    %v1390 = vunpack.c.l.s8.bf16 %v534
    %v1391 = vunpack.c.l.s8.bf16 %v535
    %v1392 = vunpack.c.h.s8.bf16 %v528
    %v1393 = vunpack.c.h.s8.bf16 %v529
    %v1394 = vunpack.c.h.s8.bf16 %v530
    %v1395 = vunpack.c.h.s8.bf16 %v531
    %v1396 = vunpack.c.h.s8.bf16 %v532
    %v1397 = vunpack.c.h.s8.bf16 %v533
    %v1398 = vunpack.c.h.s8.bf16 %v534
    %v1399 = vunpack.c.h.s8.bf16 %v535
    %v1400 = vunpack.c.l.s8.bf16 %v536
    %v1401 = vunpack.c.l.s8.bf16 %v537
    %v1402 = vunpack.c.l.s8.bf16 %v538
    %v1403 = vunpack.c.l.s8.bf16 %v539
    %v1404 = vunpack.c.l.s8.bf16 %v540
    %v1405 = vunpack.c.l.s8.bf16 %v541
    %v1406 = vunpack.c.l.s8.bf16 %v542
    %v1407 = vunpack.c.l.s8.bf16 %v543
    %v1408 = vunpack.c.h.s8.bf16 %v536
    %v1409 = vunpack.c.h.s8.bf16 %v537
    %v1410 = vunpack.c.h.s8.bf16 %v538
    %v1411 = vunpack.c.h.s8.bf16 %v539
    %v1412 = vunpack.c.h.s8.bf16 %v540
    %v1413 = vunpack.c.h.s8.bf16 %v541
    %v1414 = vunpack.c.h.s8.bf16 %v542
    %v1415 = vunpack.c.h.s8.bf16 %v543
    %v1416 = vunpack.c.l.s8.bf16 %v544
    %v1417 = vunpack.c.l.s8.bf16 %v545
    %v1418 = vunpack.c.l.s8.bf16 %v546
    %v1419 = vunpack.c.l.s8.bf16 %v547
    %v1420 = vunpack.c.l.s8.bf16 %v548
    %v1421 = vunpack.c.l.s8.bf16 %v549
    %v1422 = vunpack.c.l.s8.bf16 %v550
    %v1423 = vunpack.c.l.s8.bf16 %v551
    %v1424 = vunpack.c.h.s8.bf16 %v544
    %v1425 = vunpack.c.h.s8.bf16 %v545
    %v1426 = vunpack.c.h.s8.bf16 %v546
    %v1427 = vunpack.c.h.s8.bf16 %v547
    %v1428 = vunpack.c.h.s8.bf16 %v548
    %v1429 = vunpack.c.h.s8.bf16 %v549
    %v1430 = vunpack.c.h.s8.bf16 %v550
    %v1431 = vunpack.c.h.s8.bf16 %v551
    %v1432 = vunpack.c.l.s8.bf16 %v552
    %v1433 = vunpack.c.l.s8.bf16 %v553
    %v1434 = vunpack.c.l.s8.bf16 %v554
    %v1435 = vunpack.c.l.s8.bf16 %v555
    %v1436 = vunpack.c.l.s8.bf16 %v556
    %v1437 = vunpack.c.l.s8.bf16 %v557
    %v1438 = vunpack.c.l.s8.bf16 %v558
    %v1439 = vunpack.c.l.s8.bf16 %v559
    %v1440 = vunpack.c.h.s8.bf16 %v552
    %v1441 = vunpack.c.h.s8.bf16 %v553
    %v1442 = vunpack.c.h.s8.bf16 %v554
    %v1443 = vunpack.c.h.s8.bf16 %v555
    %v1444 = vunpack.c.h.s8.bf16 %v556
    %v1445 = vunpack.c.h.s8.bf16 %v557
    %v1446 = vunpack.c.h.s8.bf16 %v558
    %v1447 = vunpack.c.h.s8.bf16 %v559
    %v1448 = vunpack.c.l.s8.bf16 %v560
    %v1449 = vunpack.c.l.s8.bf16 %v561
    %v1450 = vunpack.c.l.s8.bf16 %v562
    %v1451 = vunpack.c.l.s8.bf16 %v563
    %v1452 = vunpack.c.l.s8.bf16 %v564
    %v1453 = vunpack.c.l.s8.bf16 %v565
    %v1454 = vunpack.c.l.s8.bf16 %v566
    %v1455 = vunpack.c.l.s8.bf16 %v567
    %v1456 = vunpack.c.h.s8.bf16 %v560
    %v1457 = vunpack.c.h.s8.bf16 %v561
    %v1458 = vunpack.c.h.s8.bf16 %v562
    %v1459 = vunpack.c.h.s8.bf16 %v563
    %v1460 = vunpack.c.h.s8.bf16 %v564
    %v1461 = vunpack.c.h.s8.bf16 %v565
    %v1462 = vunpack.c.h.s8.bf16 %v566
    %v1463 = vunpack.c.h.s8.bf16 %v567
    %v1464 = vunpack.c.l.s8.bf16 %v568
    %v1465 = vunpack.c.l.s8.bf16 %v569
    %v1466 = vunpack.c.l.s8.bf16 %v570
    %v1467 = vunpack.c.l.s8.bf16 %v571
    %v1468 = vunpack.c.l.s8.bf16 %v572
    %v1469 = vunpack.c.l.s8.bf16 %v573
    %v1470 = vunpack.c.l.s8.bf16 %v574
    %v1471 = vunpack.c.l.s8.bf16 %v575
    %v1472 = vunpack.c.h.s8.bf16 %v568
    %v1473 = vunpack.c.h.s8.bf16 %v569
    %v1474 = vunpack.c.h.s8.bf16 %v570
    %v1475 = vunpack.c.h.s8.bf16 %v571
    %v1476 = vunpack.c.h.s8.bf16 %v572
    %v1477 = vunpack.c.h.s8.bf16 %v573
    %v1478 = vunpack.c.h.s8.bf16 %v574
    %v1479 = vunpack.c.h.s8.bf16 %v575
    %v1480 = vunpack.c.l.s8.bf16 %v576
    %v1481 = vunpack.c.l.s8.bf16 %v577
    %v1482 = vunpack.c.l.s8.bf16 %v578
    %v1483 = vunpack.c.l.s8.bf16 %v579
    %v1484 = vunpack.c.l.s8.bf16 %v580
    %v1485 = vunpack.c.l.s8.bf16 %v581
    %v1486 = vunpack.c.l.s8.bf16 %v582
    %v1487 = vunpack.c.l.s8.bf16 %v583
    %v1488 = vunpack.c.h.s8.bf16 %v576
    %v1489 = vunpack.c.h.s8.bf16 %v577
    %v1490 = vunpack.c.h.s8.bf16 %v578
    %v1491 = vunpack.c.h.s8.bf16 %v579
    %v1492 = vunpack.c.h.s8.bf16 %v580
    %v1493 = vunpack.c.h.s8.bf16 %v581
    %v1494 = vunpack.c.h.s8.bf16 %v582
    %v1495 = vunpack.c.h.s8.bf16 %v583
    %v1496 = vunpack.c.l.s8.bf16 %v584
    %v1497 = vunpack.c.l.s8.bf16 %v585
    %v1498 = vunpack.c.l.s8.bf16 %v586
    %v1499 = vunpack.c.l.s8.bf16 %v587
    %v1500 = vunpack.c.l.s8.bf16 %v588
    %v1501 = vunpack.c.l.s8.bf16 %v589
    %v1502 = vunpack.c.l.s8.bf16 %v590
    %v1503 = vunpack.c.l.s8.bf16 %v591
    %v1504 = vunpack.c.h.s8.bf16 %v584
    %v1505 = vunpack.c.h.s8.bf16 %v585
    %v1506 = vunpack.c.h.s8.bf16 %v586
    %v1507 = vunpack.c.h.s8.bf16 %v587
    %v1508 = vunpack.c.h.s8.bf16 %v588
    %v1509 = vunpack.c.h.s8.bf16 %v589
    %v1510 = vunpack.c.h.s8.bf16 %v590
    %v1511 = vunpack.c.h.s8.bf16 %v591
    %v1512 = vunpack.c.l.s8.bf16 %v592
    %v1513 = vunpack.c.l.s8.bf16 %v593
    %v1514 = vunpack.c.l.s8.bf16 %v594
    %v1515 = vunpack.c.l.s8.bf16 %v595
    %v1516 = vunpack.c.l.s8.bf16 %v596
    %v1517 = vunpack.c.l.s8.bf16 %v597
    %v1518 = vunpack.c.l.s8.bf16 %v598
    %v1519 = vunpack.c.l.s8.bf16 %v599
    %v1520 = vunpack.c.h.s8.bf16 %v592
    %v1521 = vunpack.c.h.s8.bf16 %v593
    %v1522 = vunpack.c.h.s8.bf16 %v594
    %v1523 = vunpack.c.h.s8.bf16 %v595
    %v1524 = vunpack.c.h.s8.bf16 %v596
    %v1525 = vunpack.c.h.s8.bf16 %v597
    %v1526 = vunpack.c.h.s8.bf16 %v598
    %v1527 = vunpack.c.h.s8.bf16 %v599
    %v1528 = vunpack.c.l.s8.bf16 %v600
    %v1529 = vunpack.c.l.s8.bf16 %v601
    %v1530 = vunpack.c.l.s8.bf16 %v602
    %v1531 = vunpack.c.l.s8.bf16 %v603
    %v1532 = vunpack.c.l.s8.bf16 %v604
    %v1533 = vunpack.c.l.s8.bf16 %v605
    %v1534 = vunpack.c.l.s8.bf16 %v606
    %v1535 = vunpack.c.l.s8.bf16 %v607
    %v1536 = vunpack.c.h.s8.bf16 %v600
    %v1537 = vunpack.c.h.s8.bf16 %v601
    %v1538 = vunpack.c.h.s8.bf16 %v602
    %v1539 = vunpack.c.h.s8.bf16 %v603
    %v1540 = vunpack.c.h.s8.bf16 %v604
    %v1541 = vunpack.c.h.s8.bf16 %v605
    %v1542 = vunpack.c.h.s8.bf16 %v606
    %v1543 = vunpack.c.h.s8.bf16 %v607
    %v1544 = vunpack.c.l.s8.bf16 %v608
    %v1545 = vunpack.c.l.s8.bf16 %v609
    %v1546 = vunpack.c.l.s8.bf16 %v610
    %v1547 = vunpack.c.l.s8.bf16 %v611
    %v1548 = vunpack.c.l.s8.bf16 %v612
    %v1549 = vunpack.c.l.s8.bf16 %v613
    %v1550 = vunpack.c.l.s8.bf16 %v614
    %v1551 = vunpack.c.l.s8.bf16 %v615
    %v1552 = vunpack.c.h.s8.bf16 %v608
    %v1553 = vunpack.c.h.s8.bf16 %v609
    %v1554 = vunpack.c.h.s8.bf16 %v610
    %v1555 = vunpack.c.h.s8.bf16 %v611
    %v1556 = vunpack.c.h.s8.bf16 %v612
    %v1557 = vunpack.c.h.s8.bf16 %v613
    %v1558 = vunpack.c.h.s8.bf16 %v614
    %v1559 = vunpack.c.h.s8.bf16 %v615
    %v1560 = vunpack.c.l.s8.bf16 %v616
    %v1561 = vunpack.c.l.s8.bf16 %v617
    %v1562 = vunpack.c.l.s8.bf16 %v618
    %v1563 = vunpack.c.l.s8.bf16 %v619
    %v1564 = vunpack.c.l.s8.bf16 %v620
    %v1565 = vunpack.c.l.s8.bf16 %v621
    %v1566 = vunpack.c.l.s8.bf16 %v622
    %v1567 = vunpack.c.l.s8.bf16 %v623
    %v1568 = vunpack.c.h.s8.bf16 %v616
    %v1569 = vunpack.c.h.s8.bf16 %v617
    %v1570 = vunpack.c.h.s8.bf16 %v618
    %v1571 = vunpack.c.h.s8.bf16 %v619
    %v1572 = vunpack.c.h.s8.bf16 %v620
    %v1573 = vunpack.c.h.s8.bf16 %v621
    %v1574 = vunpack.c.h.s8.bf16 %v622
    %v1575 = vunpack.c.h.s8.bf16 %v623
    %v1576 = vunpack.c.l.s8.bf16 %v624
    %v1577 = vunpack.c.l.s8.bf16 %v625
    %v1578 = vunpack.c.l.s8.bf16 %v626
    %v1579 = vunpack.c.l.s8.bf16 %v627
    %v1580 = vunpack.c.l.s8.bf16 %v628
    %v1581 = vunpack.c.l.s8.bf16 %v629
    %v1582 = vunpack.c.l.s8.bf16 %v630
    %v1583 = vunpack.c.l.s8.bf16 %v631
    %v1584 = vunpack.c.h.s8.bf16 %v624
    %v1585 = vunpack.c.h.s8.bf16 %v625
    %v1586 = vunpack.c.h.s8.bf16 %v626
    %v1587 = vunpack.c.h.s8.bf16 %v627
    %v1588 = vunpack.c.h.s8.bf16 %v628
    %v1589 = vunpack.c.h.s8.bf16 %v629
    %v1590 = vunpack.c.h.s8.bf16 %v630
    %v1591 = vunpack.c.h.s8.bf16 %v631
    %v1592 = vunpack.c.l.s8.bf16 %v632
    %v1593 = vunpack.c.l.s8.bf16 %v633
    %v1594 = vunpack.c.l.s8.bf16 %v634
    %v1595 = vunpack.c.l.s8.bf16 %v635
    %v1596 = vunpack.c.l.s8.bf16 %v636
    %v1597 = vunpack.c.l.s8.bf16 %v637
    %v1598 = vunpack.c.l.s8.bf16 %v638
    %v1599 = vunpack.c.l.s8.bf16 %v639
    %v1600 = vunpack.c.h.s8.bf16 %v632
    %v1601 = vunpack.c.h.s8.bf16 %v633
    %v1602 = vunpack.c.h.s8.bf16 %v634
    %v1603 = vunpack.c.h.s8.bf16 %v635
    %v1604 = vunpack.c.h.s8.bf16 %v636
    %v1605 = vunpack.c.h.s8.bf16 %v637
    %v1606 = vunpack.c.h.s8.bf16 %v638
    %v1607 = vunpack.c.h.s8.bf16 %v639
    %v1608 = vunpack.c.l.s8.bf16 %v640
    %v1609 = vunpack.c.l.s8.bf16 %v641
    %v1610 = vunpack.c.l.s8.bf16 %v642
    %v1611 = vunpack.c.l.s8.bf16 %v643
    %v1612 = vunpack.c.l.s8.bf16 %v644
    %v1613 = vunpack.c.l.s8.bf16 %v645
    %v1614 = vunpack.c.l.s8.bf16 %v646
    %v1615 = vunpack.c.l.s8.bf16 %v647
    %v1616 = vunpack.c.h.s8.bf16 %v640
    %v1617 = vunpack.c.h.s8.bf16 %v641
    %v1618 = vunpack.c.h.s8.bf16 %v642
    %v1619 = vunpack.c.h.s8.bf16 %v643
    %v1620 = vunpack.c.h.s8.bf16 %v644
    %v1621 = vunpack.c.h.s8.bf16 %v645
    %v1622 = vunpack.c.h.s8.bf16 %v646
    %v1623 = vunpack.c.h.s8.bf16 %v647
    %v1624 = vunpack.c.l.s8.bf16 %v648
    %v1625 = vunpack.c.l.s8.bf16 %v649
    %v1626 = vunpack.c.l.s8.bf16 %v650
    %v1627 = vunpack.c.l.s8.bf16 %v651
    %v1628 = vunpack.c.l.s8.bf16 %v652
    %v1629 = vunpack.c.l.s8.bf16 %v653
    %v1630 = vunpack.c.l.s8.bf16 %v654
    %v1631 = vunpack.c.l.s8.bf16 %v655
    %v1632 = vunpack.c.h.s8.bf16 %v648
    %v1633 = vunpack.c.h.s8.bf16 %v649
    %v1634 = vunpack.c.h.s8.bf16 %v650
    %v1635 = vunpack.c.h.s8.bf16 %v651
    %v1636 = vunpack.c.h.s8.bf16 %v652
    %v1637 = vunpack.c.h.s8.bf16 %v653
    %v1638 = vunpack.c.h.s8.bf16 %v654
    %v1639 = vunpack.c.h.s8.bf16 %v655
    %v1640 = vunpack.c.l.s8.bf16 %v656
    %v1641 = vunpack.c.l.s8.bf16 %v657
    %v1642 = vunpack.c.l.s8.bf16 %v658
    %v1643 = vunpack.c.l.s8.bf16 %v659
    %v1644 = vunpack.c.l.s8.bf16 %v660
    %v1645 = vunpack.c.l.s8.bf16 %v661
    %v1646 = vunpack.c.l.s8.bf16 %v662
    %v1647 = vunpack.c.l.s8.bf16 %v663
    %v1648 = vunpack.c.h.s8.bf16 %v656
    %v1649 = vunpack.c.h.s8.bf16 %v657
    %v1650 = vunpack.c.h.s8.bf16 %v658
    %v1651 = vunpack.c.h.s8.bf16 %v659
    %v1652 = vunpack.c.h.s8.bf16 %v660
    %v1653 = vunpack.c.h.s8.bf16 %v661
    %v1654 = vunpack.c.h.s8.bf16 %v662
    %v1655 = vunpack.c.h.s8.bf16 %v663
    %v1656 = vunpack.c.l.s8.bf16 %v664
    %v1657 = vunpack.c.l.s8.bf16 %v665
    %v1658 = vunpack.c.l.s8.bf16 %v666
    %v1659 = vunpack.c.l.s8.bf16 %v667
    %v1660 = vunpack.c.l.s8.bf16 %v668
    %v1661 = vunpack.c.l.s8.bf16 %v669
    %v1662 = vunpack.c.l.s8.bf16 %v670
    %v1663 = vunpack.c.l.s8.bf16 %v671
    %v1664 = vunpack.c.h.s8.bf16 %v664
    %v1665 = vunpack.c.h.s8.bf16 %v665
    %v1666 = vunpack.c.h.s8.bf16 %v666
    %v1667 = vunpack.c.h.s8.bf16 %v667
    %v1668 = vunpack.c.h.s8.bf16 %v668
    %v1669 = vunpack.c.h.s8.bf16 %v669
    %v1670 = vunpack.c.h.s8.bf16 %v670
    %v1671 = vunpack.c.h.s8.bf16 %v671
    %v1672 = vunpack.c.l.s8.bf16 %v672
    %v1673 = vunpack.c.l.s8.bf16 %v673
    %v1674 = vunpack.c.l.s8.bf16 %v674
    %v1675 = vunpack.c.l.s8.bf16 %v675
    %v1676 = vunpack.c.l.s8.bf16 %v676
    %v1677 = vunpack.c.l.s8.bf16 %v677
    %v1678 = vunpack.c.l.s8.bf16 %v678
    %v1679 = vunpack.c.l.s8.bf16 %v679
    %v1680 = vunpack.c.h.s8.bf16 %v672
    %v1681 = vunpack.c.h.s8.bf16 %v673
    %v1682 = vunpack.c.h.s8.bf16 %v674
    %v1683 = vunpack.c.h.s8.bf16 %v675
    %v1684 = vunpack.c.h.s8.bf16 %v676
    %v1685 = vunpack.c.h.s8.bf16 %v677
    %v1686 = vunpack.c.h.s8.bf16 %v678
    %v1687 = vunpack.c.h.s8.bf16 %v679
    %v1688 = vunpack.c.l.s8.bf16 %v680
    %v1689 = vunpack.c.l.s8.bf16 %v681
    %v1690 = vunpack.c.l.s8.bf16 %v682
    %v1691 = vunpack.c.l.s8.bf16 %v683
    %v1692 = vunpack.c.l.s8.bf16 %v684
    %v1693 = vunpack.c.l.s8.bf16 %v685
    %v1694 = vunpack.c.l.s8.bf16 %v686
    %v1695 = vunpack.c.l.s8.bf16 %v687
    %v1696 = vunpack.c.h.s8.bf16 %v680
    %v1697 = vunpack.c.h.s8.bf16 %v681
    %v1698 = vunpack.c.h.s8.bf16 %v682
    %v1699 = vunpack.c.h.s8.bf16 %v683
    %v1700 = vunpack.c.h.s8.bf16 %v684
    %v1701 = vunpack.c.h.s8.bf16 %v685
    %v1702 = vunpack.c.h.s8.bf16 %v686
    %v1703 = vunpack.c.h.s8.bf16 %v687
    %v1704 = vunpack.c.l.s8.bf16 %v688
    %v1705 = vunpack.c.l.s8.bf16 %v689
    %v1706 = vunpack.c.l.s8.bf16 %v690
    %v1707 = vunpack.c.l.s8.bf16 %v691
    %v1708 = vunpack.c.l.s8.bf16 %v692
    %v1709 = vunpack.c.l.s8.bf16 %v693
    %v1710 = vunpack.c.l.s8.bf16 %v694
    %v1711 = vunpack.c.l.s8.bf16 %v695
    %v1712 = vunpack.c.h.s8.bf16 %v688
    %v1713 = vunpack.c.h.s8.bf16 %v689
    %v1714 = vunpack.c.h.s8.bf16 %v690
    %v1715 = vunpack.c.h.s8.bf16 %v691
    %v1716 = vunpack.c.h.s8.bf16 %v692
    %v1717 = vunpack.c.h.s8.bf16 %v693
    %v1718 = vunpack.c.h.s8.bf16 %v694
    %v1719 = vunpack.c.h.s8.bf16 %v695
    %v1728 = vunpack.c.l.b16 %v176
    %v1729 = vunpack.c.h.b16 %v176
    %v1730 = vunpack.c.l.b16 %v177
    %v1731 = vunpack.c.h.b16 %v177
    %v1732 = vunpack.c.l.b16 %v178
    %v1733 = vunpack.c.h.b16 %v178
    %v1734 = vunpack.c.l.b16 %v179
    %v1735 = vunpack.c.h.b16 %v179
    %v1736 = vunpack.c.l.b16 %v180
    %v1737 = vunpack.c.h.b16 %v180
    %v1738 = vunpack.c.l.b16 %v181
    %v1739 = vunpack.c.h.b16 %v181
    %v1740 = vunpack.c.l.b16 %v182
    %v1741 = vunpack.c.h.b16 %v182
    %v1742 = vunpack.c.l.b16 %v183
    %v1743 = vunpack.c.h.b16 %v183
    %v1744 = vpack.c.b16 %v1728, %v1728
    %v1745 = vpack.c.b16 %v1729, %v1729
    %v1746 = vpack.c.b16 %v1730, %v1730
    %v1747 = vpack.c.b16 %v1731, %v1731
    %v1748 = vpack.c.b16 %v1732, %v1732
    %v1749 = vpack.c.b16 %v1733, %v1733
    %v1750 = vpack.c.b16 %v1734, %v1734
    %v1751 = vpack.c.b16 %v1735, %v1735
    %v1752 = vpack.c.b16 %v1736, %v1736
    %v1753 = vpack.c.b16 %v1737, %v1737
    %v1754 = vpack.c.b16 %v1738, %v1738
    %v1755 = vpack.c.b16 %v1739, %v1739
    %v1756 = vpack.c.b16 %v1740, %v1740
    %v1757 = vpack.c.b16 %v1741, %v1741
    %v1758 = vpack.c.b16 %v1742, %v1742
    %v1759 = vpack.c.b16 %v1743, %v1743
    %1776 = vmatprep.subr.bf16.mxu0 %v697
    %1777 = vmatpush1.bf16.msra.mxu0 %v696
    %1778 = vmatprep.subr.bf16.mxu0 %v705
    %1779 = vmatpush1.bf16.msra.mxu0 %v704
    %1780 = vmatprep.subr.bf16.mxu0 %v713
    %1781 = vmatpush1.bf16.msra.mxu0 %v712
    %1782 = vmatprep.subr.bf16.mxu0 %v721
    %1783 = vmatpush1.bf16.msra.mxu0 %v720
    %1784 = vmatprep.subr.bf16.mxu0 %v729
    %1785 = vmatpush1.bf16.msra.mxu0 %v728
    %1786 = vmatprep.subr.bf16.mxu0 %v737
    %1787 = vmatpush1.bf16.msra.mxu0 %v736
    %1788 = vmatprep.subr.bf16.mxu0 %v745
    %1789 = vmatpush1.bf16.msra.mxu0 %v744
    %1790 = vmatprep.subr.bf16.mxu0 %v753
    %1791 = vmatpush1.bf16.msra.mxu0 %v752
    %1792 = vmatprep.subr.bf16.mxu0 %v761
    %1793 = vmatpush1.bf16.msra.mxu0 %v760
    %1794 = vmatprep.subr.bf16.mxu0 %v769
    %1795 = vmatpush1.bf16.msra.mxu0 %v768
    %1796 = vmatprep.subr.bf16.mxu0 %v777
    %1797 = vmatpush1.bf16.msra.mxu0 %v776
    %1798 = vmatprep.subr.bf16.mxu0 %v785
    %1799 = vmatpush1.bf16.msra.mxu0 %v784
    %1800 = vmatprep.subr.bf16.mxu0 %v793
    %1801 = vmatpush1.bf16.msra.mxu0 %v792
    %1802 = vmatprep.subr.bf16.mxu0 %v801
    %1803 = vmatpush1.bf16.msra.mxu0 %v800
    %1804 = vmatprep.subr.bf16.mxu0 %v809
    %1805 = vmatpush1.bf16.msra.mxu0 %v808
    %1806 = vmatprep.subr.bf16.mxu0 %v817
    %1807 = vmatpush1.bf16.msra.mxu0 %v816
    %1808 = vmatprep.mubr.bf16.mxu0 %v1745
    %1809 = vmatmul.mubr.bf16.gmra.mrb[0].mxu0 %v1744
    %v1810 = vpop.f32.mrb[0].mxu0
    %v1811 = vadd.f32 0.0, %v1810
    %v1812 = vpop.f32.mrb[0].mxu0
    %v1813 = vadd.f32 0.0, %v1812
    %v1814 = vpop.f32.mrb[0].mxu0
    %v1815 = vpop.f32.mrb[0].mxu0
    %1816 = vdwg.mxu0
    %1817 = vmatprep.subr.bf16.mxu0 %v825
    %1818 = vmatpush1.bf16.msra.mxu0 %v824
    %1819 = vmatprep.subr.bf16.mxu0 %v833
    %1820 = vmatpush1.bf16.msra.mxu0 %v832
    %1821 = vmatprep.subr.bf16.mxu0 %v841
    %1822 = vmatpush1.bf16.msra.mxu0 %v840
    %1823 = vmatprep.subr.bf16.mxu0 %v849
    %1824 = vmatpush1.bf16.msra.mxu0 %v848
    %1825 = vmatprep.subr.bf16.mxu0 %v857
    %1826 = vmatpush1.bf16.msra.mxu0 %v856
    %1827 = vmatprep.subr.bf16.mxu0 %v865
    %1828 = vmatpush1.bf16.msra.mxu0 %v864
    %1829 = vmatprep.subr.bf16.mxu0 %v873
    %1830 = vmatpush1.bf16.msra.mxu0 %v872
    %1831 = vmatprep.subr.bf16.mxu0 %v881
    %1832 = vmatpush1.bf16.msra.mxu0 %v880
    %1833 = vmatprep.subr.bf16.mxu0 %v889
    %1834 = vmatpush1.bf16.msra.mxu0 %v888
    %1835 = vmatprep.subr.bf16.mxu0 %v897
    %1836 = vmatpush1.bf16.msra.mxu0 %v896
    %1837 = vmatprep.subr.bf16.mxu0 %v905
    %1838 = vmatpush1.bf16.msra.mxu0 %v904
    %1839 = vmatprep.subr.bf16.mxu0 %v913
    %1840 = vmatpush1.bf16.msra.mxu0 %v912
    %1841 = vmatprep.subr.bf16.mxu0 %v921
    %1842 = vmatpush1.bf16.msra.mxu0 %v920
    %1843 = vmatprep.subr.bf16.mxu0 %v929
    %1844 = vmatpush1.bf16.msra.mxu0 %v928
    %1845 = vmatprep.subr.bf16.mxu0 %v937
    %1846 = vmatpush1.bf16.msra.mxu0 %v936
    %1847 = vmatprep.subr.bf16.mxu0 %v945
    %1848 = vmatpush1.bf16.msra.mxu0 %v944
    %1849 = vmatprep.mubr.bf16.mxu0 %v1747
    %1850 = vmatmul.mubr.bf16.gmra.mrb[0].mxu0 %v1746
    %v1851 = vpop.f32.mrb[0].mxu0
    %v1852 = vadd.f32 %v1811, %v1851
    %v1853 = vpop.f32.mrb[0].mxu0
    %v1854 = vadd.f32 %v1813, %v1853
    %v1855 = vpop.f32.mrb[0].mxu0
    %v1856 = vpop.f32.mrb[0].mxu0
    %1857 = vdwg.mxu0
    %1858 = vmatprep.subr.bf16.mxu0 %v953
    %1859 = vmatpush1.bf16.msra.mxu0 %v952
    %1860 = vmatprep.subr.bf16.mxu0 %v961
    %1861 = vmatpush1.bf16.msra.mxu0 %v960
    %1862 = vmatprep.subr.bf16.mxu0 %v969
    %1863 = vmatpush1.bf16.msra.mxu0 %v968
    %1864 = vmatprep.subr.bf16.mxu0 %v977
    %1865 = vmatpush1.bf16.msra.mxu0 %v976
    %1866 = vmatprep.subr.bf16.mxu0 %v985
    %1867 = vmatpush1.bf16.msra.mxu0 %v984
    %1868 = vmatprep.subr.bf16.mxu0 %v993
    %1869 = vmatpush1.bf16.msra.mxu0 %v992
    %1870 = vmatprep.subr.bf16.mxu0 %v1001
    %1871 = vmatpush1.bf16.msra.mxu0 %v1000
    %1872 = vmatprep.subr.bf16.mxu0 %v1009
    %1873 = vmatpush1.bf16.msra.mxu0 %v1008
    %1874 = vmatprep.subr.bf16.mxu0 %v1017
    %1875 = vmatpush1.bf16.msra.mxu0 %v1016
    %1876 = vmatprep.subr.bf16.mxu0 %v1025
    %1877 = vmatpush1.bf16.msra.mxu0 %v1024
    %1878 = vmatprep.subr.bf16.mxu0 %v1033
    %1879 = vmatpush1.bf16.msra.mxu0 %v1032
    %1880 = vmatprep.subr.bf16.mxu0 %v1041
    %1881 = vmatpush1.bf16.msra.mxu0 %v1040
    %1882 = vmatprep.subr.bf16.mxu0 %v1049
    %1883 = vmatpush1.bf16.msra.mxu0 %v1048
    %1884 = vmatprep.subr.bf16.mxu0 %v1057
    %1885 = vmatpush1.bf16.msra.mxu0 %v1056
    %1886 = vmatprep.subr.bf16.mxu0 %v1065
    %1887 = vmatpush1.bf16.msra.mxu0 %v1064
    %1888 = vmatprep.subr.bf16.mxu0 %v1073
    %1889 = vmatpush1.bf16.msra.mxu0 %v1072
    %1890 = vmatprep.mubr.bf16.mxu0 %v1749
    %1891 = vmatmul.mubr.bf16.gmra.mrb[0].mxu0 %v1748
    %v1892 = vpop.f32.mrb[0].mxu0
    %v1893 = vadd.f32 %v1852, %v1892
    %v1894 = vpop.f32.mrb[0].mxu0
    %v1895 = vadd.f32 %v1854, %v1894
    %v1896 = vpop.f32.mrb[0].mxu0
    %v1897 = vpop.f32.mrb[0].mxu0
    %1898 = vdwg.mxu0
    %1899 = vmatprep.subr.bf16.mxu0 %v1081
    %1900 = vmatpush1.bf16.msra.mxu0 %v1080
    %1901 = vmatprep.subr.bf16.mxu0 %v1089
    %1902 = vmatpush1.bf16.msra.mxu0 %v1088
    %1903 = vmatprep.subr.bf16.mxu0 %v1097
    %1904 = vmatpush1.bf16.msra.mxu0 %v1096
    %1905 = vmatprep.subr.bf16.mxu0 %v1105
    %1906 = vmatpush1.bf16.msra.mxu0 %v1104
    %1907 = vmatprep.subr.bf16.mxu0 %v1113
    %1908 = vmatpush1.bf16.msra.mxu0 %v1112
    %1909 = vmatprep.subr.bf16.mxu0 %v1121
    %1910 = vmatpush1.bf16.msra.mxu0 %v1120
    %1911 = vmatprep.subr.bf16.mxu0 %v1129
    %1912 = vmatpush1.bf16.msra.mxu0 %v1128
    %1913 = vmatprep.subr.bf16.mxu0 %v1137
    %1914 = vmatpush1.bf16.msra.mxu0 %v1136
    %1915 = vmatprep.subr.bf16.mxu0 %v1145
    %1916 = vmatpush1.bf16.msra.mxu0 %v1144
    %1917 = vmatprep.subr.bf16.mxu0 %v1153
    %1918 = vmatpush1.bf16.msra.mxu0 %v1152
    %1919 = vmatprep.subr.bf16.mxu0 %v1161
    %1920 = vmatpush1.bf16.msra.mxu0 %v1160
    %1921 = vmatprep.subr.bf16.mxu0 %v1169
    %1922 = vmatpush1.bf16.msra.mxu0 %v1168
    %1923 = vmatprep.subr.bf16.mxu0 %v1177
    %1924 = vmatpush1.bf16.msra.mxu0 %v1176
    %1925 = vmatprep.subr.bf16.mxu0 %v1185
    %1926 = vmatpush1.bf16.msra.mxu0 %v1184
    %1927 = vmatprep.subr.bf16.mxu0 %v1193
    %1928 = vmatpush1.bf16.msra.mxu0 %v1192
    %1929 = vmatprep.subr.bf16.mxu0 %v1201
    %1930 = vmatpush1.bf16.msra.mxu0 %v1200
    %1931 = vmatprep.mubr.bf16.mxu0 %v1751
    %1932 = vmatmul.mubr.bf16.gmra.mrb[0].mxu0 %v1750
    %v1933 = vpop.f32.mrb[0].mxu0
    %v1934 = vadd.f32 %v1893, %v1933
    %v1935 = vpop.f32.mrb[0].mxu0
    %v1936 = vadd.f32 %v1895, %v1935
    %v1937 = vpop.f32.mrb[0].mxu0
    %v1938 = vpop.f32.mrb[0].mxu0
    %1939 = vdwg.mxu0
    %1940 = vmatprep.subr.bf16.mxu0 %v1209
    %1941 = vmatpush1.bf16.msra.mxu0 %v1208
    %1942 = vmatprep.subr.bf16.mxu0 %v1217
    %1943 = vmatpush1.bf16.msra.mxu0 %v1216
    %1944 = vmatprep.subr.bf16.mxu0 %v1225
    %1945 = vmatpush1.bf16.msra.mxu0 %v1224
    %1946 = vmatprep.subr.bf16.mxu0 %v1233
    %1947 = vmatpush1.bf16.msra.mxu0 %v1232
    %1948 = vmatprep.subr.bf16.mxu0 %v1241
    %1949 = vmatpush1.bf16.msra.mxu0 %v1240
    %1950 = vmatprep.subr.bf16.mxu0 %v1249
    %1951 = vmatpush1.bf16.msra.mxu0 %v1248
    %1952 = vmatprep.subr.bf16.mxu0 %v1257
    %1953 = vmatpush1.bf16.msra.mxu0 %v1256
    %1954 = vmatprep.subr.bf16.mxu0 %v1265
    %1955 = vmatpush1.bf16.msra.mxu0 %v1264
    %1956 = vmatprep.subr.bf16.mxu0 %v1273
    %1957 = vmatpush1.bf16.msra.mxu0 %v1272
    %1958 = vmatprep.subr.bf16.mxu0 %v1281
    %1959 = vmatpush1.bf16.msra.mxu0 %v1280
    %1960 = vmatprep.subr.bf16.mxu0 %v1289
    %1961 = vmatpush1.bf16.msra.mxu0 %v1288
    %1962 = vmatprep.subr.bf16.mxu0 %v1297
    %1963 = vmatpush1.bf16.msra.mxu0 %v1296
    %1964 = vmatprep.subr.bf16.mxu0 %v1305
    %1965 = vmatpush1.bf16.msra.mxu0 %v1304
    %1966 = vmatprep.subr.bf16.mxu0 %v1313
    %1967 = vmatpush1.bf16.msra.mxu0 %v1312
    %1968 = vmatprep.subr.bf16.mxu0 %v1321
    %1969 = vmatpush1.bf16.msra.mxu0 %v1320
    %1970 = vmatprep.subr.bf16.mxu0 %v1329
    %1971 = vmatpush1.bf16.msra.mxu0 %v1328
    %1972 = vmatprep.mubr.bf16.mxu0 %v1753
    %1973 = vmatmul.mubr.bf16.gmra.mrb[0].mxu0 %v1752
    %v1974 = vpop.f32.mrb[0].mxu0
    %v1975 = vadd.f32 %v1934, %v1974
    %v1976 = vpop.f32.mrb[0].mxu0
    %v1977 = vadd.f32 %v1936, %v1976
    %v1978 = vpop.f32.mrb[0].mxu0
    %v1979 = vpop.f32.mrb[0].mxu0
    %1980 = vdwg.mxu0
    %1981 = vmatprep.subr.bf16.mxu0 %v1337
    %1982 = vmatpush1.bf16.msra.mxu0 %v1336
    %1983 = vmatprep.subr.bf16.mxu0 %v1345
    %1984 = vmatpush1.bf16.msra.mxu0 %v1344
    %1985 = vmatprep.subr.bf16.mxu0 %v1353
    %1986 = vmatpush1.bf16.msra.mxu0 %v1352
    %1987 = vmatprep.subr.bf16.mxu0 %v1361
    %1988 = vmatpush1.bf16.msra.mxu0 %v1360
    %1989 = vmatprep.subr.bf16.mxu0 %v1369
    %1990 = vmatpush1.bf16.msra.mxu0 %v1368
    %1991 = vmatprep.subr.bf16.mxu0 %v1377
    %1992 = vmatpush1.bf16.msra.mxu0 %v1376
    %1993 = vmatprep.subr.bf16.mxu0 %v1385
    %1994 = vmatpush1.bf16.msra.mxu0 %v1384
    %1995 = vmatprep.subr.bf16.mxu0 %v1393
    %1996 = vmatpush1.bf16.msra.mxu0 %v1392
    %1997 = vmatprep.subr.bf16.mxu0 %v1401
    %1998 = vmatpush1.bf16.msra.mxu0 %v1400
    %1999 = vmatprep.subr.bf16.mxu0 %v1409
    %2000 = vmatpush1.bf16.msra.mxu0 %v1408
    %2001 = vmatprep.subr.bf16.mxu0 %v1417
    %2002 = vmatpush1.bf16.msra.mxu0 %v1416
    %2003 = vmatprep.subr.bf16.mxu0 %v1425
    %2004 = vmatpush1.bf16.msra.mxu0 %v1424
    %2005 = vmatprep.subr.bf16.mxu0 %v1433
    %2006 = vmatpush1.bf16.msra.mxu0 %v1432
    %2007 = vmatprep.subr.bf16.mxu0 %v1441
    %2008 = vmatpush1.bf16.msra.mxu0 %v1440
    %2009 = vmatprep.subr.bf16.mxu0 %v1449
    %2010 = vmatpush1.bf16.msra.mxu0 %v1448
    %2011 = vmatprep.subr.bf16.mxu0 %v1457
    %2012 = vmatpush1.bf16.msra.mxu0 %v1456
    %2013 = vmatprep.mubr.bf16.mxu0 %v1755
    %2014 = vmatmul.mubr.bf16.gmra.mrb[0].mxu0 %v1754
    %v2015 = vpop.f32.mrb[0].mxu0
    %v2016 = vadd.f32 %v1975, %v2015
    %v2017 = vpop.f32.mrb[0].mxu0
    %v2018 = vadd.f32 %v1977, %v2017
    %v2019 = vpop.f32.mrb[0].mxu0
    %v2020 = vpop.f32.mrb[0].mxu0
    %2021 = vdwg.mxu0
    %2022 = vmatprep.subr.bf16.mxu0 %v1465
    %2023 = vmatpush1.bf16.msra.mxu0 %v1464
    %2024 = vmatprep.subr.bf16.mxu0 %v1473
    %2025 = vmatpush1.bf16.msra.mxu0 %v1472
    %2026 = vmatprep.subr.bf16.mxu0 %v1481
    %2027 = vmatpush1.bf16.msra.mxu0 %v1480
    %2028 = vmatprep.subr.bf16.mxu0 %v1489
    %2029 = vmatpush1.bf16.msra.mxu0 %v1488
    %2030 = vmatprep.subr.bf16.mxu0 %v1497
    %2031 = vmatpush1.bf16.msra.mxu0 %v1496
    %2032 = vmatprep.subr.bf16.mxu0 %v1505
    %2033 = vmatpush1.bf16.msra.mxu0 %v1504
    %2034 = vmatprep.subr.bf16.mxu0 %v1513
    %2035 = vmatpush1.bf16.msra.mxu0 %v1512
    %2036 = vmatprep.subr.bf16.mxu0 %v1521
    %2037 = vmatpush1.bf16.msra.mxu0 %v1520
    %2038 = vmatprep.subr.bf16.mxu0 %v1529
    %2039 = vmatpush1.bf16.msra.mxu0 %v1528
    %2040 = vmatprep.subr.bf16.mxu0 %v1537
    %2041 = vmatpush1.bf16.msra.mxu0 %v1536
    %2042 = vmatprep.subr.bf16.mxu0 %v1545
    %2043 = vmatpush1.bf16.msra.mxu0 %v1544
    %2044 = vmatprep.subr.bf16.mxu0 %v1553
    %2045 = vmatpush1.bf16.msra.mxu0 %v1552
    %2046 = vmatprep.subr.bf16.mxu0 %v1561
    %2047 = vmatpush1.bf16.msra.mxu0 %v1560
    %2048 = vmatprep.subr.bf16.mxu0 %v1569
    %2049 = vmatpush1.bf16.msra.mxu0 %v1568
    %2050 = vmatprep.subr.bf16.mxu0 %v1577
    %2051 = vmatpush1.bf16.msra.mxu0 %v1576
    %2052 = vmatprep.subr.bf16.mxu0 %v1585
    %2053 = vmatpush1.bf16.msra.mxu0 %v1584
    %2054 = vmatprep.mubr.bf16.mxu0 %v1757
    %2055 = vmatmul.mubr.bf16.gmra.mrb[0].mxu0 %v1756
    %v2056 = vpop.f32.mrb[0].mxu0
    %v2057 = vadd.f32 %v2016, %v2056
    %v2058 = vpop.f32.mrb[0].mxu0
    %v2059 = vadd.f32 %v2018, %v2058
    %v2060 = vpop.f32.mrb[0].mxu0
    %v2061 = vpop.f32.mrb[0].mxu0
    %2062 = vdwg.mxu0
    %2063 = vmatprep.subr.bf16.mxu0 %v1593
    %2064 = vmatpush1.bf16.msra.mxu0 %v1592
    %2065 = vmatprep.subr.bf16.mxu0 %v1601
    %2066 = vmatpush1.bf16.msra.mxu0 %v1600
    %2067 = vmatprep.subr.bf16.mxu0 %v1609
    %2068 = vmatpush1.bf16.msra.mxu0 %v1608
    %2069 = vmatprep.subr.bf16.mxu0 %v1617
    %2070 = vmatpush1.bf16.msra.mxu0 %v1616
    %2071 = vmatprep.subr.bf16.mxu0 %v1625
    %2072 = vmatpush1.bf16.msra.mxu0 %v1624
    %2073 = vmatprep.subr.bf16.mxu0 %v1633
    %2074 = vmatpush1.bf16.msra.mxu0 %v1632
    %2075 = vmatprep.subr.bf16.mxu0 %v1641
    %2076 = vmatpush1.bf16.msra.mxu0 %v1640
    %2077 = vmatprep.subr.bf16.mxu0 %v1649
    %2078 = vmatpush1.bf16.msra.mxu0 %v1648
    %2079 = vmatprep.subr.bf16.mxu0 %v1657
    %2080 = vmatpush1.bf16.msra.mxu0 %v1656
    %2081 = vmatprep.subr.bf16.mxu0 %v1665
    %2082 = vmatpush1.bf16.msra.mxu0 %v1664
    %2083 = vmatprep.subr.bf16.mxu0 %v1673
    %2084 = vmatpush1.bf16.msra.mxu0 %v1672
    %2085 = vmatprep.subr.bf16.mxu0 %v1681
    %2086 = vmatpush1.bf16.msra.mxu0 %v1680
    %2087 = vmatprep.subr.bf16.mxu0 %v1689
    %2088 = vmatpush1.bf16.msra.mxu0 %v1688
    %2089 = vmatprep.subr.bf16.mxu0 %v1697
    %2090 = vmatpush1.bf16.msra.mxu0 %v1696
    %2091 = vmatprep.subr.bf16.mxu0 %v1705
    %2092 = vmatpush1.bf16.msra.mxu0 %v1704
    %2093 = vmatprep.subr.bf16.mxu0 %v1713
    %2094 = vmatpush1.bf16.msra.mxu0 %v1712
    %2095 = vmatprep.mubr.bf16.mxu0 %v1759
    %2096 = vmatmul.mubr.bf16.gmra.mrb[0].mxu0 %v1758
    %v2097 = vpop.f32.mrb[0].mxu0
    %v2098 = vadd.f32 %v2057, %v2097
    %v2099 = vpop.f32.mrb[0].mxu0
    %v2100 = vadd.f32 %v2059, %v2099
    %v2101 = vpop.f32.mrb[0].mxu0
    %v2102 = vpop.f32.mrb[0].mxu0
    %2103 = vdwg.mxu0
    %2104 = vmatprep.subr.bf16.mxu0 %v699
    %2105 = vmatpush1.bf16.msra.mxu0 %v698
    %2106 = vmatprep.subr.bf16.mxu0 %v707
    %2107 = vmatpush1.bf16.msra.mxu0 %v706
    %2108 = vmatprep.subr.bf16.mxu0 %v715
    %2109 = vmatpush1.bf16.msra.mxu0 %v714
    %2110 = vmatprep.subr.bf16.mxu0 %v723
    %2111 = vmatpush1.bf16.msra.mxu0 %v722
    %2112 = vmatprep.subr.bf16.mxu0 %v731
    %2113 = vmatpush1.bf16.msra.mxu0 %v730
    %2114 = vmatprep.subr.bf16.mxu0 %v739
    %2115 = vmatpush1.bf16.msra.mxu0 %v738
    %2116 = vmatprep.subr.bf16.mxu0 %v747
    %2117 = vmatpush1.bf16.msra.mxu0 %v746
    %2118 = vmatprep.subr.bf16.mxu0 %v755
    %2119 = vmatpush1.bf16.msra.mxu0 %v754
    %2120 = vmatprep.subr.bf16.mxu0 %v763
    %2121 = vmatpush1.bf16.msra.mxu0 %v762
    %2122 = vmatprep.subr.bf16.mxu0 %v771
    %2123 = vmatpush1.bf16.msra.mxu0 %v770
    %2124 = vmatprep.subr.bf16.mxu0 %v779
    %2125 = vmatpush1.bf16.msra.mxu0 %v778
    %2126 = vmatprep.subr.bf16.mxu0 %v787
    %2127 = vmatpush1.bf16.msra.mxu0 %v786
    %2128 = vmatprep.subr.bf16.mxu0 %v795
    %2129 = vmatpush1.bf16.msra.mxu0 %v794
    %2130 = vmatprep.subr.bf16.mxu0 %v803
    %2131 = vmatpush1.bf16.msra.mxu0 %v802
    %2132 = vmatprep.subr.bf16.mxu0 %v811
    %2133 = vmatpush1.bf16.msra.mxu0 %v810
    %2134 = vmatprep.subr.bf16.mxu0 %v819
    %2135 = vmatpush1.bf16.msra.mxu0 %v818
    %2136 = vmatprep.mubr.bf16.mxu0 %v1745
    %2137 = vmatmul.mubr.bf16.gmra.mrb[0].mxu0 %v1744
    %v2138 = vpop.f32.mrb[0].mxu0
    %v2139 = vadd.f32 0.0, %v2138
    %v2140 = vpop.f32.mrb[0].mxu0
    %v2141 = vadd.f32 0.0, %v2140
    %v2142 = vpop.f32.mrb[0].mxu0
    %v2143 = vpop.f32.mrb[0].mxu0
    %2144 = vdwg.mxu0
    %2145 = vmatprep.subr.bf16.mxu0 %v827
    %2146 = vmatpush1.bf16.msra.mxu0 %v826
    %2147 = vmatprep.subr.bf16.mxu0 %v835
    %2148 = vmatpush1.bf16.msra.mxu0 %v834
    %2149 = vmatprep.subr.bf16.mxu0 %v843
    %2150 = vmatpush1.bf16.msra.mxu0 %v842
    %2151 = vmatprep.subr.bf16.mxu0 %v851
    %2152 = vmatpush1.bf16.msra.mxu0 %v850
    %2153 = vmatprep.subr.bf16.mxu0 %v859
    %2154 = vmatpush1.bf16.msra.mxu0 %v858
    %2155 = vmatprep.subr.bf16.mxu0 %v867
    %2156 = vmatpush1.bf16.msra.mxu0 %v866
    %2157 = vmatprep.subr.bf16.mxu0 %v875
    %2158 = vmatpush1.bf16.msra.mxu0 %v874
    %2159 = vmatprep.subr.bf16.mxu0 %v883
    %2160 = vmatpush1.bf16.msra.mxu0 %v882
    %2161 = vmatprep.subr.bf16.mxu0 %v891
    %2162 = vmatpush1.bf16.msra.mxu0 %v890
    %2163 = vmatprep.subr.bf16.mxu0 %v899
    %2164 = vmatpush1.bf16.msra.mxu0 %v898
    %2165 = vmatprep.subr.bf16.mxu0 %v907
    %2166 = vmatpush1.bf16.msra.mxu0 %v906
    %2167 = vmatprep.subr.bf16.mxu0 %v915
    %2168 = vmatpush1.bf16.msra.mxu0 %v914
    %2169 = vmatprep.subr.bf16.mxu0 %v923
    %2170 = vmatpush1.bf16.msra.mxu0 %v922
    %2171 = vmatprep.subr.bf16.mxu0 %v931
    %2172 = vmatpush1.bf16.msra.mxu0 %v930
    %2173 = vmatprep.subr.bf16.mxu0 %v939
    %2174 = vmatpush1.bf16.msra.mxu0 %v938
    %2175 = vmatprep.subr.bf16.mxu0 %v947
    %2176 = vmatpush1.bf16.msra.mxu0 %v946
    %2177 = vmatprep.mubr.bf16.mxu0 %v1747
    %2178 = vmatmul.mubr.bf16.gmra.mrb[0].mxu0 %v1746
    %v2179 = vpop.f32.mrb[0].mxu0
    %v2180 = vadd.f32 %v2139, %v2179
    %v2181 = vpop.f32.mrb[0].mxu0
    %v2182 = vadd.f32 %v2141, %v2181
    %v2183 = vpop.f32.mrb[0].mxu0
    %v2184 = vpop.f32.mrb[0].mxu0
    %2185 = vdwg.mxu0
    %2186 = vmatprep.subr.bf16.mxu0 %v955
    %2187 = vmatpush1.bf16.msra.mxu0 %v954
    %2188 = vmatprep.subr.bf16.mxu0 %v963
    %2189 = vmatpush1.bf16.msra.mxu0 %v962
    %2190 = vmatprep.subr.bf16.mxu0 %v971
    %2191 = vmatpush1.bf16.msra.mxu0 %v970
    %2192 = vmatprep.subr.bf16.mxu0 %v979
    %2193 = vmatpush1.bf16.msra.mxu0 %v978
    %2194 = vmatprep.subr.bf16.mxu0 %v987
    %2195 = vmatpush1.bf16.msra.mxu0 %v986
    %2196 = vmatprep.subr.bf16.mxu0 %v995
    %2197 = vmatpush1.bf16.msra.mxu0 %v994
    %2198 = vmatprep.subr.bf16.mxu0 %v1003
    %2199 = vmatpush1.bf16.msra.mxu0 %v1002
    %2200 = vmatprep.subr.bf16.mxu0 %v1011
    %2201 = vmatpush1.bf16.msra.mxu0 %v1010
    %2202 = vmatprep.subr.bf16.mxu0 %v1019
    %2203 = vmatpush1.bf16.msra.mxu0 %v1018
    %2204 = vmatprep.subr.bf16.mxu0 %v1027
    %2205 = vmatpush1.bf16.msra.mxu0 %v1026
    %2206 = vmatprep.subr.bf16.mxu0 %v1035
    %2207 = vmatpush1.bf16.msra.mxu0 %v1034
    %2208 = vmatprep.subr.bf16.mxu0 %v1043
    %2209 = vmatpush1.bf16.msra.mxu0 %v1042
    %2210 = vmatprep.subr.bf16.mxu0 %v1051
    %2211 = vmatpush1.bf16.msra.mxu0 %v1050
    %2212 = vmatprep.subr.bf16.mxu0 %v1059
    %2213 = vmatpush1.bf16.msra.mxu0 %v1058
    %2214 = vmatprep.subr.bf16.mxu0 %v1067
    %2215 = vmatpush1.bf16.msra.mxu0 %v1066
    %2216 = vmatprep.subr.bf16.mxu0 %v1075
    %2217 = vmatpush1.bf16.msra.mxu0 %v1074
    %2218 = vmatprep.mubr.bf16.mxu0 %v1749
    %2219 = vmatmul.mubr.bf16.gmra.mrb[0].mxu0 %v1748
    %v2220 = vpop.f32.mrb[0].mxu0
    %v2221 = vadd.f32 %v2180, %v2220
    %v2222 = vpop.f32.mrb[0].mxu0
    %v2223 = vadd.f32 %v2182, %v2222
    %v2224 = vpop.f32.mrb[0].mxu0
    %v2225 = vpop.f32.mrb[0].mxu0
    %2226 = vdwg.mxu0
    %2227 = vmatprep.subr.bf16.mxu0 %v1083
    %2228 = vmatpush1.bf16.msra.mxu0 %v1082
    %2229 = vmatprep.subr.bf16.mxu0 %v1091
    %2230 = vmatpush1.bf16.msra.mxu0 %v1090
    %2231 = vmatprep.subr.bf16.mxu0 %v1099
    %2232 = vmatpush1.bf16.msra.mxu0 %v1098
    %2233 = vmatprep.subr.bf16.mxu0 %v1107
    %2234 = vmatpush1.bf16.msra.mxu0 %v1106
    %2235 = vmatprep.subr.bf16.mxu0 %v1115
    %2236 = vmatpush1.bf16.msra.mxu0 %v1114
    %2237 = vmatprep.subr.bf16.mxu0 %v1123
    %2238 = vmatpush1.bf16.msra.mxu0 %v1122
    %2239 = vmatprep.subr.bf16.mxu0 %v1131
    %2240 = vmatpush1.bf16.msra.mxu0 %v1130
    %2241 = vmatprep.subr.bf16.mxu0 %v1139
    %2242 = vmatpush1.bf16.msra.mxu0 %v1138
    %2243 = vmatprep.subr.bf16.mxu0 %v1147
    %2244 = vmatpush1.bf16.msra.mxu0 %v1146
    %2245 = vmatprep.subr.bf16.mxu0 %v1155
    %2246 = vmatpush1.bf16.msra.mxu0 %v1154
    %2247 = vmatprep.subr.bf16.mxu0 %v1163
    %2248 = vmatpush1.bf16.msra.mxu0 %v1162
    %2249 = vmatprep.subr.bf16.mxu0 %v1171
    %2250 = vmatpush1.bf16.msra.mxu0 %v1170
    %2251 = vmatprep.subr.bf16.mxu0 %v1179
    %2252 = vmatpush1.bf16.msra.mxu0 %v1178
    %2253 = vmatprep.subr.bf16.mxu0 %v1187
    %2254 = vmatpush1.bf16.msra.mxu0 %v1186
    %2255 = vmatprep.subr.bf16.mxu0 %v1195
    %2256 = vmatpush1.bf16.msra.mxu0 %v1194
    %2257 = vmatprep.subr.bf16.mxu0 %v1203
    %2258 = vmatpush1.bf16.msra.mxu0 %v1202
    %2259 = vmatprep.mubr.bf16.mxu0 %v1751
    %2260 = vmatmul.mubr.bf16.gmra.mrb[0].mxu0 %v1750
    %v2261 = vpop.f32.mrb[0].mxu0
    %v2262 = vadd.f32 %v2221, %v2261
    %v2263 = vpop.f32.mrb[0].mxu0
    %v2264 = vadd.f32 %v2223, %v2263
    %v2265 = vpop.f32.mrb[0].mxu0
    %v2266 = vpop.f32.mrb[0].mxu0
    %2267 = vdwg.mxu0
    %2268 = vmatprep.subr.bf16.mxu0 %v1211
    %2269 = vmatpush1.bf16.msra.mxu0 %v1210
    %2270 = vmatprep.subr.bf16.mxu0 %v1219
    %2271 = vmatpush1.bf16.msra.mxu0 %v1218
    %2272 = vmatprep.subr.bf16.mxu0 %v1227
    %2273 = vmatpush1.bf16.msra.mxu0 %v1226
    %2274 = vmatprep.subr.bf16.mxu0 %v1235
    %2275 = vmatpush1.bf16.msra.mxu0 %v1234
    %2276 = vmatprep.subr.bf16.mxu0 %v1243
    %2277 = vmatpush1.bf16.msra.mxu0 %v1242
    %2278 = vmatprep.subr.bf16.mxu0 %v1251
    %2279 = vmatpush1.bf16.msra.mxu0 %v1250
    %2280 = vmatprep.subr.bf16.mxu0 %v1259
    %2281 = vmatpush1.bf16.msra.mxu0 %v1258
    %2282 = vmatprep.subr.bf16.mxu0 %v1267
    %2283 = vmatpush1.bf16.msra.mxu0 %v1266
    %2284 = vmatprep.subr.bf16.mxu0 %v1275
    %2285 = vmatpush1.bf16.msra.mxu0 %v1274
    %2286 = vmatprep.subr.bf16.mxu0 %v1283
    %2287 = vmatpush1.bf16.msra.mxu0 %v1282
    %2288 = vmatprep.subr.bf16.mxu0 %v1291
    %2289 = vmatpush1.bf16.msra.mxu0 %v1290
    %2290 = vmatprep.subr.bf16.mxu0 %v1299
    %2291 = vmatpush1.bf16.msra.mxu0 %v1298
    %2292 = vmatprep.subr.bf16.mxu0 %v1307
    %2293 = vmatpush1.bf16.msra.mxu0 %v1306
    %2294 = vmatprep.subr.bf16.mxu0 %v1315
    %2295 = vmatpush1.bf16.msra.mxu0 %v1314
    %2296 = vmatprep.subr.bf16.mxu0 %v1323
    %2297 = vmatpush1.bf16.msra.mxu0 %v1322
    %2298 = vmatprep.subr.bf16.mxu0 %v1331
    %2299 = vmatpush1.bf16.msra.mxu0 %v1330
    %2300 = vmatprep.mubr.bf16.mxu0 %v1753
    %2301 = vmatmul.mubr.bf16.gmra.mrb[0].mxu0 %v1752
    %v2302 = vpop.f32.mrb[0].mxu0
    %v2303 = vadd.f32 %v2262, %v2302
    %v2304 = vpop.f32.mrb[0].mxu0
    %v2305 = vadd.f32 %v2264, %v2304
    %v2306 = vpop.f32.mrb[0].mxu0
    %v2307 = vpop.f32.mrb[0].mxu0
    %2308 = vdwg.mxu0
    %2309 = vmatprep.subr.bf16.mxu0 %v1339
    %2310 = vmatpush1.bf16.msra.mxu0 %v1338
    %2311 = vmatprep.subr.bf16.mxu0 %v1347
    %2312 = vmatpush1.bf16.msra.mxu0 %v1346
    %2313 = vmatprep.subr.bf16.mxu0 %v1355
    %2314 = vmatpush1.bf16.msra.mxu0 %v1354
    %2315 = vmatprep.subr.bf16.mxu0 %v1363
    %2316 = vmatpush1.bf16.msra.mxu0 %v1362
    %2317 = vmatprep.subr.bf16.mxu0 %v1371
    %2318 = vmatpush1.bf16.msra.mxu0 %v1370
    %2319 = vmatprep.subr.bf16.mxu0 %v1379
    %2320 = vmatpush1.bf16.msra.mxu0 %v1378
    %2321 = vmatprep.subr.bf16.mxu0 %v1387
    %2322 = vmatpush1.bf16.msra.mxu0 %v1386
    %2323 = vmatprep.subr.bf16.mxu0 %v1395
    %2324 = vmatpush1.bf16.msra.mxu0 %v1394
    %2325 = vmatprep.subr.bf16.mxu0 %v1403
    %2326 = vmatpush1.bf16.msra.mxu0 %v1402
    %2327 = vmatprep.subr.bf16.mxu0 %v1411
    %2328 = vmatpush1.bf16.msra.mxu0 %v1410
    %2329 = vmatprep.subr.bf16.mxu0 %v1419
    %2330 = vmatpush1.bf16.msra.mxu0 %v1418
    %2331 = vmatprep.subr.bf16.mxu0 %v1427
    %2332 = vmatpush1.bf16.msra.mxu0 %v1426
    %2333 = vmatprep.subr.bf16.mxu0 %v1435
    %2334 = vmatpush1.bf16.msra.mxu0 %v1434
    %2335 = vmatprep.subr.bf16.mxu0 %v1443
    %2336 = vmatpush1.bf16.msra.mxu0 %v1442
    %2337 = vmatprep.subr.bf16.mxu0 %v1451
    %2338 = vmatpush1.bf16.msra.mxu0 %v1450
    %2339 = vmatprep.subr.bf16.mxu0 %v1459
    %2340 = vmatpush1.bf16.msra.mxu0 %v1458
    %2341 = vmatprep.mubr.bf16.mxu0 %v1755
    %2342 = vmatmul.mubr.bf16.gmra.mrb[0].mxu0 %v1754
    %v2343 = vpop.f32.mrb[0].mxu0
    %v2344 = vadd.f32 %v2303, %v2343
    %v2345 = vpop.f32.mrb[0].mxu0
    %v2346 = vadd.f32 %v2305, %v2345
    %v2347 = vpop.f32.mrb[0].mxu0
    %v2348 = vpop.f32.mrb[0].mxu0
    %2349 = vdwg.mxu0
    %2350 = vmatprep.subr.bf16.mxu0 %v1467
    %2351 = vmatpush1.bf16.msra.mxu0 %v1466
    %2352 = vmatprep.subr.bf16.mxu0 %v1475
    %2353 = vmatpush1.bf16.msra.mxu0 %v1474
    %2354 = vmatprep.subr.bf16.mxu0 %v1483
    %2355 = vmatpush1.bf16.msra.mxu0 %v1482
    %2356 = vmatprep.subr.bf16.mxu0 %v1491
    %2357 = vmatpush1.bf16.msra.mxu0 %v1490
    %2358 = vmatprep.subr.bf16.mxu0 %v1499
    %2359 = vmatpush1.bf16.msra.mxu0 %v1498
    %2360 = vmatprep.subr.bf16.mxu0 %v1507
    %2361 = vmatpush1.bf16.msra.mxu0 %v1506
    %2362 = vmatprep.subr.bf16.mxu0 %v1515
    %2363 = vmatpush1.bf16.msra.mxu0 %v1514
    %2364 = vmatprep.subr.bf16.mxu0 %v1523
    %2365 = vmatpush1.bf16.msra.mxu0 %v1522
    %2366 = vmatprep.subr.bf16.mxu0 %v1531
    %2367 = vmatpush1.bf16.msra.mxu0 %v1530
    %2368 = vmatprep.subr.bf16.mxu0 %v1539
    %2369 = vmatpush1.bf16.msra.mxu0 %v1538
    %2370 = vmatprep.subr.bf16.mxu0 %v1547
    %2371 = vmatpush1.bf16.msra.mxu0 %v1546
    %2372 = vmatprep.subr.bf16.mxu0 %v1555
    %2373 = vmatpush1.bf16.msra.mxu0 %v1554
    %2374 = vmatprep.subr.bf16.mxu0 %v1563
    %2375 = vmatpush1.bf16.msra.mxu0 %v1562
    %2376 = vmatprep.subr.bf16.mxu0 %v1571
    %2377 = vmatpush1.bf16.msra.mxu0 %v1570
    %2378 = vmatprep.subr.bf16.mxu0 %v1579
    %2379 = vmatpush1.bf16.msra.mxu0 %v1578
    %2380 = vmatprep.subr.bf16.mxu0 %v1587
    %2381 = vmatpush1.bf16.msra.mxu0 %v1586
    %2382 = vmatprep.mubr.bf16.mxu0 %v1757
    %2383 = vmatmul.mubr.bf16.gmra.mrb[0].mxu0 %v1756
    %v2384 = vpop.f32.mrb[0].mxu0
    %v2385 = vadd.f32 %v2344, %v2384
    %v2386 = vpop.f32.mrb[0].mxu0
    %v2387 = vadd.f32 %v2346, %v2386
    %v2388 = vpop.f32.mrb[0].mxu0
    %v2389 = vpop.f32.mrb[0].mxu0
    %2390 = vdwg.mxu0
    %2391 = vmatprep.subr.bf16.mxu0 %v1595
    %2392 = vmatpush1.bf16.msra.mxu0 %v1594
    %2393 = vmatprep.subr.bf16.mxu0 %v1603
    %2394 = vmatpush1.bf16.msra.mxu0 %v1602
    %2395 = vmatprep.subr.bf16.mxu0 %v1611
    %2396 = vmatpush1.bf16.msra.mxu0 %v1610
    %2397 = vmatprep.subr.bf16.mxu0 %v1619
    %2398 = vmatpush1.bf16.msra.mxu0 %v1618
    %2399 = vmatprep.subr.bf16.mxu0 %v1627
    %2400 = vmatpush1.bf16.msra.mxu0 %v1626
    %2401 = vmatprep.subr.bf16.mxu0 %v1635
    %2402 = vmatpush1.bf16.msra.mxu0 %v1634
    %2403 = vmatprep.subr.bf16.mxu0 %v1643
    %2404 = vmatpush1.bf16.msra.mxu0 %v1642
    %2405 = vmatprep.subr.bf16.mxu0 %v1651
    %2406 = vmatpush1.bf16.msra.mxu0 %v1650
    %2407 = vmatprep.subr.bf16.mxu0 %v1659
    %2408 = vmatpush1.bf16.msra.mxu0 %v1658
    %2409 = vmatprep.subr.bf16.mxu0 %v1667
    %2410 = vmatpush1.bf16.msra.mxu0 %v1666
    %2411 = vmatprep.subr.bf16.mxu0 %v1675
    %2412 = vmatpush1.bf16.msra.mxu0 %v1674
    %2413 = vmatprep.subr.bf16.mxu0 %v1683
    %2414 = vmatpush1.bf16.msra.mxu0 %v1682
    %2415 = vmatprep.subr.bf16.mxu0 %v1691
    %2416 = vmatpush1.bf16.msra.mxu0 %v1690
    %2417 = vmatprep.subr.bf16.mxu0 %v1699
    %2418 = vmatpush1.bf16.msra.mxu0 %v1698
    %2419 = vmatprep.subr.bf16.mxu0 %v1707
    %2420 = vmatpush1.bf16.msra.mxu0 %v1706
    %2421 = vmatprep.subr.bf16.mxu0 %v1715
    %2422 = vmatpush1.bf16.msra.mxu0 %v1714
    %2423 = vmatprep.mubr.bf16.mxu0 %v1759
    %2424 = vmatmul.mubr.bf16.gmra.mrb[0].mxu0 %v1758
    %v2425 = vpop.f32.mrb[0].mxu0
    %v2426 = vadd.f32 %v2385, %v2425
    %v2427 = vpop.f32.mrb[0].mxu0
    %v2428 = vadd.f32 %v2387, %v2427
    %v2429 = vpop.f32.mrb[0].mxu0
    %v2430 = vpop.f32.mrb[0].mxu0
    %2431 = vdwg.mxu0
    %2432 = vmatprep.subr.bf16.mxu0 %v701
    %2433 = vmatpush1.bf16.msra.mxu0 %v700
    %2434 = vmatprep.subr.bf16.mxu0 %v709
    %2435 = vmatpush1.bf16.msra.mxu0 %v708
    %2436 = vmatprep.subr.bf16.mxu0 %v717
    %2437 = vmatpush1.bf16.msra.mxu0 %v716
    %2438 = vmatprep.subr.bf16.mxu0 %v725
    %2439 = vmatpush1.bf16.msra.mxu0 %v724
    %2440 = vmatprep.subr.bf16.mxu0 %v733
    %2441 = vmatpush1.bf16.msra.mxu0 %v732
    %2442 = vmatprep.subr.bf16.mxu0 %v741
    %2443 = vmatpush1.bf16.msra.mxu0 %v740
    %2444 = vmatprep.subr.bf16.mxu0 %v749
    %2445 = vmatpush1.bf16.msra.mxu0 %v748
    %2446 = vmatprep.subr.bf16.mxu0 %v757
    %2447 = vmatpush1.bf16.msra.mxu0 %v756
    %2448 = vmatprep.subr.bf16.mxu0 %v765
    %2449 = vmatpush1.bf16.msra.mxu0 %v764
    %2450 = vmatprep.subr.bf16.mxu0 %v773
    %2451 = vmatpush1.bf16.msra.mxu0 %v772
    %2452 = vmatprep.subr.bf16.mxu0 %v781
    %2453 = vmatpush1.bf16.msra.mxu0 %v780
    %2454 = vmatprep.subr.bf16.mxu0 %v789
    %2455 = vmatpush1.bf16.msra.mxu0 %v788
    %2456 = vmatprep.subr.bf16.mxu0 %v797
    %2457 = vmatpush1.bf16.msra.mxu0 %v796
    %2458 = vmatprep.subr.bf16.mxu0 %v805
    %2459 = vmatpush1.bf16.msra.mxu0 %v804
    %2460 = vmatprep.subr.bf16.mxu0 %v813
    %2461 = vmatpush1.bf16.msra.mxu0 %v812
    %2462 = vmatprep.subr.bf16.mxu0 %v821
    %2463 = vmatpush1.bf16.msra.mxu0 %v820
    %2464 = vmatprep.mubr.bf16.mxu0 %v1745
    %2465 = vmatmul.mubr.bf16.gmra.mrb[0].mxu0 %v1744
    %v2466 = vpop.f32.mrb[0].mxu0
    %v2467 = vadd.f32 0.0, %v2466
    %v2468 = vpop.f32.mrb[0].mxu0
    %v2469 = vadd.f32 0.0, %v2468
    %v2470 = vpop.f32.mrb[0].mxu0
    %v2471 = vpop.f32.mrb[0].mxu0
    %2472 = vdwg.mxu0
    %2473 = vmatprep.subr.bf16.mxu0 %v829
    %2474 = vmatpush1.bf16.msra.mxu0 %v828
    %2475 = vmatprep.subr.bf16.mxu0 %v837
    %2476 = vmatpush1.bf16.msra.mxu0 %v836
    %2477 = vmatprep.subr.bf16.mxu0 %v845
    %2478 = vmatpush1.bf16.msra.mxu0 %v844
    %2479 = vmatprep.subr.bf16.mxu0 %v853
    %2480 = vmatpush1.bf16.msra.mxu0 %v852
    %2481 = vmatprep.subr.bf16.mxu0 %v861
    %2482 = vmatpush1.bf16.msra.mxu0 %v860
    %2483 = vmatprep.subr.bf16.mxu0 %v869
    %2484 = vmatpush1.bf16.msra.mxu0 %v868
    %2485 = vmatprep.subr.bf16.mxu0 %v877
    %2486 = vmatpush1.bf16.msra.mxu0 %v876
    %2487 = vmatprep.subr.bf16.mxu0 %v885
    %2488 = vmatpush1.bf16.msra.mxu0 %v884
    %2489 = vmatprep.subr.bf16.mxu0 %v893
    %2490 = vmatpush1.bf16.msra.mxu0 %v892
    %2491 = vmatprep.subr.bf16.mxu0 %v901
    %2492 = vmatpush1.bf16.msra.mxu0 %v900
    %2493 = vmatprep.subr.bf16.mxu0 %v909
    %2494 = vmatpush1.bf16.msra.mxu0 %v908
    %2495 = vmatprep.subr.bf16.mxu0 %v917
    %2496 = vmatpush1.bf16.msra.mxu0 %v916
    %2497 = vmatprep.subr.bf16.mxu0 %v925
    %2498 = vmatpush1.bf16.msra.mxu0 %v924
    %2499 = vmatprep.subr.bf16.mxu0 %v933
    %2500 = vmatpush1.bf16.msra.mxu0 %v932
    %2501 = vmatprep.subr.bf16.mxu0 %v941
    %2502 = vmatpush1.bf16.msra.mxu0 %v940
    %2503 = vmatprep.subr.bf16.mxu0 %v949
    %2504 = vmatpush1.bf16.msra.mxu0 %v948
    %2505 = vmatprep.mubr.bf16.mxu0 %v1747
    %2506 = vmatmul.mubr.bf16.gmra.mrb[0].mxu0 %v1746
    %v2507 = vpop.f32.mrb[0].mxu0
    %v2508 = vadd.f32 %v2467, %v2507
    %v2509 = vpop.f32.mrb[0].mxu0
    %v2510 = vadd.f32 %v2469, %v2509
    %v2511 = vpop.f32.mrb[0].mxu0
    %v2512 = vpop.f32.mrb[0].mxu0
    %2513 = vdwg.mxu0
    %2514 = vmatprep.subr.bf16.mxu0 %v957
    %2515 = vmatpush1.bf16.msra.mxu0 %v956
    %2516 = vmatprep.subr.bf16.mxu0 %v965
    %2517 = vmatpush1.bf16.msra.mxu0 %v964
    %2518 = vmatprep.subr.bf16.mxu0 %v973
    %2519 = vmatpush1.bf16.msra.mxu0 %v972
    %2520 = vmatprep.subr.bf16.mxu0 %v981
    %2521 = vmatpush1.bf16.msra.mxu0 %v980
    %2522 = vmatprep.subr.bf16.mxu0 %v989
    %2523 = vmatpush1.bf16.msra.mxu0 %v988
    %2524 = vmatprep.subr.bf16.mxu0 %v997
    %2525 = vmatpush1.bf16.msra.mxu0 %v996
    %2526 = vmatprep.subr.bf16.mxu0 %v1005
    %2527 = vmatpush1.bf16.msra.mxu0 %v1004
    %2528 = vmatprep.subr.bf16.mxu0 %v1013
    %2529 = vmatpush1.bf16.msra.mxu0 %v1012
    %2530 = vmatprep.subr.bf16.mxu0 %v1021
    %2531 = vmatpush1.bf16.msra.mxu0 %v1020
    %2532 = vmatprep.subr.bf16.mxu0 %v1029
    %2533 = vmatpush1.bf16.msra.mxu0 %v1028
    %2534 = vmatprep.subr.bf16.mxu0 %v1037
    %2535 = vmatpush1.bf16.msra.mxu0 %v1036
    %2536 = vmatprep.subr.bf16.mxu0 %v1045
    %2537 = vmatpush1.bf16.msra.mxu0 %v1044
    %2538 = vmatprep.subr.bf16.mxu0 %v1053
    %2539 = vmatpush1.bf16.msra.mxu0 %v1052
    %2540 = vmatprep.subr.bf16.mxu0 %v1061
    %2541 = vmatpush1.bf16.msra.mxu0 %v1060
    %2542 = vmatprep.subr.bf16.mxu0 %v1069
    %2543 = vmatpush1.bf16.msra.mxu0 %v1068
    %2544 = vmatprep.subr.bf16.mxu0 %v1077
    %2545 = vmatpush1.bf16.msra.mxu0 %v1076
    %2546 = vmatprep.mubr.bf16.mxu0 %v1749
    %2547 = vmatmul.mubr.bf16.gmra.mrb[0].mxu0 %v1748
    %v2548 = vpop.f32.mrb[0].mxu0
    %v2549 = vadd.f32 %v2508, %v2548
    %v2550 = vpop.f32.mrb[0].mxu0
    %v2551 = vadd.f32 %v2510, %v2550
    %v2552 = vpop.f32.mrb[0].mxu0
    %v2553 = vpop.f32.mrb[0].mxu0
    %2554 = vdwg.mxu0
    %2555 = vmatprep.subr.bf16.mxu0 %v1085
    %2556 = vmatpush1.bf16.msra.mxu0 %v1084
    %2557 = vmatprep.subr.bf16.mxu0 %v1093
    %2558 = vmatpush1.bf16.msra.mxu0 %v1092
    %2559 = vmatprep.subr.bf16.mxu0 %v1101
    %2560 = vmatpush1.bf16.msra.mxu0 %v1100
    %2561 = vmatprep.subr.bf16.mxu0 %v1109
    %2562 = vmatpush1.bf16.msra.mxu0 %v1108
    %2563 = vmatprep.subr.bf16.mxu0 %v1117
    %2564 = vmatpush1.bf16.msra.mxu0 %v1116
    %2565 = vmatprep.subr.bf16.mxu0 %v1125
    %2566 = vmatpush1.bf16.msra.mxu0 %v1124
    %2567 = vmatprep.subr.bf16.mxu0 %v1133
    %2568 = vmatpush1.bf16.msra.mxu0 %v1132
    %2569 = vmatprep.subr.bf16.mxu0 %v1141
    %2570 = vmatpush1.bf16.msra.mxu0 %v1140
    %2571 = vmatprep.subr.bf16.mxu0 %v1149
    %2572 = vmatpush1.bf16.msra.mxu0 %v1148
    %2573 = vmatprep.subr.bf16.mxu0 %v1157
    %2574 = vmatpush1.bf16.msra.mxu0 %v1156
    %2575 = vmatprep.subr.bf16.mxu0 %v1165
    %2576 = vmatpush1.bf16.msra.mxu0 %v1164
    %2577 = vmatprep.subr.bf16.mxu0 %v1173
    %2578 = vmatpush1.bf16.msra.mxu0 %v1172
    %2579 = vmatprep.subr.bf16.mxu0 %v1181
    %2580 = vmatpush1.bf16.msra.mxu0 %v1180
    %2581 = vmatprep.subr.bf16.mxu0 %v1189
    %2582 = vmatpush1.bf16.msra.mxu0 %v1188
    %2583 = vmatprep.subr.bf16.mxu0 %v1197
    %2584 = vmatpush1.bf16.msra.mxu0 %v1196
    %2585 = vmatprep.subr.bf16.mxu0 %v1205
    %2586 = vmatpush1.bf16.msra.mxu0 %v1204
    %2587 = vmatprep.mubr.bf16.mxu0 %v1751
    %2588 = vmatmul.mubr.bf16.gmra.mrb[0].mxu0 %v1750
    %v2589 = vpop.f32.mrb[0].mxu0
    %v2590 = vadd.f32 %v2549, %v2589
    %v2591 = vpop.f32.mrb[0].mxu0
    %v2592 = vadd.f32 %v2551, %v2591
    %v2593 = vpop.f32.mrb[0].mxu0
    %v2594 = vpop.f32.mrb[0].mxu0
    %2595 = vdwg.mxu0
    %2596 = vmatprep.subr.bf16.mxu0 %v1213
    %2597 = vmatpush1.bf16.msra.mxu0 %v1212
    %2598 = vmatprep.subr.bf16.mxu0 %v1221
    %2599 = vmatpush1.bf16.msra.mxu0 %v1220
    %2600 = vmatprep.subr.bf16.mxu0 %v1229
    %2601 = vmatpush1.bf16.msra.mxu0 %v1228
    %2602 = vmatprep.subr.bf16.mxu0 %v1237
    %2603 = vmatpush1.bf16.msra.mxu0 %v1236
    %2604 = vmatprep.subr.bf16.mxu0 %v1245
    %2605 = vmatpush1.bf16.msra.mxu0 %v1244
    %2606 = vmatprep.subr.bf16.mxu0 %v1253
    %2607 = vmatpush1.bf16.msra.mxu0 %v1252
    %2608 = vmatprep.subr.bf16.mxu0 %v1261
    %2609 = vmatpush1.bf16.msra.mxu0 %v1260
    %2610 = vmatprep.subr.bf16.mxu0 %v1269
    %2611 = vmatpush1.bf16.msra.mxu0 %v1268
    %2612 = vmatprep.subr.bf16.mxu0 %v1277
    %2613 = vmatpush1.bf16.msra.mxu0 %v1276
    %2614 = vmatprep.subr.bf16.mxu0 %v1285
    %2615 = vmatpush1.bf16.msra.mxu0 %v1284
    %2616 = vmatprep.subr.bf16.mxu0 %v1293
    %2617 = vmatpush1.bf16.msra.mxu0 %v1292
    %2618 = vmatprep.subr.bf16.mxu0 %v1301
    %2619 = vmatpush1.bf16.msra.mxu0 %v1300
    %2620 = vmatprep.subr.bf16.mxu0 %v1309
    %2621 = vmatpush1.bf16.msra.mxu0 %v1308
    %2622 = vmatprep.subr.bf16.mxu0 %v1317
    %2623 = vmatpush1.bf16.msra.mxu0 %v1316
    %2624 = vmatprep.subr.bf16.mxu0 %v1325
    %2625 = vmatpush1.bf16.msra.mxu0 %v1324
    %2626 = vmatprep.subr.bf16.mxu0 %v1333
    %2627 = vmatpush1.bf16.msra.mxu0 %v1332
    %2628 = vmatprep.mubr.bf16.mxu0 %v1753
    %2629 = vmatmul.mubr.bf16.gmra.mrb[0].mxu0 %v1752
    %v2630 = vpop.f32.mrb[0].mxu0
    %v2631 = vadd.f32 %v2590, %v2630
    %v2632 = vpop.f32.mrb[0].mxu0
    %v2633 = vadd.f32 %v2592, %v2632
    %v2634 = vpop.f32.mrb[0].mxu0
    %v2635 = vpop.f32.mrb[0].mxu0
    %2636 = vdwg.mxu0
    %2637 = vmatprep.subr.bf16.mxu0 %v1341
    %2638 = vmatpush1.bf16.msra.mxu0 %v1340
    %2639 = vmatprep.subr.bf16.mxu0 %v1349
    %2640 = vmatpush1.bf16.msra.mxu0 %v1348
    %2641 = vmatprep.subr.bf16.mxu0 %v1357
    %2642 = vmatpush1.bf16.msra.mxu0 %v1356
    %2643 = vmatprep.subr.bf16.mxu0 %v1365
    %2644 = vmatpush1.bf16.msra.mxu0 %v1364
    %2645 = vmatprep.subr.bf16.mxu0 %v1373
    %2646 = vmatpush1.bf16.msra.mxu0 %v1372
    %2647 = vmatprep.subr.bf16.mxu0 %v1381
    %2648 = vmatpush1.bf16.msra.mxu0 %v1380
    %2649 = vmatprep.subr.bf16.mxu0 %v1389
    %2650 = vmatpush1.bf16.msra.mxu0 %v1388
    %2651 = vmatprep.subr.bf16.mxu0 %v1397
    %2652 = vmatpush1.bf16.msra.mxu0 %v1396
    %2653 = vmatprep.subr.bf16.mxu0 %v1405
    %2654 = vmatpush1.bf16.msra.mxu0 %v1404
    %2655 = vmatprep.subr.bf16.mxu0 %v1413
    %2656 = vmatpush1.bf16.msra.mxu0 %v1412
    %2657 = vmatprep.subr.bf16.mxu0 %v1421
    %2658 = vmatpush1.bf16.msra.mxu0 %v1420
    %2659 = vmatprep.subr.bf16.mxu0 %v1429
    %2660 = vmatpush1.bf16.msra.mxu0 %v1428
    %2661 = vmatprep.subr.bf16.mxu0 %v1437
    %2662 = vmatpush1.bf16.msra.mxu0 %v1436
    %2663 = vmatprep.subr.bf16.mxu0 %v1445
    %2664 = vmatpush1.bf16.msra.mxu0 %v1444
    %2665 = vmatprep.subr.bf16.mxu0 %v1453
    %2666 = vmatpush1.bf16.msra.mxu0 %v1452
    %2667 = vmatprep.subr.bf16.mxu0 %v1461
    %2668 = vmatpush1.bf16.msra.mxu0 %v1460
    %2669 = vmatprep.mubr.bf16.mxu0 %v1755
    %2670 = vmatmul.mubr.bf16.gmra.mrb[0].mxu0 %v1754
    %v2671 = vpop.f32.mrb[0].mxu0
    %v2672 = vadd.f32 %v2631, %v2671
    %v2673 = vpop.f32.mrb[0].mxu0
    %v2674 = vadd.f32 %v2633, %v2673
    %v2675 = vpop.f32.mrb[0].mxu0
    %v2676 = vpop.f32.mrb[0].mxu0
    %2677 = vdwg.mxu0
    %2678 = vmatprep.subr.bf16.mxu0 %v1469
    %2679 = vmatpush1.bf16.msra.mxu0 %v1468
    %2680 = vmatprep.subr.bf16.mxu0 %v1477
    %2681 = vmatpush1.bf16.msra.mxu0 %v1476
    %2682 = vmatprep.subr.bf16.mxu0 %v1485
    %2683 = vmatpush1.bf16.msra.mxu0 %v1484
    %2684 = vmatprep.subr.bf16.mxu0 %v1493
    %2685 = vmatpush1.bf16.msra.mxu0 %v1492
    %2686 = vmatprep.subr.bf16.mxu0 %v1501
    %2687 = vmatpush1.bf16.msra.mxu0 %v1500
    %2688 = vmatprep.subr.bf16.mxu0 %v1509
    %2689 = vmatpush1.bf16.msra.mxu0 %v1508
    %2690 = vmatprep.subr.bf16.mxu0 %v1517
    %2691 = vmatpush1.bf16.msra.mxu0 %v1516
    %2692 = vmatprep.subr.bf16.mxu0 %v1525
    %2693 = vmatpush1.bf16.msra.mxu0 %v1524
    %2694 = vmatprep.subr.bf16.mxu0 %v1533
    %2695 = vmatpush1.bf16.msra.mxu0 %v1532
    %2696 = vmatprep.subr.bf16.mxu0 %v1541
    %2697 = vmatpush1.bf16.msra.mxu0 %v1540
    %2698 = vmatprep.subr.bf16.mxu0 %v1549
    %2699 = vmatpush1.bf16.msra.mxu0 %v1548
    %2700 = vmatprep.subr.bf16.mxu0 %v1557
    %2701 = vmatpush1.bf16.msra.mxu0 %v1556
    %2702 = vmatprep.subr.bf16.mxu0 %v1565
    %2703 = vmatpush1.bf16.msra.mxu0 %v1564
    %2704 = vmatprep.subr.bf16.mxu0 %v1573
    %2705 = vmatpush1.bf16.msra.mxu0 %v1572
    %2706 = vmatprep.subr.bf16.mxu0 %v1581
    %2707 = vmatpush1.bf16.msra.mxu0 %v1580
    %2708 = vmatprep.subr.bf16.mxu0 %v1589
    %2709 = vmatpush1.bf16.msra.mxu0 %v1588
    %2710 = vmatprep.mubr.bf16.mxu0 %v1757
    %2711 = vmatmul.mubr.bf16.gmra.mrb[0].mxu0 %v1756
    %v2712 = vpop.f32.mrb[0].mxu0
    %v2713 = vadd.f32 %v2672, %v2712
    %v2714 = vpop.f32.mrb[0].mxu0
    %v2715 = vadd.f32 %v2674, %v2714
    %v2716 = vpop.f32.mrb[0].mxu0
    %v2717 = vpop.f32.mrb[0].mxu0
    %2718 = vdwg.mxu0
    %2719 = vmatprep.subr.bf16.mxu0 %v1597
    %2720 = vmatpush1.bf16.msra.mxu0 %v1596
    %2721 = vmatprep.subr.bf16.mxu0 %v1605
    %2722 = vmatpush1.bf16.msra.mxu0 %v1604
    %2723 = vmatprep.subr.bf16.mxu0 %v1613
    %2724 = vmatpush1.bf16.msra.mxu0 %v1612
    %2725 = vmatprep.subr.bf16.mxu0 %v1621
    %2726 = vmatpush1.bf16.msra.mxu0 %v1620
    %2727 = vmatprep.subr.bf16.mxu0 %v1629
    %2728 = vmatpush1.bf16.msra.mxu0 %v1628
    %2729 = vmatprep.subr.bf16.mxu0 %v1637
    %2730 = vmatpush1.bf16.msra.mxu0 %v1636
    %2731 = vmatprep.subr.bf16.mxu0 %v1645
    %2732 = vmatpush1.bf16.msra.mxu0 %v1644
    %2733 = vmatprep.subr.bf16.mxu0 %v1653
    %2734 = vmatpush1.bf16.msra.mxu0 %v1652
    %2735 = vmatprep.subr.bf16.mxu0 %v1661
    %2736 = vmatpush1.bf16.msra.mxu0 %v1660
    %2737 = vmatprep.subr.bf16.mxu0 %v1669
    %2738 = vmatpush1.bf16.msra.mxu0 %v1668
    %2739 = vmatprep.subr.bf16.mxu0 %v1677
    %2740 = vmatpush1.bf16.msra.mxu0 %v1676
    %2741 = vmatprep.subr.bf16.mxu0 %v1685
    %2742 = vmatpush1.bf16.msra.mxu0 %v1684
    %2743 = vmatprep.subr.bf16.mxu0 %v1693
    %2744 = vmatpush1.bf16.msra.mxu0 %v1692
    %2745 = vmatprep.subr.bf16.mxu0 %v1701
    %2746 = vmatpush1.bf16.msra.mxu0 %v1700
    %2747 = vmatprep.subr.bf16.mxu0 %v1709
    %2748 = vmatpush1.bf16.msra.mxu0 %v1708
    %2749 = vmatprep.subr.bf16.mxu0 %v1717
    %2750 = vmatpush1.bf16.msra.mxu0 %v1716
    %2751 = vmatprep.mubr.bf16.mxu0 %v1759
    %2752 = vmatmul.mubr.bf16.gmra.mrb[0].mxu0 %v1758
    %v2753 = vpop.f32.mrb[0].mxu0
    %v2754 = vadd.f32 %v2713, %v2753
    %v2755 = vpop.f32.mrb[0].mxu0
    %v2756 = vadd.f32 %v2715, %v2755
    %v2757 = vpop.f32.mrb[0].mxu0
    %v2758 = vpop.f32.mrb[0].mxu0
    %2759 = vdwg.mxu0
    %2760 = vmatprep.subr.bf16.mxu0 %v703
    %2761 = vmatpush1.bf16.msra.mxu0 %v702
    %2762 = vmatprep.subr.bf16.mxu0 %v711
    %2763 = vmatpush1.bf16.msra.mxu0 %v710
    %2764 = vmatprep.subr.bf16.mxu0 %v719
    %2765 = vmatpush1.bf16.msra.mxu0 %v718
    %2766 = vmatprep.subr.bf16.mxu0 %v727
    %2767 = vmatpush1.bf16.msra.mxu0 %v726
    %2768 = vmatprep.subr.bf16.mxu0 %v735
    %2769 = vmatpush1.bf16.msra.mxu0 %v734
    %2770 = vmatprep.subr.bf16.mxu0 %v743
    %2771 = vmatpush1.bf16.msra.mxu0 %v742
    %2772 = vmatprep.subr.bf16.mxu0 %v751
    %2773 = vmatpush1.bf16.msra.mxu0 %v750
    %2774 = vmatprep.subr.bf16.mxu0 %v759
    %2775 = vmatpush1.bf16.msra.mxu0 %v758
    %2776 = vmatprep.subr.bf16.mxu0 %v767
    %2777 = vmatpush1.bf16.msra.mxu0 %v766
    %2778 = vmatprep.subr.bf16.mxu0 %v775
    %2779 = vmatpush1.bf16.msra.mxu0 %v774
    %2780 = vmatprep.subr.bf16.mxu0 %v783
    %2781 = vmatpush1.bf16.msra.mxu0 %v782
    %2782 = vmatprep.subr.bf16.mxu0 %v791
    %2783 = vmatpush1.bf16.msra.mxu0 %v790
    %2784 = vmatprep.subr.bf16.mxu0 %v799
    %2785 = vmatpush1.bf16.msra.mxu0 %v798
    %2786 = vmatprep.subr.bf16.mxu0 %v807
    %2787 = vmatpush1.bf16.msra.mxu0 %v806
    %2788 = vmatprep.subr.bf16.mxu0 %v815
    %2789 = vmatpush1.bf16.msra.mxu0 %v814
    %2790 = vmatprep.subr.bf16.mxu0 %v823
    %2791 = vmatpush1.bf16.msra.mxu0 %v822
    %2792 = vmatprep.mubr.bf16.mxu0 %v1745
    %2793 = vmatmul.mubr.bf16.gmra.mrb[0].mxu0 %v1744
    %v2794 = vpop.f32.mrb[0].mxu0
    %v2795 = vadd.f32 0.0, %v2794
    %v2796 = vpop.f32.mrb[0].mxu0
    %v2797 = vadd.f32 0.0, %v2796
    %v2798 = vpop.f32.mrb[0].mxu0
    %v2799 = vpop.f32.mrb[0].mxu0
    %2800 = vdwg.mxu0
    %2801 = vmatprep.subr.bf16.mxu0 %v831
    %2802 = vmatpush1.bf16.msra.mxu0 %v830
    %2803 = vmatprep.subr.bf16.mxu0 %v839
    %2804 = vmatpush1.bf16.msra.mxu0 %v838
    %2805 = vmatprep.subr.bf16.mxu0 %v847
    %2806 = vmatpush1.bf16.msra.mxu0 %v846
    %2807 = vmatprep.subr.bf16.mxu0 %v855
    %2808 = vmatpush1.bf16.msra.mxu0 %v854
    %2809 = vmatprep.subr.bf16.mxu0 %v863
    %2810 = vmatpush1.bf16.msra.mxu0 %v862
    %2811 = vmatprep.subr.bf16.mxu0 %v871
    %2812 = vmatpush1.bf16.msra.mxu0 %v870
    %2813 = vmatprep.subr.bf16.mxu0 %v879
    %2814 = vmatpush1.bf16.msra.mxu0 %v878
    %2815 = vmatprep.subr.bf16.mxu0 %v887
    %2816 = vmatpush1.bf16.msra.mxu0 %v886
    %2817 = vmatprep.subr.bf16.mxu0 %v895
    %2818 = vmatpush1.bf16.msra.mxu0 %v894
    %2819 = vmatprep.subr.bf16.mxu0 %v903
    %2820 = vmatpush1.bf16.msra.mxu0 %v902
    %2821 = vmatprep.subr.bf16.mxu0 %v911
    %2822 = vmatpush1.bf16.msra.mxu0 %v910
    %2823 = vmatprep.subr.bf16.mxu0 %v919
    %2824 = vmatpush1.bf16.msra.mxu0 %v918
    %2825 = vmatprep.subr.bf16.mxu0 %v927
    %2826 = vmatpush1.bf16.msra.mxu0 %v926
    %2827 = vmatprep.subr.bf16.mxu0 %v935
    %2828 = vmatpush1.bf16.msra.mxu0 %v934
    %2829 = vmatprep.subr.bf16.mxu0 %v943
    %2830 = vmatpush1.bf16.msra.mxu0 %v942
    %2831 = vmatprep.subr.bf16.mxu0 %v951
    %2832 = vmatpush1.bf16.msra.mxu0 %v950
    %2833 = vmatprep.mubr.bf16.mxu0 %v1747
    %2834 = vmatmul.mubr.bf16.gmra.mrb[0].mxu0 %v1746
    %v2835 = vpop.f32.mrb[0].mxu0
    %v2836 = vadd.f32 %v2795, %v2835
    %v2837 = vpop.f32.mrb[0].mxu0
    %v2838 = vadd.f32 %v2797, %v2837
    %v2839 = vpop.f32.mrb[0].mxu0
    %v2840 = vpop.f32.mrb[0].mxu0
    %2841 = vdwg.mxu0
    %2842 = vmatprep.subr.bf16.mxu0 %v959
    %2843 = vmatpush1.bf16.msra.mxu0 %v958
    %2844 = vmatprep.subr.bf16.mxu0 %v967
    %2845 = vmatpush1.bf16.msra.mxu0 %v966
    %2846 = vmatprep.subr.bf16.mxu0 %v975
    %2847 = vmatpush1.bf16.msra.mxu0 %v974
    %2848 = vmatprep.subr.bf16.mxu0 %v983
    %2849 = vmatpush1.bf16.msra.mxu0 %v982
    %2850 = vmatprep.subr.bf16.mxu0 %v991
    %2851 = vmatpush1.bf16.msra.mxu0 %v990
    %2852 = vmatprep.subr.bf16.mxu0 %v999
    %2853 = vmatpush1.bf16.msra.mxu0 %v998
    %2854 = vmatprep.subr.bf16.mxu0 %v1007
    %2855 = vmatpush1.bf16.msra.mxu0 %v1006
    %2856 = vmatprep.subr.bf16.mxu0 %v1015
    %2857 = vmatpush1.bf16.msra.mxu0 %v1014
    %2858 = vmatprep.subr.bf16.mxu0 %v1023
    %2859 = vmatpush1.bf16.msra.mxu0 %v1022
    %2860 = vmatprep.subr.bf16.mxu0 %v1031
    %2861 = vmatpush1.bf16.msra.mxu0 %v1030
    %2862 = vmatprep.subr.bf16.mxu0 %v1039
    %2863 = vmatpush1.bf16.msra.mxu0 %v1038
    %2864 = vmatprep.subr.bf16.mxu0 %v1047
    %2865 = vmatpush1.bf16.msra.mxu0 %v1046
    %2866 = vmatprep.subr.bf16.mxu0 %v1055
    %2867 = vmatpush1.bf16.msra.mxu0 %v1054
    %2868 = vmatprep.subr.bf16.mxu0 %v1063
    %2869 = vmatpush1.bf16.msra.mxu0 %v1062
    %2870 = vmatprep.subr.bf16.mxu0 %v1071
    %2871 = vmatpush1.bf16.msra.mxu0 %v1070
    %2872 = vmatprep.subr.bf16.mxu0 %v1079
    %2873 = vmatpush1.bf16.msra.mxu0 %v1078
    %2874 = vmatprep.mubr.bf16.mxu0 %v1749
    %2875 = vmatmul.mubr.bf16.gmra.mrb[0].mxu0 %v1748
    %v2876 = vpop.f32.mrb[0].mxu0
    %v2877 = vadd.f32 %v2836, %v2876
    %v2878 = vpop.f32.mrb[0].mxu0
    %v2879 = vadd.f32 %v2838, %v2878
    %v2880 = vpop.f32.mrb[0].mxu0
    %v2881 = vpop.f32.mrb[0].mxu0
    %2882 = vdwg.mxu0
    %2883 = vmatprep.subr.bf16.mxu0 %v1087
    %2884 = vmatpush1.bf16.msra.mxu0 %v1086
    %2885 = vmatprep.subr.bf16.mxu0 %v1095
    %2886 = vmatpush1.bf16.msra.mxu0 %v1094
    %2887 = vmatprep.subr.bf16.mxu0 %v1103
    %2888 = vmatpush1.bf16.msra.mxu0 %v1102
    %2889 = vmatprep.subr.bf16.mxu0 %v1111
    %2890 = vmatpush1.bf16.msra.mxu0 %v1110
    %2891 = vmatprep.subr.bf16.mxu0 %v1119
    %2892 = vmatpush1.bf16.msra.mxu0 %v1118
    %2893 = vmatprep.subr.bf16.mxu0 %v1127
    %2894 = vmatpush1.bf16.msra.mxu0 %v1126
    %2895 = vmatprep.subr.bf16.mxu0 %v1135
    %2896 = vmatpush1.bf16.msra.mxu0 %v1134
    %2897 = vmatprep.subr.bf16.mxu0 %v1143
    %2898 = vmatpush1.bf16.msra.mxu0 %v1142
    %2899 = vmatprep.subr.bf16.mxu0 %v1151
    %2900 = vmatpush1.bf16.msra.mxu0 %v1150
    %2901 = vmatprep.subr.bf16.mxu0 %v1159
    %2902 = vmatpush1.bf16.msra.mxu0 %v1158
    %2903 = vmatprep.subr.bf16.mxu0 %v1167
    %2904 = vmatpush1.bf16.msra.mxu0 %v1166
    %2905 = vmatprep.subr.bf16.mxu0 %v1175
    %2906 = vmatpush1.bf16.msra.mxu0 %v1174
    %2907 = vmatprep.subr.bf16.mxu0 %v1183
    %2908 = vmatpush1.bf16.msra.mxu0 %v1182
    %2909 = vmatprep.subr.bf16.mxu0 %v1191
    %2910 = vmatpush1.bf16.msra.mxu0 %v1190
    %2911 = vmatprep.subr.bf16.mxu0 %v1199
    %2912 = vmatpush1.bf16.msra.mxu0 %v1198
    %2913 = vmatprep.subr.bf16.mxu0 %v1207
    %2914 = vmatpush1.bf16.msra.mxu0 %v1206
    %2915 = vmatprep.mubr.bf16.mxu0 %v1751
    %2916 = vmatmul.mubr.bf16.gmra.mrb[0].mxu0 %v1750
    %v2917 = vpop.f32.mrb[0].mxu0
    %v2918 = vadd.f32 %v2877, %v2917
    %v2919 = vpop.f32.mrb[0].mxu0
    %v2920 = vadd.f32 %v2879, %v2919
    %v2921 = vpop.f32.mrb[0].mxu0
    %v2922 = vpop.f32.mrb[0].mxu0
    %2923 = vdwg.mxu0
    %2924 = vmatprep.subr.bf16.mxu0 %v1215
    %2925 = vmatpush1.bf16.msra.mxu0 %v1214
    %2926 = vmatprep.subr.bf16.mxu0 %v1223
    %2927 = vmatpush1.bf16.msra.mxu0 %v1222
    %2928 = vmatprep.subr.bf16.mxu0 %v1231
    %2929 = vmatpush1.bf16.msra.mxu0 %v1230
    %2930 = vmatprep.subr.bf16.mxu0 %v1239
    %2931 = vmatpush1.bf16.msra.mxu0 %v1238
    %2932 = vmatprep.subr.bf16.mxu0 %v1247
    %2933 = vmatpush1.bf16.msra.mxu0 %v1246
    %2934 = vmatprep.subr.bf16.mxu0 %v1255
    %2935 = vmatpush1.bf16.msra.mxu0 %v1254
    %2936 = vmatprep.subr.bf16.mxu0 %v1263
    %2937 = vmatpush1.bf16.msra.mxu0 %v1262
    %2938 = vmatprep.subr.bf16.mxu0 %v1271
    %2939 = vmatpush1.bf16.msra.mxu0 %v1270
    %2940 = vmatprep.subr.bf16.mxu0 %v1279
    %2941 = vmatpush1.bf16.msra.mxu0 %v1278
    %2942 = vmatprep.subr.bf16.mxu0 %v1287
    %2943 = vmatpush1.bf16.msra.mxu0 %v1286
    %2944 = vmatprep.subr.bf16.mxu0 %v1295
    %2945 = vmatpush1.bf16.msra.mxu0 %v1294
    %2946 = vmatprep.subr.bf16.mxu0 %v1303
    %2947 = vmatpush1.bf16.msra.mxu0 %v1302
    %2948 = vmatprep.subr.bf16.mxu0 %v1311
    %2949 = vmatpush1.bf16.msra.mxu0 %v1310
    %2950 = vmatprep.subr.bf16.mxu0 %v1319
    %2951 = vmatpush1.bf16.msra.mxu0 %v1318
    %2952 = vmatprep.subr.bf16.mxu0 %v1327
    %2953 = vmatpush1.bf16.msra.mxu0 %v1326
    %2954 = vmatprep.subr.bf16.mxu0 %v1335
    %2955 = vmatpush1.bf16.msra.mxu0 %v1334
    %2956 = vmatprep.mubr.bf16.mxu0 %v1753
    %2957 = vmatmul.mubr.bf16.gmra.mrb[0].mxu0 %v1752
    %v2958 = vpop.f32.mrb[0].mxu0
    %v2959 = vadd.f32 %v2918, %v2958
    %v2960 = vpop.f32.mrb[0].mxu0
    %v2961 = vadd.f32 %v2920, %v2960
    %v2962 = vpop.f32.mrb[0].mxu0
    %v2963 = vpop.f32.mrb[0].mxu0
    %2964 = vdwg.mxu0
    %2965 = vmatprep.subr.bf16.mxu0 %v1343
    %2966 = vmatpush1.bf16.msra.mxu0 %v1342
    %2967 = vmatprep.subr.bf16.mxu0 %v1351
    %2968 = vmatpush1.bf16.msra.mxu0 %v1350
    %2969 = vmatprep.subr.bf16.mxu0 %v1359
    %2970 = vmatpush1.bf16.msra.mxu0 %v1358
    %2971 = vmatprep.subr.bf16.mxu0 %v1367
    %2972 = vmatpush1.bf16.msra.mxu0 %v1366
    %2973 = vmatprep.subr.bf16.mxu0 %v1375
    %2974 = vmatpush1.bf16.msra.mxu0 %v1374
    %2975 = vmatprep.subr.bf16.mxu0 %v1383
    %2976 = vmatpush1.bf16.msra.mxu0 %v1382
    %2977 = vmatprep.subr.bf16.mxu0 %v1391
    %2978 = vmatpush1.bf16.msra.mxu0 %v1390
    %2979 = vmatprep.subr.bf16.mxu0 %v1399
    %2980 = vmatpush1.bf16.msra.mxu0 %v1398
    %2981 = vmatprep.subr.bf16.mxu0 %v1407
    %2982 = vmatpush1.bf16.msra.mxu0 %v1406
    %2983 = vmatprep.subr.bf16.mxu0 %v1415
    %2984 = vmatpush1.bf16.msra.mxu0 %v1414
    %2985 = vmatprep.subr.bf16.mxu0 %v1423
    %2986 = vmatpush1.bf16.msra.mxu0 %v1422
    %2987 = vmatprep.subr.bf16.mxu0 %v1431
    %2988 = vmatpush1.bf16.msra.mxu0 %v1430
    %2989 = vmatprep.subr.bf16.mxu0 %v1439
    %2990 = vmatpush1.bf16.msra.mxu0 %v1438
    %2991 = vmatprep.subr.bf16.mxu0 %v1447
    %2992 = vmatpush1.bf16.msra.mxu0 %v1446
    %2993 = vmatprep.subr.bf16.mxu0 %v1455
    %2994 = vmatpush1.bf16.msra.mxu0 %v1454
    %2995 = vmatprep.subr.bf16.mxu0 %v1463
    %2996 = vmatpush1.bf16.msra.mxu0 %v1462
    %2997 = vmatprep.mubr.bf16.mxu0 %v1755
    %2998 = vmatmul.mubr.bf16.gmra.mrb[0].mxu0 %v1754
    %v2999 = vpop.f32.mrb[0].mxu0
    %v3000 = vadd.f32 %v2959, %v2999
    %v3001 = vpop.f32.mrb[0].mxu0
    %v3002 = vadd.f32 %v2961, %v3001
    %v3003 = vpop.f32.mrb[0].mxu0
    %v3004 = vpop.f32.mrb[0].mxu0
    %3005 = vdwg.mxu0
    %3006 = vmatprep.subr.bf16.mxu0 %v1471
    %3007 = vmatpush1.bf16.msra.mxu0 %v1470
    %3008 = vmatprep.subr.bf16.mxu0 %v1479
    %3009 = vmatpush1.bf16.msra.mxu0 %v1478
    %3010 = vmatprep.subr.bf16.mxu0 %v1487
    %3011 = vmatpush1.bf16.msra.mxu0 %v1486
    %3012 = vmatprep.subr.bf16.mxu0 %v1495
    %3013 = vmatpush1.bf16.msra.mxu0 %v1494
    %3014 = vmatprep.subr.bf16.mxu0 %v1503
    %3015 = vmatpush1.bf16.msra.mxu0 %v1502
    %3016 = vmatprep.subr.bf16.mxu0 %v1511
    %3017 = vmatpush1.bf16.msra.mxu0 %v1510
    %3018 = vmatprep.subr.bf16.mxu0 %v1519
    %3019 = vmatpush1.bf16.msra.mxu0 %v1518
    %3020 = vmatprep.subr.bf16.mxu0 %v1527
    %3021 = vmatpush1.bf16.msra.mxu0 %v1526
    %3022 = vmatprep.subr.bf16.mxu0 %v1535
    %3023 = vmatpush1.bf16.msra.mxu0 %v1534
    %3024 = vmatprep.subr.bf16.mxu0 %v1543
    %3025 = vmatpush1.bf16.msra.mxu0 %v1542
    %3026 = vmatprep.subr.bf16.mxu0 %v1551
    %3027 = vmatpush1.bf16.msra.mxu0 %v1550
    %3028 = vmatprep.subr.bf16.mxu0 %v1559
    %3029 = vmatpush1.bf16.msra.mxu0 %v1558
    %3030 = vmatprep.subr.bf16.mxu0 %v1567
    %3031 = vmatpush1.bf16.msra.mxu0 %v1566
    %3032 = vmatprep.subr.bf16.mxu0 %v1575
    %3033 = vmatpush1.bf16.msra.mxu0 %v1574
    %3034 = vmatprep.subr.bf16.mxu0 %v1583
    %3035 = vmatpush1.bf16.msra.mxu0 %v1582
    %3036 = vmatprep.subr.bf16.mxu0 %v1591
    %3037 = vmatpush1.bf16.msra.mxu0 %v1590
    %3038 = vmatprep.mubr.bf16.mxu0 %v1757
    %3039 = vmatmul.mubr.bf16.gmra.mrb[0].mxu0 %v1756
    %v3040 = vpop.f32.mrb[0].mxu0
    %v3041 = vadd.f32 %v3000, %v3040
    %v3042 = vpop.f32.mrb[0].mxu0
    %v3043 = vadd.f32 %v3002, %v3042
    %v3044 = vpop.f32.mrb[0].mxu0
    %v3045 = vpop.f32.mrb[0].mxu0
    %3046 = vdwg.mxu0
    %3047 = vmatprep.subr.bf16.mxu0 %v1599
    %3048 = vmatpush1.bf16.msra.mxu0 %v1598
    %3049 = vmatprep.subr.bf16.mxu0 %v1607
    %3050 = vmatpush1.bf16.msra.mxu0 %v1606
    %3051 = vmatprep.subr.bf16.mxu0 %v1615
    %3052 = vmatpush1.bf16.msra.mxu0 %v1614
    %3053 = vmatprep.subr.bf16.mxu0 %v1623
    %3054 = vmatpush1.bf16.msra.mxu0 %v1622
    %3055 = vmatprep.subr.bf16.mxu0 %v1631
    %3056 = vmatpush1.bf16.msra.mxu0 %v1630
    %3057 = vmatprep.subr.bf16.mxu0 %v1639
    %3058 = vmatpush1.bf16.msra.mxu0 %v1638
    %3059 = vmatprep.subr.bf16.mxu0 %v1647
    %3060 = vmatpush1.bf16.msra.mxu0 %v1646
    %3061 = vmatprep.subr.bf16.mxu0 %v1655
    %3062 = vmatpush1.bf16.msra.mxu0 %v1654
    %3063 = vmatprep.subr.bf16.mxu0 %v1663
    %3064 = vmatpush1.bf16.msra.mxu0 %v1662
    %3065 = vmatprep.subr.bf16.mxu0 %v1671
    %3066 = vmatpush1.bf16.msra.mxu0 %v1670
    %3067 = vmatprep.subr.bf16.mxu0 %v1679
    %3068 = vmatpush1.bf16.msra.mxu0 %v1678
    %3069 = vmatprep.subr.bf16.mxu0 %v1687
    %3070 = vmatpush1.bf16.msra.mxu0 %v1686
    %3071 = vmatprep.subr.bf16.mxu0 %v1695
    %3072 = vmatpush1.bf16.msra.mxu0 %v1694
    %3073 = vmatprep.subr.bf16.mxu0 %v1703
    %3074 = vmatpush1.bf16.msra.mxu0 %v1702
    %3075 = vmatprep.subr.bf16.mxu0 %v1711
    %3076 = vmatpush1.bf16.msra.mxu0 %v1710
    %3077 = vmatprep.subr.bf16.mxu0 %v1719
    %3078 = vmatpush1.bf16.msra.mxu0 %v1718
    %3079 = vmatprep.mubr.bf16.mxu0 %v1759
    %3080 = vmatmul.mubr.bf16.gmra.mrb[0].mxu0 %v1758
    %v3081 = vpop.f32.mrb[0].mxu0
    %v3082 = vadd.f32 %v3041, %v3081
    %v3083 = vpop.f32.mrb[0].mxu0
    %v3084 = vadd.f32 %v3043, %v3083
    %v3085 = vpop.f32.mrb[0].mxu0
    %v3086 = vpop.f32.mrb[0].mxu0
    %3087 = vdwg.mxu0
    %v3088 = vld [vmem:[#allocation7] sm:$0xff]
    %v3089 = vld [vmem:[#allocation8] sm:$0xff]
    %v3090 = vrot.slane %v2098, 4
    %v3091 = vadd.f32 %v2098, %v3090
    %v3092 = vrot.slane %v3091, 2
    %v3093 = vadd.f32 %v3091, %v3092
    %v3094 = vrot.slane %v3093, 1
    %v3095 = vadd.f32 %v3093, %v3094
    %v3096 = vrot.slane %v2100, 4
    %v3097 = vadd.f32 %v2100, %v3096
    %v3098 = vrot.slane %v3097, 2
    %v3099 = vadd.f32 %v3097, %v3098
    %v3100 = vrot.slane %v3099, 1
    %v3101 = vadd.f32 %v3099, %v3100
    %v3102 = vrot.slane %v2426, 4
    %v3103 = vadd.f32 %v2426, %v3102
    %v3104 = vrot.slane %v3103, 2
    %v3105 = vadd.f32 %v3103, %v3104
    %v3106 = vrot.slane %v3105, 1
    %v3107 = vadd.f32 %v3105, %v3106
    %v3108 = vrot.slane %v2428, 4
    %v3109 = vadd.f32 %v2428, %v3108
    %v3110 = vrot.slane %v3109, 2
    %v3111 = vadd.f32 %v3109, %v3110
    %v3112 = vrot.slane %v3111, 1
    %v3113 = vadd.f32 %v3111, %v3112
    %v3114 = vrot.slane %v2754, 4
    %v3115 = vadd.f32 %v2754, %v3114
    %v3116 = vrot.slane %v3115, 2
    %v3117 = vadd.f32 %v3115, %v3116
    %v3118 = vrot.slane %v3117, 1
    %v3119 = vadd.f32 %v3117, %v3118
    %v3120 = vrot.slane %v2756, 4
    %v3121 = vadd.f32 %v2756, %v3120
    %v3122 = vrot.slane %v3121, 2
    %v3123 = vadd.f32 %v3121, %v3122
    %v3124 = vrot.slane %v3123, 1
    %v3125 = vadd.f32 %v3123, %v3124
    %v3126 = vrot.slane %v3082, 4
    %v3127 = vadd.f32 %v3082, %v3126
    %v3128 = vrot.slane %v3127, 2
    %v3129 = vadd.f32 %v3127, %v3128
    %v3130 = vrot.slane %v3129, 1
    %v3131 = vadd.f32 %v3129, %v3130
    %v3132 = vrot.slane %v3084, 4
    %v3133 = vadd.f32 %v3084, %v3132
    %v3134 = vrot.slane %v3133, 2
    %v3135 = vadd.f32 %v3133, %v3134
    %v3136 = vrot.slane %v3135, 1
    %v3137 = vadd.f32 %v3135, %v3136
    %v3138 = vrcp.pop 8.0
    %v3139 = vmul.f32 %v3095, %v3138
    %v3140 = vmul.f32 %v3101, %v3138
    %v3141 = vmul.f32 %v3107, %v3138
    %v3142 = vmul.f32 %v3113, %v3138
    %v3143 = vmul.f32 %v3119, %v3138
    %v3144 = vmul.f32 %v3125, %v3138
    %v3145 = vmul.f32 %v3131, %v3138
    %v3146 = vmul.f32 %v3137, %v3138
    %v3147 = vsub.f32 %v2098, %v3139
    %v3148 = vsub.f32 %v2100, %v3140
    %v3149 = vsub.f32 %v2426, %v3141
    %v3150 = vsub.f32 %v2428, %v3142
    %v3151 = vsub.f32 %v2754, %v3143
    %v3152 = vsub.f32 %v2756, %v3144
    %v3153 = vsub.f32 %v3082, %v3145
    %v3154 = vsub.f32 %v3084, %v3146
    %v3155 = vmul.f32 %v3147, %v3147
    %v3156 = vmul.f32 %v3148, %v3148
    %v3157 = vmul.f32 %v3149, %v3149
    %v3158 = vmul.f32 %v3150, %v3150
    %v3159 = vmul.f32 %v3151, %v3151
    %v3160 = vmul.f32 %v3152, %v3152
    %v3161 = vmul.f32 %v3153, %v3153
    %v3162 = vmul.f32 %v3154, %v3154
    %v3163 = vrot.slane %v3155, 4
    %v3164 = vadd.f32 %v3155, %v3163
    %v3165 = vrot.slane %v3164, 2
    %v3166 = vadd.f32 %v3164, %v3165
    %v3167 = vrot.slane %v3166, 1
    %v3168 = vadd.f32 %v3166, %v3167
    %v3169 = vrot.slane %v3156, 4
    %v3170 = vadd.f32 %v3156, %v3169
    %v3171 = vrot.slane %v3170, 2
    %v3172 = vadd.f32 %v3170, %v3171
    %v3173 = vrot.slane %v3172, 1
    %v3174 = vadd.f32 %v3172, %v3173
    %v3175 = vrot.slane %v3157, 4
    %v3176 = vadd.f32 %v3157, %v3175
    %v3177 = vrot.slane %v3176, 2
    %v3178 = vadd.f32 %v3176, %v3177
    %v3179 = vrot.slane %v3178, 1
    %v3180 = vadd.f32 %v3178, %v3179
    %v3181 = vrot.slane %v3158, 4
    %v3182 = vadd.f32 %v3158, %v3181
    %v3183 = vrot.slane %v3182, 2
    %v3184 = vadd.f32 %v3182, %v3183
    %v3185 = vrot.slane %v3184, 1
    %v3186 = vadd.f32 %v3184, %v3185
    %v3187 = vrot.slane %v3159, 4
    %v3188 = vadd.f32 %v3159, %v3187
    %v3189 = vrot.slane %v3188, 2
    %v3190 = vadd.f32 %v3188, %v3189
    %v3191 = vrot.slane %v3190, 1
    %v3192 = vadd.f32 %v3190, %v3191
    %v3193 = vrot.slane %v3160, 4
    %v3194 = vadd.f32 %v3160, %v3193
    %v3195 = vrot.slane %v3194, 2
    %v3196 = vadd.f32 %v3194, %v3195
    %v3197 = vrot.slane %v3196, 1
    %v3198 = vadd.f32 %v3196, %v3197
    %v3199 = vrot.slane %v3161, 4
    %v3200 = vadd.f32 %v3161, %v3199
    %v3201 = vrot.slane %v3200, 2
    %v3202 = vadd.f32 %v3200, %v3201
    %v3203 = vrot.slane %v3202, 1
    %v3204 = vadd.f32 %v3202, %v3203
    %v3205 = vrot.slane %v3162, 4
    %v3206 = vadd.f32 %v3162, %v3205
    %v3207 = vrot.slane %v3206, 2
    %v3208 = vadd.f32 %v3206, %v3207
    %v3209 = vrot.slane %v3208, 1
    %v3210 = vadd.f32 %v3208, %v3209
    %v3211 = vmul.f32 %v3168, %v3138
    %v3212 = vmul.f32 %v3174, %v3138
    %v3213 = vmul.f32 %v3180, %v3138
    %v3214 = vmul.f32 %v3186, %v3138
    %v3215 = vmul.f32 %v3192, %v3138
    %v3216 = vmul.f32 %v3198, %v3138
    %v3217 = vmul.f32 %v3204, %v3138
    %v3218 = vmul.f32 %v3210, %v3138
    %v3219 = vadd.f32 %v3211, 1e-05
    %v3220 = vadd.f32 %v3212, 1e-05
    %v3221 = vadd.f32 %v3213, 1e-05
    %v3222 = vadd.f32 %v3214, 1e-05
    %v3223 = vadd.f32 %v3215, 1e-05
    %v3224 = vadd.f32 %v3216, 1e-05
    %v3225 = vadd.f32 %v3217, 1e-05
    %v3226 = vadd.f32 %v3218, 1e-05
    %v3227 = vrsqrt.pop %v3219
    %v3228 = vrsqrt.pop %v3220
    %v3229 = vrsqrt.pop %v3221
    %v3230 = vrsqrt.pop %v3222
    %v3231 = vrsqrt.pop %v3223
    %v3232 = vrsqrt.pop %v3224
    %v3233 = vrsqrt.pop %v3225
    %v3234 = vrsqrt.pop %v3226
    %v3243 = vcombine.low %v3227, %v3228
    %v3244 = vcombine.low %v3229, %v3230
    %v3245 = vcombine.low %v3231, %v3232
    %v3246 = vcombine.low %v3233, %v3234
    %v3248 = vunpack.c.l.s4 1966171168
    %v3249 = vunpack.c.0.s8 %v3248
    %v3250 = vlaneseq
    %v3251 = vshrl.u32 %v3250, 7
    %v3252 = vsub.s32 %v3249, %v3251
    %v3253 = vrot.slane %v3243, %v3252
    %v3255 = vunpack.c.l.s4 1966171168
    %v3256 = vunpack.c.0.s8 %v3255
    %v3257 = vlaneseq
    %v3258 = vshrl.u32 %v3257, 7
    %v3259 = vsub.s32 %v3256, %v3258
    %v3260 = vrot.slane %v3244, %v3259
    %v3262 = vunpack.c.l.s4 1966171168
    %v3263 = vunpack.c.0.s8 %v3262
    %v3264 = vlaneseq
    %v3265 = vshrl.u32 %v3264, 7
    %v3266 = vsub.s32 %v3263, %v3265
    %v3267 = vrot.slane %v3245, %v3266
    %v3269 = vunpack.c.l.s4 1966171168
    %v3270 = vunpack.c.0.s8 %v3269
    %v3271 = vlaneseq
    %v3272 = vshrl.u32 %v3271, 7
    %v3273 = vsub.s32 %v3270, %v3272
    %v3274 = vrot.slane %v3246, %v3273
    %v3275 = vcombine.low %v3253, %v3260
    %v3276 = vcombine.low %v3267, %v3274
    %v3278 = vunpack.c.l.s4 1966171168
    %v3279 = vunpack.c.0.s8 %v3278
    %v3280 = vlaneseq
    %v3281 = vshrl.u32 %v3280, 7
    %v3282 = vsub.s32 %v3279, %v3281
    %v3283 = vrot.slane %v3275, %v3282
    %v3285 = vunpack.c.l.s4 1966171168
    %v3286 = vunpack.c.0.s8 %v3285
    %v3287 = vlaneseq
    %v3288 = vshrl.u32 %v3287, 7
    %v3289 = vsub.s32 %v3286, %v3288
    %v3290 = vrot.slane %v3276, %v3289
    %v3291 = vcombine.low %v3283, %v3290
    %v3293 = vmul.f32 %v3088, %v3291
    %v3295 = vlaneseq
    %v3296 = vshrl.u32 %v3295, 7
    %v3297 = vsub.s32 0, %v3296
    %v3298 = vrot.slane %v3293, %v3297
    %v3299 = vlaneseq
    %v3300 = vshrl.u32 %v3299, 7
    %v3301 = vsub.s32 1, %v3300
    %v3302 = vrot.slane %v3293, %v3301
    %v3303 = vlaneseq
    %v3304 = vshrl.u32 %v3303, 7
    %v3305 = vsub.s32 2, %v3304
    %v3306 = vrot.slane %v3293, %v3305
    %v3307 = vlaneseq
    %v3308 = vshrl.u32 %v3307, 7
    %v3309 = vsub.s32 3, %v3308
    %v3310 = vrot.slane %v3293, %v3309
    %v3311 = vlaneseq
    %v3312 = vshrl.u32 %v3311, 7
    %v3313 = vsub.s32 4, %v3312
    %v3314 = vrot.slane %v3293, %v3313
    %v3315 = vlaneseq
    %v3316 = vshrl.u32 %v3315, 7
    %v3317 = vsub.s32 5, %v3316
    %v3318 = vrot.slane %v3293, %v3317
    %v3319 = vlaneseq
    %v3320 = vshrl.u32 %v3319, 7
    %v3321 = vsub.s32 6, %v3320
    %v3322 = vrot.slane %v3293, %v3321
    %v3323 = vlaneseq
    %v3324 = vshrl.u32 %v3323, 7
    %v3325 = vsub.s32 7, %v3324
    %v3326 = vrot.slane %v3293, %v3325
    %v3335 = vmul.f32 %v3147, %v3298
    %v3336 = vmul.f32 %v3148, %v3302
    %v3337 = vmul.f32 %v3149, %v3306
    %v3338 = vmul.f32 %v3150, %v3310
    %v3339 = vmul.f32 %v3151, %v3314
    %v3340 = vmul.f32 %v3152, %v3318
    %v3341 = vmul.f32 %v3153, %v3322
    %v3342 = vmul.f32 %v3154, %v3326
    %v3344 = vlaneseq
    %v3345 = vshrl.u32 %v3344, 7
    %v3346 = vsub.s32 0, %v3345
    %v3347 = vrot.slane %v3089, %v3346
    %v3348 = vlaneseq
    %v3349 = vshrl.u32 %v3348, 7
    %v3350 = vsub.s32 1, %v3349
    %v3351 = vrot.slane %v3089, %v3350
    %v3352 = vlaneseq
    %v3353 = vshrl.u32 %v3352, 7
    %v3354 = vsub.s32 2, %v3353
    %v3355 = vrot.slane %v3089, %v3354
    %v3356 = vlaneseq
    %v3357 = vshrl.u32 %v3356, 7
    %v3358 = vsub.s32 3, %v3357
    %v3359 = vrot.slane %v3089, %v3358
    %v3360 = vlaneseq
    %v3361 = vshrl.u32 %v3360, 7
    %v3362 = vsub.s32 4, %v3361
    %v3363 = vrot.slane %v3089, %v3362
    %v3364 = vlaneseq
    %v3365 = vshrl.u32 %v3364, 7
    %v3366 = vsub.s32 5, %v3365
    %v3367 = vrot.slane %v3089, %v3366
    %v3368 = vlaneseq
    %v3369 = vshrl.u32 %v3368, 7
    %v3370 = vsub.s32 6, %v3369
    %v3371 = vrot.slane %v3089, %v3370
    %v3372 = vlaneseq
    %v3373 = vshrl.u32 %v3372, 7
    %v3374 = vsub.s32 7, %v3373
    %v3375 = vrot.slane %v3089, %v3374
    %v3384 = vadd.f32 %v3335, %v3347
    %v3385 = vadd.f32 %v3336, %v3351
    %v3386 = vadd.f32 %v3337, %v3355
    %v3387 = vadd.f32 %v3338, %v3359
    %v3388 = vadd.f32 %v3339, %v3363
    %v3389 = vadd.f32 %v3340, %v3367
    %v3390 = vadd.f32 %v3341, %v3371
    %v3391 = vadd.f32 %v3342, %v3375
    %vm3392 = vcmp.gt.f32.partialorder %v3384, 0.0
    %vm3393 = vcmp.gt.f32.partialorder %v3385, 0.0
    %vm3394 = vcmp.gt.f32.partialorder %v3386, 0.0
    %vm3395 = vcmp.gt.f32.partialorder %v3387, 0.0
    %vm3396 = vcmp.gt.f32.partialorder %v3388, 0.0
    %vm3397 = vcmp.gt.f32.partialorder %v3389, 0.0
    %vm3398 = vcmp.gt.f32.partialorder %v3390, 0.0
    %vm3399 = vcmp.gt.f32.partialorder %v3391, 0.0
    %v3400 = vmul.f32 %v3384, 0.01
    %v3401 = vmul.f32 %v3385, 0.01
    %v3402 = vmul.f32 %v3386, 0.01
    %v3403 = vmul.f32 %v3387, 0.01
    %v3404 = vmul.f32 %v3388, 0.01
    %v3405 = vmul.f32 %v3389, 0.01
    %v3406 = vmul.f32 %v3390, 0.01
    %v3407 = vmul.f32 %v3391, 0.01
    %v3408 = vsel %vm3392, %v3384, %v3400
    %v3409 = vsel %vm3393, %v3385, %v3401
    %v3410 = vsel %vm3394, %v3386, %v3402
    %v3411 = vsel %vm3395, %v3387, %v3403
    %v3412 = vsel %vm3396, %v3388, %v3404
    %v3413 = vsel %vm3397, %v3389, %v3405
    %v3414 = vsel %vm3398, %v3390, %v3406
    %v3415 = vsel %vm3399, %v3391, %v3407
    %v3416 = vpack.c.bf16 %v3408, %v3408
    %v3417 = vpack.c.bf16 %v3409, %v3409
    %v3418 = vpack.c.bf16 %v3410, %v3410
    %v3419 = vpack.c.bf16 %v3411, %v3411
    %v3420 = vpack.c.bf16 %v3412, %v3412
    %v3421 = vpack.c.bf16 %v3413, %v3413
    %v3422 = vpack.c.bf16 %v3414, %v3414
    %v3423 = vpack.c.bf16 %v3415, %v3415
    %v3424 = vld [vmem:[#allocation10] sm:$0xff]
    %v3425 = vld [vmem:[#allocation10 + $0x8] sm:$0xff]
    %v3426 = vld [vmem:[#allocation10 + $0x10] sm:$0xff]
    %v3427 = vld [vmem:[#allocation10 + $0x18] sm:$0xff]
    %v3428 = vld [vmem:[#allocation10 + $0x20] sm:$0xff]
    %v3429 = vld [vmem:[#allocation10 + $0x28] sm:$0xff]
    %v3430 = vld [vmem:[#allocation10 + $0x30] sm:$0xff]
    %v3431 = vld [vmem:[#allocation10 + $0x38] sm:$0xff]
    %v3432 = vld [vmem:[#allocation10 + $0x40] sm:$0xff]
    %v3433 = vld [vmem:[#allocation10 + $0x48] sm:$0xff]
    %v3434 = vld [vmem:[#allocation10 + $0x50] sm:$0xff]
    %v3435 = vld [vmem:[#allocation10 + $0x58] sm:$0xff]
    %v3436 = vld [vmem:[#allocation10 + $0x60] sm:$0xff]
    %v3437 = vld [vmem:[#allocation10 + $0x68] sm:$0xff]
    %v3438 = vld [vmem:[#allocation10 + $0x70] sm:$0xff]
    %v3439 = vld [vmem:[#allocation10 + $0x78] sm:$0xff]
    %v3440 = vld [vmem:[#allocation10 + $0x80] sm:$0xff]
    %v3441 = vld [vmem:[#allocation10 + $0x88] sm:$0xff]
    %v3442 = vld [vmem:[#allocation10 + $0x90] sm:$0xff]
    %v3443 = vld [vmem:[#allocation10 + $0x98] sm:$0xff]
    %v3444 = vld [vmem:[#allocation10 + $0xa0] sm:$0xff]
    %v3445 = vld [vmem:[#allocation10 + $0xa8] sm:$0xff]
    %v3446 = vld [vmem:[#allocation10 + $0xb0] sm:$0xff]
    %v3447 = vld [vmem:[#allocation10 + $0xb8] sm:$0xff]
    %v3448 = vld [vmem:[#allocation10 + $0xc0] sm:$0xff]
    %v3449 = vld [vmem:[#allocation10 + $0xc8] sm:$0xff]
    %v3450 = vld [vmem:[#allocation10 + $0xd0] sm:$0xff]
    %v3451 = vld [vmem:[#allocation10 + $0xd8] sm:$0xff]
    %v3452 = vld [vmem:[#allocation10 + $0xe0] sm:$0xff]
    %v3453 = vld [vmem:[#allocation10 + $0xe8] sm:$0xff]
    %v3454 = vld [vmem:[#allocation10 + $0xf0] sm:$0xff]
    %v3455 = vld [vmem:[#allocation10 + $0xf8] sm:$0xff]
    %v3456 = vld [vmem:[#allocation10 + $0x100] sm:$0xff]
    %v3457 = vld [vmem:[#allocation10 + $0x108] sm:$0xff]
    %v3458 = vld [vmem:[#allocation10 + $0x110] sm:$0xff]
    %v3459 = vld [vmem:[#allocation10 + $0x118] sm:$0xff]
    %v3460 = vld [vmem:[#allocation10 + $0x120] sm:$0xff]
    %v3461 = vld [vmem:[#allocation10 + $0x128] sm:$0xff]
    %v3462 = vld [vmem:[#allocation10 + $0x130] sm:$0xff]
    %v3463 = vld [vmem:[#allocation10 + $0x138] sm:$0xff]
    %v3464 = vld [vmem:[#allocation10 + $0x140] sm:$0xff]
    %v3465 = vld [vmem:[#allocation10 + $0x148] sm:$0xff]
    %v3466 = vld [vmem:[#allocation10 + $0x150] sm:$0xff]
    %v3467 = vld [vmem:[#allocation10 + $0x158] sm:$0xff]
    %v3468 = vld [vmem:[#allocation10 + $0x160] sm:$0xff]
    %v3469 = vld [vmem:[#allocation10 + $0x168] sm:$0xff]
    %v3470 = vld [vmem:[#allocation10 + $0x170] sm:$0xff]
    %v3471 = vld [vmem:[#allocation10 + $0x178] sm:$0xff]
    %v3472 = vld [vmem:[#allocation10 + $0x180] sm:$0xff]
    %v3473 = vld [vmem:[#allocation10 + $0x188] sm:$0xff]
    %v3474 = vld [vmem:[#allocation10 + $0x190] sm:$0xff]
    %v3475 = vld [vmem:[#allocation10 + $0x198] sm:$0xff]
    %v3476 = vld [vmem:[#allocation10 + $0x1a0] sm:$0xff]
    %v3477 = vld [vmem:[#allocation10 + $0x1a8] sm:$0xff]
    %v3478 = vld [vmem:[#allocation10 + $0x1b0] sm:$0xff]
    %v3479 = vld [vmem:[#allocation10 + $0x1b8] sm:$0xff]
    %v3480 = vld [vmem:[#allocation10 + $0x1c0] sm:$0xff]
    %v3481 = vld [vmem:[#allocation10 + $0x1c8] sm:$0xff]
    %v3482 = vld [vmem:[#allocation10 + $0x1d0] sm:$0xff]
    %v3483 = vld [vmem:[#allocation10 + $0x1d8] sm:$0xff]
    %v3484 = vld [vmem:[#allocation10 + $0x1e0] sm:$0xff]
    %v3485 = vld [vmem:[#allocation10 + $0x1e8] sm:$0xff]
    %v3486 = vld [vmem:[#allocation10 + $0x1f0] sm:$0xff]
    %v3487 = vld [vmem:[#allocation10 + $0x1f8] sm:$0xff]
    %v3488 = vld [vmem:[#allocation10 + $0x200] sm:$0xff]
    %v3489 = vld [vmem:[#allocation10 + $0x208] sm:$0xff]
    %v3490 = vld [vmem:[#allocation10 + $0x210] sm:$0xff]
    %v3491 = vld [vmem:[#allocation10 + $0x218] sm:$0xff]
    %v3492 = vld [vmem:[#allocation10 + $0x220] sm:$0xff]
    %v3493 = vld [vmem:[#allocation10 + $0x228] sm:$0xff]
    %v3494 = vld [vmem:[#allocation10 + $0x230] sm:$0xff]
    %v3495 = vld [vmem:[#allocation10 + $0x238] sm:$0xff]
    %v3496 = vld [vmem:[#allocation10 + $0x240] sm:$0xff]
    %v3497 = vld [vmem:[#allocation10 + $0x248] sm:$0xff]
    %v3498 = vld [vmem:[#allocation10 + $0x250] sm:$0xff]
    %v3499 = vld [vmem:[#allocation10 + $0x258] sm:$0xff]
    %v3500 = vld [vmem:[#allocation10 + $0x260] sm:$0xff]
    %v3501 = vld [vmem:[#allocation10 + $0x268] sm:$0xff]
    %v3502 = vld [vmem:[#allocation10 + $0x270] sm:$0xff]
    %v3503 = vld [vmem:[#allocation10 + $0x278] sm:$0xff]
    %v3504 = vld [vmem:[#allocation10 + $0x280] sm:$0xff]
    %v3505 = vld [vmem:[#allocation10 + $0x288] sm:$0xff]
    %v3506 = vld [vmem:[#allocation10 + $0x290] sm:$0xff]
    %v3507 = vld [vmem:[#allocation10 + $0x298] sm:$0xff]
    %v3508 = vld [vmem:[#allocation10 + $0x2a0] sm:$0xff]
    %v3509 = vld [vmem:[#allocation10 + $0x2a8] sm:$0xff]
    %v3510 = vld [vmem:[#allocation10 + $0x2b0] sm:$0xff]
    %v3511 = vld [vmem:[#allocation10 + $0x2b8] sm:$0xff]
    %v3512 = vld [vmem:[#allocation10 + $0x2c0] sm:$0xff]
    %v3513 = vld [vmem:[#allocation10 + $0x2c8] sm:$0xff]
    %v3514 = vld [vmem:[#allocation10 + $0x2d0] sm:$0xff]
    %v3515 = vld [vmem:[#allocation10 + $0x2d8] sm:$0xff]
    %v3516 = vld [vmem:[#allocation10 + $0x2e0] sm:$0xff]
    %v3517 = vld [vmem:[#allocation10 + $0x2e8] sm:$0xff]
    %v3518 = vld [vmem:[#allocation10 + $0x2f0] sm:$0xff]
    %v3519 = vld [vmem:[#allocation10 + $0x2f8] sm:$0xff]
    %v3520 = vld [vmem:[#allocation10 + $0x300] sm:$0xff]
    %v3521 = vld [vmem:[#allocation10 + $0x308] sm:$0xff]
    %v3522 = vld [vmem:[#allocation10 + $0x310] sm:$0xff]
    %v3523 = vld [vmem:[#allocation10 + $0x318] sm:$0xff]
    %v3524 = vld [vmem:[#allocation10 + $0x320] sm:$0xff]
    %v3525 = vld [vmem:[#allocation10 + $0x328] sm:$0xff]
    %v3526 = vld [vmem:[#allocation10 + $0x330] sm:$0xff]
    %v3527 = vld [vmem:[#allocation10 + $0x338] sm:$0xff]
    %v3528 = vld [vmem:[#allocation10 + $0x340] sm:$0xff]
    %v3529 = vld [vmem:[#allocation10 + $0x348] sm:$0xff]
    %v3530 = vld [vmem:[#allocation10 + $0x350] sm:$0xff]
    %v3531 = vld [vmem:[#allocation10 + $0x358] sm:$0xff]
    %v3532 = vld [vmem:[#allocation10 + $0x360] sm:$0xff]
    %v3533 = vld [vmem:[#allocation10 + $0x368] sm:$0xff]
    %v3534 = vld [vmem:[#allocation10 + $0x370] sm:$0xff]
    %v3535 = vld [vmem:[#allocation10 + $0x378] sm:$0xff]
    %v3536 = vld [vmem:[#allocation10 + $0x380] sm:$0xff]
    %v3537 = vld [vmem:[#allocation10 + $0x388] sm:$0xff]
    %v3538 = vld [vmem:[#allocation10 + $0x390] sm:$0xff]
    %v3539 = vld [vmem:[#allocation10 + $0x398] sm:$0xff]
    %v3540 = vld [vmem:[#allocation10 + $0x3a0] sm:$0xff]
    %v3541 = vld [vmem:[#allocation10 + $0x3a8] sm:$0xff]
    %v3542 = vld [vmem:[#allocation10 + $0x3b0] sm:$0xff]
    %v3543 = vld [vmem:[#allocation10 + $0x3b8] sm:$0xff]
    %v3544 = vld [vmem:[#allocation10 + $0x3c0] sm:$0xff]
    %v3545 = vld [vmem:[#allocation10 + $0x3c8] sm:$0xff]
    %v3546 = vld [vmem:[#allocation10 + $0x3d0] sm:$0xff]
    %v3547 = vld [vmem:[#allocation10 + $0x3d8] sm:$0xff]
    %v3548 = vld [vmem:[#allocation10 + $0x3e0] sm:$0xff]
    %v3549 = vld [vmem:[#allocation10 + $0x3e8] sm:$0xff]
    %v3550 = vld [vmem:[#allocation10 + $0x3f0] sm:$0xff]
    %v3551 = vld [vmem:[#allocation10 + $0x3f8] sm:$0xff]
    %v3552 = vunpack.c.l.s8.bf16 %v3424
    %v3553 = vunpack.c.l.s8.bf16 %v3425
    %v3554 = vunpack.c.l.s8.bf16 %v3426
    %v3555 = vunpack.c.l.s8.bf16 %v3427
    %v3556 = vunpack.c.h.s8.bf16 %v3424
    %v3557 = vunpack.c.h.s8.bf16 %v3425
    %v3558 = vunpack.c.h.s8.bf16 %v3426
    %v3559 = vunpack.c.h.s8.bf16 %v3427
    %v3560 = vunpack.c.l.s8.bf16 %v3428
    %v3561 = vunpack.c.l.s8.bf16 %v3429
    %v3562 = vunpack.c.l.s8.bf16 %v3430
    %v3563 = vunpack.c.l.s8.bf16 %v3431
    %v3564 = vunpack.c.h.s8.bf16 %v3428
    %v3565 = vunpack.c.h.s8.bf16 %v3429
    %v3566 = vunpack.c.h.s8.bf16 %v3430
    %v3567 = vunpack.c.h.s8.bf16 %v3431
    %v3568 = vunpack.c.l.s8.bf16 %v3432
    %v3569 = vunpack.c.l.s8.bf16 %v3433
    %v3570 = vunpack.c.l.s8.bf16 %v3434
    %v3571 = vunpack.c.l.s8.bf16 %v3435
    %v3572 = vunpack.c.h.s8.bf16 %v3432
    %v3573 = vunpack.c.h.s8.bf16 %v3433
    %v3574 = vunpack.c.h.s8.bf16 %v3434
    %v3575 = vunpack.c.h.s8.bf16 %v3435
    %v3576 = vunpack.c.l.s8.bf16 %v3436
    %v3577 = vunpack.c.l.s8.bf16 %v3437
    %v3578 = vunpack.c.l.s8.bf16 %v3438
    %v3579 = vunpack.c.l.s8.bf16 %v3439
    %v3580 = vunpack.c.h.s8.bf16 %v3436
    %v3581 = vunpack.c.h.s8.bf16 %v3437
    %v3582 = vunpack.c.h.s8.bf16 %v3438
    %v3583 = vunpack.c.h.s8.bf16 %v3439
    %v3584 = vunpack.c.l.s8.bf16 %v3440
    %v3585 = vunpack.c.l.s8.bf16 %v3441
    %v3586 = vunpack.c.l.s8.bf16 %v3442
    %v3587 = vunpack.c.l.s8.bf16 %v3443
    %v3588 = vunpack.c.h.s8.bf16 %v3440
    %v3589 = vunpack.c.h.s8.bf16 %v3441
    %v3590 = vunpack.c.h.s8.bf16 %v3442
    %v3591 = vunpack.c.h.s8.bf16 %v3443
    %v3592 = vunpack.c.l.s8.bf16 %v3444
    %v3593 = vunpack.c.l.s8.bf16 %v3445
    %v3594 = vunpack.c.l.s8.bf16 %v3446
    %v3595 = vunpack.c.l.s8.bf16 %v3447
    %v3596 = vunpack.c.h.s8.bf16 %v3444
    %v3597 = vunpack.c.h.s8.bf16 %v3445
    %v3598 = vunpack.c.h.s8.bf16 %v3446
    %v3599 = vunpack.c.h.s8.bf16 %v3447
    %v3600 = vunpack.c.l.s8.bf16 %v3448
    %v3601 = vunpack.c.l.s8.bf16 %v3449
    %v3602 = vunpack.c.l.s8.bf16 %v3450
    %v3603 = vunpack.c.l.s8.bf16 %v3451
    %v3604 = vunpack.c.h.s8.bf16 %v3448
    %v3605 = vunpack.c.h.s8.bf16 %v3449
    %v3606 = vunpack.c.h.s8.bf16 %v3450
    %v3607 = vunpack.c.h.s8.bf16 %v3451
    %v3608 = vunpack.c.l.s8.bf16 %v3452
    %v3609 = vunpack.c.l.s8.bf16 %v3453
    %v3610 = vunpack.c.l.s8.bf16 %v3454
    %v3611 = vunpack.c.l.s8.bf16 %v3455
    %v3612 = vunpack.c.h.s8.bf16 %v3452
    %v3613 = vunpack.c.h.s8.bf16 %v3453
    %v3614 = vunpack.c.h.s8.bf16 %v3454
    %v3615 = vunpack.c.h.s8.bf16 %v3455
    %v3616 = vunpack.c.l.s8.bf16 %v3456
    %v3617 = vunpack.c.l.s8.bf16 %v3457
    %v3618 = vunpack.c.l.s8.bf16 %v3458
    %v3619 = vunpack.c.l.s8.bf16 %v3459
    %v3620 = vunpack.c.h.s8.bf16 %v3456
    %v3621 = vunpack.c.h.s8.bf16 %v3457
    %v3622 = vunpack.c.h.s8.bf16 %v3458
    %v3623 = vunpack.c.h.s8.bf16 %v3459
    %v3624 = vunpack.c.l.s8.bf16 %v3460
    %v3625 = vunpack.c.l.s8.bf16 %v3461
    %v3626 = vunpack.c.l.s8.bf16 %v3462
    %v3627 = vunpack.c.l.s8.bf16 %v3463
    %v3628 = vunpack.c.h.s8.bf16 %v3460
    %v3629 = vunpack.c.h.s8.bf16 %v3461
    %v3630 = vunpack.c.h.s8.bf16 %v3462
    %v3631 = vunpack.c.h.s8.bf16 %v3463
    %v3632 = vunpack.c.l.s8.bf16 %v3464
    %v3633 = vunpack.c.l.s8.bf16 %v3465
    %v3634 = vunpack.c.l.s8.bf16 %v3466
    %v3635 = vunpack.c.l.s8.bf16 %v3467
    %v3636 = vunpack.c.h.s8.bf16 %v3464
    %v3637 = vunpack.c.h.s8.bf16 %v3465
    %v3638 = vunpack.c.h.s8.bf16 %v3466
    %v3639 = vunpack.c.h.s8.bf16 %v3467
    %v3640 = vunpack.c.l.s8.bf16 %v3468
    %v3641 = vunpack.c.l.s8.bf16 %v3469
    %v3642 = vunpack.c.l.s8.bf16 %v3470
    %v3643 = vunpack.c.l.s8.bf16 %v3471
    %v3644 = vunpack.c.h.s8.bf16 %v3468
    %v3645 = vunpack.c.h.s8.bf16 %v3469
    %v3646 = vunpack.c.h.s8.bf16 %v3470
    %v3647 = vunpack.c.h.s8.bf16 %v3471
    %v3648 = vunpack.c.l.s8.bf16 %v3472
    %v3649 = vunpack.c.l.s8.bf16 %v3473
    %v3650 = vunpack.c.l.s8.bf16 %v3474
    %v3651 = vunpack.c.l.s8.bf16 %v3475
    %v3652 = vunpack.c.h.s8.bf16 %v3472
    %v3653 = vunpack.c.h.s8.bf16 %v3473
    %v3654 = vunpack.c.h.s8.bf16 %v3474
    %v3655 = vunpack.c.h.s8.bf16 %v3475
    %v3656 = vunpack.c.l.s8.bf16 %v3476
    %v3657 = vunpack.c.l.s8.bf16 %v3477
    %v3658 = vunpack.c.l.s8.bf16 %v3478
    %v3659 = vunpack.c.l.s8.bf16 %v3479
    %v3660 = vunpack.c.h.s8.bf16 %v3476
    %v3661 = vunpack.c.h.s8.bf16 %v3477
    %v3662 = vunpack.c.h.s8.bf16 %v3478
    %v3663 = vunpack.c.h.s8.bf16 %v3479
    %v3664 = vunpack.c.l.s8.bf16 %v3480
    %v3665 = vunpack.c.l.s8.bf16 %v3481
    %v3666 = vunpack.c.l.s8.bf16 %v3482
    %v3667 = vunpack.c.l.s8.bf16 %v3483
    %v3668 = vunpack.c.h.s8.bf16 %v3480
    %v3669 = vunpack.c.h.s8.bf16 %v3481
    %v3670 = vunpack.c.h.s8.bf16 %v3482
    %v3671 = vunpack.c.h.s8.bf16 %v3483
    %v3672 = vunpack.c.l.s8.bf16 %v3484
    %v3673 = vunpack.c.l.s8.bf16 %v3485
    %v3674 = vunpack.c.l.s8.bf16 %v3486
    %v3675 = vunpack.c.l.s8.bf16 %v3487
    %v3676 = vunpack.c.h.s8.bf16 %v3484
    %v3677 = vunpack.c.h.s8.bf16 %v3485
    %v3678 = vunpack.c.h.s8.bf16 %v3486
    %v3679 = vunpack.c.h.s8.bf16 %v3487
    %v3680 = vunpack.c.l.s8.bf16 %v3488
    %v3681 = vunpack.c.l.s8.bf16 %v3489
    %v3682 = vunpack.c.l.s8.bf16 %v3490
    %v3683 = vunpack.c.l.s8.bf16 %v3491
    %v3684 = vunpack.c.h.s8.bf16 %v3488
    %v3685 = vunpack.c.h.s8.bf16 %v3489
    %v3686 = vunpack.c.h.s8.bf16 %v3490
    %v3687 = vunpack.c.h.s8.bf16 %v3491
    %v3688 = vunpack.c.l.s8.bf16 %v3492
    %v3689 = vunpack.c.l.s8.bf16 %v3493
    %v3690 = vunpack.c.l.s8.bf16 %v3494
    %v3691 = vunpack.c.l.s8.bf16 %v3495
    %v3692 = vunpack.c.h.s8.bf16 %v3492
    %v3693 = vunpack.c.h.s8.bf16 %v3493
    %v3694 = vunpack.c.h.s8.bf16 %v3494
    %v3695 = vunpack.c.h.s8.bf16 %v3495
    %v3696 = vunpack.c.l.s8.bf16 %v3496
    %v3697 = vunpack.c.l.s8.bf16 %v3497
    %v3698 = vunpack.c.l.s8.bf16 %v3498
    %v3699 = vunpack.c.l.s8.bf16 %v3499
    %v3700 = vunpack.c.h.s8.bf16 %v3496
    %v3701 = vunpack.c.h.s8.bf16 %v3497
    %v3702 = vunpack.c.h.s8.bf16 %v3498
    %v3703 = vunpack.c.h.s8.bf16 %v3499
    %v3704 = vunpack.c.l.s8.bf16 %v3500
    %v3705 = vunpack.c.l.s8.bf16 %v3501
    %v3706 = vunpack.c.l.s8.bf16 %v3502
    %v3707 = vunpack.c.l.s8.bf16 %v3503
    %v3708 = vunpack.c.h.s8.bf16 %v3500
    %v3709 = vunpack.c.h.s8.bf16 %v3501
    %v3710 = vunpack.c.h.s8.bf16 %v3502
    %v3711 = vunpack.c.h.s8.bf16 %v3503
    %v3712 = vunpack.c.l.s8.bf16 %v3504
    %v3713 = vunpack.c.l.s8.bf16 %v3505
    %v3714 = vunpack.c.l.s8.bf16 %v3506
    %v3715 = vunpack.c.l.s8.bf16 %v3507
    %v3716 = vunpack.c.h.s8.bf16 %v3504
    %v3717 = vunpack.c.h.s8.bf16 %v3505
    %v3718 = vunpack.c.h.s8.bf16 %v3506
    %v3719 = vunpack.c.h.s8.bf16 %v3507
    %v3720 = vunpack.c.l.s8.bf16 %v3508
    %v3721 = vunpack.c.l.s8.bf16 %v3509
    %v3722 = vunpack.c.l.s8.bf16 %v3510
    %v3723 = vunpack.c.l.s8.bf16 %v3511
    %v3724 = vunpack.c.h.s8.bf16 %v3508
    %v3725 = vunpack.c.h.s8.bf16 %v3509
    %v3726 = vunpack.c.h.s8.bf16 %v3510
    %v3727 = vunpack.c.h.s8.bf16 %v3511
    %v3728 = vunpack.c.l.s8.bf16 %v3512
    %v3729 = vunpack.c.l.s8.bf16 %v3513
    %v3730 = vunpack.c.l.s8.bf16 %v3514
    %v3731 = vunpack.c.l.s8.bf16 %v3515
    %v3732 = vunpack.c.h.s8.bf16 %v3512
    %v3733 = vunpack.c.h.s8.bf16 %v3513
    %v3734 = vunpack.c.h.s8.bf16 %v3514
    %v3735 = vunpack.c.h.s8.bf16 %v3515
    %v3736 = vunpack.c.l.s8.bf16 %v3516
    %v3737 = vunpack.c.l.s8.bf16 %v3517
    %v3738 = vunpack.c.l.s8.bf16 %v3518
    %v3739 = vunpack.c.l.s8.bf16 %v3519
    %v3740 = vunpack.c.h.s8.bf16 %v3516
    %v3741 = vunpack.c.h.s8.bf16 %v3517
    %v3742 = vunpack.c.h.s8.bf16 %v3518
    %v3743 = vunpack.c.h.s8.bf16 %v3519
    %v3744 = vunpack.c.l.s8.bf16 %v3520
    %v3745 = vunpack.c.l.s8.bf16 %v3521
    %v3746 = vunpack.c.l.s8.bf16 %v3522
    %v3747 = vunpack.c.l.s8.bf16 %v3523
    %v3748 = vunpack.c.h.s8.bf16 %v3520
    %v3749 = vunpack.c.h.s8.bf16 %v3521
    %v3750 = vunpack.c.h.s8.bf16 %v3522
    %v3751 = vunpack.c.h.s8.bf16 %v3523
    %v3752 = vunpack.c.l.s8.bf16 %v3524
    %v3753 = vunpack.c.l.s8.bf16 %v3525
    %v3754 = vunpack.c.l.s8.bf16 %v3526
    %v3755 = vunpack.c.l.s8.bf16 %v3527
    %v3756 = vunpack.c.h.s8.bf16 %v3524
    %v3757 = vunpack.c.h.s8.bf16 %v3525
    %v3758 = vunpack.c.h.s8.bf16 %v3526
    %v3759 = vunpack.c.h.s8.bf16 %v3527
    %v3760 = vunpack.c.l.s8.bf16 %v3528
    %v3761 = vunpack.c.l.s8.bf16 %v3529
    %v3762 = vunpack.c.l.s8.bf16 %v3530
    %v3763 = vunpack.c.l.s8.bf16 %v3531
    %v3764 = vunpack.c.h.s8.bf16 %v3528
    %v3765 = vunpack.c.h.s8.bf16 %v3529
    %v3766 = vunpack.c.h.s8.bf16 %v3530
    %v3767 = vunpack.c.h.s8.bf16 %v3531
    %v3768 = vunpack.c.l.s8.bf16 %v3532
    %v3769 = vunpack.c.l.s8.bf16 %v3533
    %v3770 = vunpack.c.l.s8.bf16 %v3534
    %v3771 = vunpack.c.l.s8.bf16 %v3535
    %v3772 = vunpack.c.h.s8.bf16 %v3532
    %v3773 = vunpack.c.h.s8.bf16 %v3533
    %v3774 = vunpack.c.h.s8.bf16 %v3534
    %v3775 = vunpack.c.h.s8.bf16 %v3535
    %v3776 = vunpack.c.l.s8.bf16 %v3536
    %v3777 = vunpack.c.l.s8.bf16 %v3537
    %v3778 = vunpack.c.l.s8.bf16 %v3538
    %v3779 = vunpack.c.l.s8.bf16 %v3539
    %v3780 = vunpack.c.h.s8.bf16 %v3536
    %v3781 = vunpack.c.h.s8.bf16 %v3537
    %v3782 = vunpack.c.h.s8.bf16 %v3538
    %v3783 = vunpack.c.h.s8.bf16 %v3539
    %v3784 = vunpack.c.l.s8.bf16 %v3540
    %v3785 = vunpack.c.l.s8.bf16 %v3541
    %v3786 = vunpack.c.l.s8.bf16 %v3542
    %v3787 = vunpack.c.l.s8.bf16 %v3543
    %v3788 = vunpack.c.h.s8.bf16 %v3540
    %v3789 = vunpack.c.h.s8.bf16 %v3541
    %v3790 = vunpack.c.h.s8.bf16 %v3542
    %v3791 = vunpack.c.h.s8.bf16 %v3543
    %v3792 = vunpack.c.l.s8.bf16 %v3544
    %v3793 = vunpack.c.l.s8.bf16 %v3545
    %v3794 = vunpack.c.l.s8.bf16 %v3546
    %v3795 = vunpack.c.l.s8.bf16 %v3547
    %v3796 = vunpack.c.h.s8.bf16 %v3544
    %v3797 = vunpack.c.h.s8.bf16 %v3545
    %v3798 = vunpack.c.h.s8.bf16 %v3546
    %v3799 = vunpack.c.h.s8.bf16 %v3547
    %v3800 = vunpack.c.l.s8.bf16 %v3548
    %v3801 = vunpack.c.l.s8.bf16 %v3549
    %v3802 = vunpack.c.l.s8.bf16 %v3550
    %v3803 = vunpack.c.l.s8.bf16 %v3551
    %v3804 = vunpack.c.h.s8.bf16 %v3548
    %v3805 = vunpack.c.h.s8.bf16 %v3549
    %v3806 = vunpack.c.h.s8.bf16 %v3550
    %v3807 = vunpack.c.h.s8.bf16 %v3551
    %3808 = vmatprep.subr.bf16.mxu0 %v3553
    %3809 = vmatpush1.bf16.msra.mxu0 %v3552
    %3810 = vmatprep.subr.bf16.mxu0 %v3557
    %3811 = vmatpush1.bf16.msra.mxu0 %v3556
    %3812 = vmatprep.subr.bf16.mxu0 %v3561
    %3813 = vmatpush1.bf16.msra.mxu0 %v3560
    %3814 = vmatprep.subr.bf16.mxu0 %v3565
    %3815 = vmatpush1.bf16.msra.mxu0 %v3564
    %3816 = vmatprep.subr.bf16.mxu0 %v3569
    %3817 = vmatpush1.bf16.msra.mxu0 %v3568
    %3818 = vmatprep.subr.bf16.mxu0 %v3573
    %3819 = vmatpush1.bf16.msra.mxu0 %v3572
    %3820 = vmatprep.subr.bf16.mxu0 %v3577
    %3821 = vmatpush1.bf16.msra.mxu0 %v3576
    %3822 = vmatprep.subr.bf16.mxu0 %v3581
    %3823 = vmatpush1.bf16.msra.mxu0 %v3580
    %3824 = vmatprep.subr.bf16.mxu0 %v3585
    %3825 = vmatpush1.bf16.msra.mxu0 %v3584
    %3826 = vmatprep.subr.bf16.mxu0 %v3589
    %3827 = vmatpush1.bf16.msra.mxu0 %v3588
    %3828 = vmatprep.subr.bf16.mxu0 %v3593
    %3829 = vmatpush1.bf16.msra.mxu0 %v3592
    %3830 = vmatprep.subr.bf16.mxu0 %v3597
    %3831 = vmatpush1.bf16.msra.mxu0 %v3596
    %3832 = vmatprep.subr.bf16.mxu0 %v3601
    %3833 = vmatpush1.bf16.msra.mxu0 %v3600
    %3834 = vmatprep.subr.bf16.mxu0 %v3605
    %3835 = vmatpush1.bf16.msra.mxu0 %v3604
    %3836 = vmatprep.subr.bf16.mxu0 %v3609
    %3837 = vmatpush1.bf16.msra.mxu0 %v3608
    %3838 = vmatprep.subr.bf16.mxu0 %v3613
    %3839 = vmatpush1.bf16.msra.mxu0 %v3612
    %3840 = vmatprep.mubr.bf16.mxu0 %v3417
    %3841 = vmatmul.mubr.bf16.gmra.mrb[0].mxu0 %v3416
    %v3842 = vpop.f32.mrb[0].mxu0
    %v3843 = vadd.f32 0.0, %v3842
    %v3844 = vpop.f32.mrb[0].mxu0
    %v3845 = vadd.f32 0.0, %v3844
    %v3846 = vpop.f32.mrb[0].mxu0
    %v3847 = vpop.f32.mrb[0].mxu0
    %3848 = vdwg.mxu0
    %3849 = vmatprep.subr.bf16.mxu0 %v3617
    %3850 = vmatpush1.bf16.msra.mxu0 %v3616
    %3851 = vmatprep.subr.bf16.mxu0 %v3621
    %3852 = vmatpush1.bf16.msra.mxu0 %v3620
    %3853 = vmatprep.subr.bf16.mxu0 %v3625
    %3854 = vmatpush1.bf16.msra.mxu0 %v3624
    %3855 = vmatprep.subr.bf16.mxu0 %v3629
    %3856 = vmatpush1.bf16.msra.mxu0 %v3628
    %3857 = vmatprep.subr.bf16.mxu0 %v3633
    %3858 = vmatpush1.bf16.msra.mxu0 %v3632
    %3859 = vmatprep.subr.bf16.mxu0 %v3637
    %3860 = vmatpush1.bf16.msra.mxu0 %v3636
    %3861 = vmatprep.subr.bf16.mxu0 %v3641
    %3862 = vmatpush1.bf16.msra.mxu0 %v3640
    %3863 = vmatprep.subr.bf16.mxu0 %v3645
    %3864 = vmatpush1.bf16.msra.mxu0 %v3644
    %3865 = vmatprep.subr.bf16.mxu0 %v3649
    %3866 = vmatpush1.bf16.msra.mxu0 %v3648
    %3867 = vmatprep.subr.bf16.mxu0 %v3653
    %3868 = vmatpush1.bf16.msra.mxu0 %v3652
    %3869 = vmatprep.subr.bf16.mxu0 %v3657
    %3870 = vmatpush1.bf16.msra.mxu0 %v3656
    %3871 = vmatprep.subr.bf16.mxu0 %v3661
    %3872 = vmatpush1.bf16.msra.mxu0 %v3660
    %3873 = vmatprep.subr.bf16.mxu0 %v3665
    %3874 = vmatpush1.bf16.msra.mxu0 %v3664
    %3875 = vmatprep.subr.bf16.mxu0 %v3669
    %3876 = vmatpush1.bf16.msra.mxu0 %v3668
    %3877 = vmatprep.subr.bf16.mxu0 %v3673
    %3878 = vmatpush1.bf16.msra.mxu0 %v3672
    %3879 = vmatprep.subr.bf16.mxu0 %v3677
    %3880 = vmatpush1.bf16.msra.mxu0 %v3676
    %3881 = vmatprep.mubr.bf16.mxu0 %v3419
    %3882 = vmatmul.mubr.bf16.gmra.mrb[0].mxu0 %v3418
    %v3883 = vpop.f32.mrb[0].mxu0
    %v3884 = vadd.f32 %v3843, %v3883
    %v3885 = vpop.f32.mrb[0].mxu0
    %v3886 = vadd.f32 %v3845, %v3885
    %v3887 = vpop.f32.mrb[0].mxu0
    %v3888 = vpop.f32.mrb[0].mxu0
    %3889 = vdwg.mxu0
    %3890 = vmatprep.subr.bf16.mxu0 %v3681
    %3891 = vmatpush1.bf16.msra.mxu0 %v3680
    %3892 = vmatprep.subr.bf16.mxu0 %v3685
    %3893 = vmatpush1.bf16.msra.mxu0 %v3684
    %3894 = vmatprep.subr.bf16.mxu0 %v3689
    %3895 = vmatpush1.bf16.msra.mxu0 %v3688
    %3896 = vmatprep.subr.bf16.mxu0 %v3693
    %3897 = vmatpush1.bf16.msra.mxu0 %v3692
    %3898 = vmatprep.subr.bf16.mxu0 %v3697
    %3899 = vmatpush1.bf16.msra.mxu0 %v3696
    %3900 = vmatprep.subr.bf16.mxu0 %v3701
    %3901 = vmatpush1.bf16.msra.mxu0 %v3700
    %3902 = vmatprep.subr.bf16.mxu0 %v3705
    %3903 = vmatpush1.bf16.msra.mxu0 %v3704
    %3904 = vmatprep.subr.bf16.mxu0 %v3709
    %3905 = vmatpush1.bf16.msra.mxu0 %v3708
    %3906 = vmatprep.subr.bf16.mxu0 %v3713
    %3907 = vmatpush1.bf16.msra.mxu0 %v3712
    %3908 = vmatprep.subr.bf16.mxu0 %v3717
    %3909 = vmatpush1.bf16.msra.mxu0 %v3716
    %3910 = vmatprep.subr.bf16.mxu0 %v3721
    %3911 = vmatpush1.bf16.msra.mxu0 %v3720
    %3912 = vmatprep.subr.bf16.mxu0 %v3725
    %3913 = vmatpush1.bf16.msra.mxu0 %v3724
    %3914 = vmatprep.subr.bf16.mxu0 %v3729
    %3915 = vmatpush1.bf16.msra.mxu0 %v3728
    %3916 = vmatprep.subr.bf16.mxu0 %v3733
    %3917 = vmatpush1.bf16.msra.mxu0 %v3732
    %3918 = vmatprep.subr.bf16.mxu0 %v3737
    %3919 = vmatpush1.bf16.msra.mxu0 %v3736
    %3920 = vmatprep.subr.bf16.mxu0 %v3741
    %3921 = vmatpush1.bf16.msra.mxu0 %v3740
    %3922 = vmatprep.mubr.bf16.mxu0 %v3421
    %3923 = vmatmul.mubr.bf16.gmra.mrb[0].mxu0 %v3420
    %v3924 = vpop.f32.mrb[0].mxu0
    %v3925 = vadd.f32 %v3884, %v3924
    %v3926 = vpop.f32.mrb[0].mxu0
    %v3927 = vadd.f32 %v3886, %v3926
    %v3928 = vpop.f32.mrb[0].mxu0
    %v3929 = vpop.f32.mrb[0].mxu0
    %3930 = vdwg.mxu0
    %3931 = vmatprep.subr.bf16.mxu0 %v3745
    %3932 = vmatpush1.bf16.msra.mxu0 %v3744
    %3933 = vmatprep.subr.bf16.mxu0 %v3749
    %3934 = vmatpush1.bf16.msra.mxu0 %v3748
    %3935 = vmatprep.subr.bf16.mxu0 %v3753
    %3936 = vmatpush1.bf16.msra.mxu0 %v3752
    %3937 = vmatprep.subr.bf16.mxu0 %v3757
    %3938 = vmatpush1.bf16.msra.mxu0 %v3756
    %3939 = vmatprep.subr.bf16.mxu0 %v3761
    %3940 = vmatpush1.bf16.msra.mxu0 %v3760
    %3941 = vmatprep.subr.bf16.mxu0 %v3765
    %3942 = vmatpush1.bf16.msra.mxu0 %v3764
    %3943 = vmatprep.subr.bf16.mxu0 %v3769
    %3944 = vmatpush1.bf16.msra.mxu0 %v3768
    %3945 = vmatprep.subr.bf16.mxu0 %v3773
    %3946 = vmatpush1.bf16.msra.mxu0 %v3772
    %3947 = vmatprep.subr.bf16.mxu0 %v3777
    %3948 = vmatpush1.bf16.msra.mxu0 %v3776
    %3949 = vmatprep.subr.bf16.mxu0 %v3781
    %3950 = vmatpush1.bf16.msra.mxu0 %v3780
    %3951 = vmatprep.subr.bf16.mxu0 %v3785
    %3952 = vmatpush1.bf16.msra.mxu0 %v3784
    %3953 = vmatprep.subr.bf16.mxu0 %v3789
    %3954 = vmatpush1.bf16.msra.mxu0 %v3788
    %3955 = vmatprep.subr.bf16.mxu0 %v3793
    %3956 = vmatpush1.bf16.msra.mxu0 %v3792
    %3957 = vmatprep.subr.bf16.mxu0 %v3797
    %3958 = vmatpush1.bf16.msra.mxu0 %v3796
    %3959 = vmatprep.subr.bf16.mxu0 %v3801
    %3960 = vmatpush1.bf16.msra.mxu0 %v3800
    %3961 = vmatprep.subr.bf16.mxu0 %v3805
    %3962 = vmatpush1.bf16.msra.mxu0 %v3804
    %3963 = vmatprep.mubr.bf16.mxu0 %v3423
    %3964 = vmatmul.mubr.bf16.gmra.mrb[0].mxu0 %v3422
    %v3965 = vpop.f32.mrb[0].mxu0
    %v3966 = vadd.f32 %v3925, %v3965
    %v3967 = vpop.f32.mrb[0].mxu0
    %v3968 = vadd.f32 %v3927, %v3967
    %v3969 = vpop.f32.mrb[0].mxu0
    %v3970 = vpop.f32.mrb[0].mxu0
    %3971 = vdwg.mxu0
    %3972 = vmatprep.subr.bf16.mxu0 %v3555
    %3973 = vmatpush1.bf16.msra.mxu0 %v3554
    %3974 = vmatprep.subr.bf16.mxu0 %v3559
    %3975 = vmatpush1.bf16.msra.mxu0 %v3558
    %3976 = vmatprep.subr.bf16.mxu0 %v3563
    %3977 = vmatpush1.bf16.msra.mxu0 %v3562
    %3978 = vmatprep.subr.bf16.mxu0 %v3567
    %3979 = vmatpush1.bf16.msra.mxu0 %v3566
    %3980 = vmatprep.subr.bf16.mxu0 %v3571
    %3981 = vmatpush1.bf16.msra.mxu0 %v3570
    %3982 = vmatprep.subr.bf16.mxu0 %v3575
    %3983 = vmatpush1.bf16.msra.mxu0 %v3574
    %3984 = vmatprep.subr.bf16.mxu0 %v3579
    %3985 = vmatpush1.bf16.msra.mxu0 %v3578
    %3986 = vmatprep.subr.bf16.mxu0 %v3583
    %3987 = vmatpush1.bf16.msra.mxu0 %v3582
    %3988 = vmatprep.subr.bf16.mxu0 %v3587
    %3989 = vmatpush1.bf16.msra.mxu0 %v3586
    %3990 = vmatprep.subr.bf16.mxu0 %v3591
    %3991 = vmatpush1.bf16.msra.mxu0 %v3590
    %3992 = vmatprep.subr.bf16.mxu0 %v3595
    %3993 = vmatpush1.bf16.msra.mxu0 %v3594
    %3994 = vmatprep.subr.bf16.mxu0 %v3599
    %3995 = vmatpush1.bf16.msra.mxu0 %v3598
    %3996 = vmatprep.subr.bf16.mxu0 %v3603
    %3997 = vmatpush1.bf16.msra.mxu0 %v3602
    %3998 = vmatprep.subr.bf16.mxu0 %v3607
    %3999 = vmatpush1.bf16.msra.mxu0 %v3606
    %4000 = vmatprep.subr.bf16.mxu0 %v3611
    %4001 = vmatpush1.bf16.msra.mxu0 %v3610
    %4002 = vmatprep.subr.bf16.mxu0 %v3615
    %4003 = vmatpush1.bf16.msra.mxu0 %v3614
    %4004 = vmatprep.mubr.bf16.mxu0 %v3417
    %4005 = vmatmul.mubr.bf16.gmra.mrb[0].mxu0 %v3416
    %v4006 = vpop.f32.mrb[0].mxu0
    %v4007 = vadd.f32 0.0, %v4006
    %v4008 = vpop.f32.mrb[0].mxu0
    %v4009 = vadd.f32 0.0, %v4008
    %v4010 = vpop.f32.mrb[0].mxu0
    %v4011 = vpop.f32.mrb[0].mxu0
    %4012 = vdwg.mxu0
    %4013 = vmatprep.subr.bf16.mxu0 %v3619
    %4014 = vmatpush1.bf16.msra.mxu0 %v3618
    %4015 = vmatprep.subr.bf16.mxu0 %v3623
    %4016 = vmatpush1.bf16.msra.mxu0 %v3622
    %4017 = vmatprep.subr.bf16.mxu0 %v3627
    %4018 = vmatpush1.bf16.msra.mxu0 %v3626
    %4019 = vmatprep.subr.bf16.mxu0 %v3631
    %4020 = vmatpush1.bf16.msra.mxu0 %v3630
    %4021 = vmatprep.subr.bf16.mxu0 %v3635
    %4022 = vmatpush1.bf16.msra.mxu0 %v3634
    %4023 = vmatprep.subr.bf16.mxu0 %v3639
    %4024 = vmatpush1.bf16.msra.mxu0 %v3638
    %4025 = vmatprep.subr.bf16.mxu0 %v3643
    %4026 = vmatpush1.bf16.msra.mxu0 %v3642
    %4027 = vmatprep.subr.bf16.mxu0 %v3647
    %4028 = vmatpush1.bf16.msra.mxu0 %v3646
    %4029 = vmatprep.subr.bf16.mxu0 %v3651
    %4030 = vmatpush1.bf16.msra.mxu0 %v3650
    %4031 = vmatprep.subr.bf16.mxu0 %v3655
    %4032 = vmatpush1.bf16.msra.mxu0 %v3654
    %4033 = vmatprep.subr.bf16.mxu0 %v3659
    %4034 = vmatpush1.bf16.msra.mxu0 %v3658
    %4035 = vmatprep.subr.bf16.mxu0 %v3663
    %4036 = vmatpush1.bf16.msra.mxu0 %v3662
    %4037 = vmatprep.subr.bf16.mxu0 %v3667
    %4038 = vmatpush1.bf16.msra.mxu0 %v3666
    %4039 = vmatprep.subr.bf16.mxu0 %v3671
    %4040 = vmatpush1.bf16.msra.mxu0 %v3670
    %4041 = vmatprep.subr.bf16.mxu0 %v3675
    %4042 = vmatpush1.bf16.msra.mxu0 %v3674
    %4043 = vmatprep.subr.bf16.mxu0 %v3679
    %4044 = vmatpush1.bf16.msra.mxu0 %v3678
    %4045 = vmatprep.mubr.bf16.mxu0 %v3419
    %4046 = vmatmul.mubr.bf16.gmra.mrb[0].mxu0 %v3418
    %v4047 = vpop.f32.mrb[0].mxu0
    %v4048 = vadd.f32 %v4007, %v4047
    %v4049 = vpop.f32.mrb[0].mxu0
    %v4050 = vadd.f32 %v4009, %v4049
    %v4051 = vpop.f32.mrb[0].mxu0
    %v4052 = vpop.f32.mrb[0].mxu0
    %4053 = vdwg.mxu0
    %4054 = vmatprep.subr.bf16.mxu0 %v3683
    %4055 = vmatpush1.bf16.msra.mxu0 %v3682
    %4056 = vmatprep.subr.bf16.mxu0 %v3687
    %4057 = vmatpush1.bf16.msra.mxu0 %v3686
    %4058 = vmatprep.subr.bf16.mxu0 %v3691
    %4059 = vmatpush1.bf16.msra.mxu0 %v3690
    %4060 = vmatprep.subr.bf16.mxu0 %v3695
    %4061 = vmatpush1.bf16.msra.mxu0 %v3694
    %4062 = vmatprep.subr.bf16.mxu0 %v3699
    %4063 = vmatpush1.bf16.msra.mxu0 %v3698
    %4064 = vmatprep.subr.bf16.mxu0 %v3703
    %4065 = vmatpush1.bf16.msra.mxu0 %v3702
    %4066 = vmatprep.subr.bf16.mxu0 %v3707
    %4067 = vmatpush1.bf16.msra.mxu0 %v3706
    %4068 = vmatprep.subr.bf16.mxu0 %v3711
    %4069 = vmatpush1.bf16.msra.mxu0 %v3710
    %4070 = vmatprep.subr.bf16.mxu0 %v3715
    %4071 = vmatpush1.bf16.msra.mxu0 %v3714
    %4072 = vmatprep.subr.bf16.mxu0 %v3719
    %4073 = vmatpush1.bf16.msra.mxu0 %v3718
    %4074 = vmatprep.subr.bf16.mxu0 %v3723
    %4075 = vmatpush1.bf16.msra.mxu0 %v3722
    %4076 = vmatprep.subr.bf16.mxu0 %v3727
    %4077 = vmatpush1.bf16.msra.mxu0 %v3726
    %4078 = vmatprep.subr.bf16.mxu0 %v3731
    %4079 = vmatpush1.bf16.msra.mxu0 %v3730
    %4080 = vmatprep.subr.bf16.mxu0 %v3735
    %4081 = vmatpush1.bf16.msra.mxu0 %v3734
    %4082 = vmatprep.subr.bf16.mxu0 %v3739
    %4083 = vmatpush1.bf16.msra.mxu0 %v3738
    %4084 = vmatprep.subr.bf16.mxu0 %v3743
    %4085 = vmatpush1.bf16.msra.mxu0 %v3742
    %4086 = vmatprep.mubr.bf16.mxu0 %v3421
    %4087 = vmatmul.mubr.bf16.gmra.mrb[0].mxu0 %v3420
    %v4088 = vpop.f32.mrb[0].mxu0
    %v4089 = vadd.f32 %v4048, %v4088
    %v4090 = vpop.f32.mrb[0].mxu0
    %v4091 = vadd.f32 %v4050, %v4090
    %v4092 = vpop.f32.mrb[0].mxu0
    %v4093 = vpop.f32.mrb[0].mxu0
    %4094 = vdwg.mxu0
    %4095 = vmatprep.subr.bf16.mxu0 %v3747
    %4096 = vmatpush1.bf16.msra.mxu0 %v3746
    %4097 = vmatprep.subr.bf16.mxu0 %v3751
    %4098 = vmatpush1.bf16.msra.mxu0 %v3750
    %4099 = vmatprep.subr.bf16.mxu0 %v3755
    %4100 = vmatpush1.bf16.msra.mxu0 %v3754
    %4101 = vmatprep.subr.bf16.mxu0 %v3759
    %4102 = vmatpush1.bf16.msra.mxu0 %v3758
    %4103 = vmatprep.subr.bf16.mxu0 %v3763
    %4104 = vmatpush1.bf16.msra.mxu0 %v3762
    %4105 = vmatprep.subr.bf16.mxu0 %v3767
    %4106 = vmatpush1.bf16.msra.mxu0 %v3766
    %4107 = vmatprep.subr.bf16.mxu0 %v3771
    %4108 = vmatpush1.bf16.msra.mxu0 %v3770
    %4109 = vmatprep.subr.bf16.mxu0 %v3775
    %4110 = vmatpush1.bf16.msra.mxu0 %v3774
    %4111 = vmatprep.subr.bf16.mxu0 %v3779
    %4112 = vmatpush1.bf16.msra.mxu0 %v3778
    %4113 = vmatprep.subr.bf16.mxu0 %v3783
    %4114 = vmatpush1.bf16.msra.mxu0 %v3782
    %4115 = vmatprep.subr.bf16.mxu0 %v3787
    %4116 = vmatpush1.bf16.msra.mxu0 %v3786
    %4117 = vmatprep.subr.bf16.mxu0 %v3791
    %4118 = vmatpush1.bf16.msra.mxu0 %v3790
    %4119 = vmatprep.subr.bf16.mxu0 %v3795
    %4120 = vmatpush1.bf16.msra.mxu0 %v3794
    %4121 = vmatprep.subr.bf16.mxu0 %v3799
    %4122 = vmatpush1.bf16.msra.mxu0 %v3798
    %4123 = vmatprep.subr.bf16.mxu0 %v3803
    %4124 = vmatpush1.bf16.msra.mxu0 %v3802
    %4125 = vmatprep.subr.bf16.mxu0 %v3807
    %4126 = vmatpush1.bf16.msra.mxu0 %v3806
    %4127 = vmatprep.mubr.bf16.mxu0 %v3423
    %4128 = vmatmul.mubr.bf16.gmra.mrb[0].mxu0 %v3422
    %v4129 = vpop.f32.mrb[0].mxu0
    %v4130 = vadd.f32 %v4089, %v4129
    %v4131 = vpop.f32.mrb[0].mxu0
    %v4132 = vadd.f32 %v4091, %v4131
    %v4133 = vpop.f32.mrb[0].mxu0
    %v4134 = vpop.f32.mrb[0].mxu0
    %4135 = vdwg.mxu0
    %v4136 = vld [vmem:[#allocation11] sm:$0xf]
    %v4137 = vld [vmem:[#allocation13] sm:$0xf]
    %v4138 = vrot.slane %v3966, 4
    %v4139 = vadd.f32 %v3966, %v4138
    %v4140 = vrot.slane %v4139, 2
    %v4141 = vadd.f32 %v4139, %v4140
    %v4142 = vrot.slane %v4141, 1
    %v4143 = vadd.f32 %v4141, %v4142
    %v4144 = vrot.slane %v3968, 4
    %v4145 = vadd.f32 %v3968, %v4144
    %v4146 = vrot.slane %v4145, 2
    %v4147 = vadd.f32 %v4145, %v4146
    %v4148 = vrot.slane %v4147, 1
    %v4149 = vadd.f32 %v4147, %v4148
    %v4150 = vrot.slane %v4130, 4
    %v4151 = vadd.f32 %v4130, %v4150
    %v4152 = vrot.slane %v4151, 2
    %v4153 = vadd.f32 %v4151, %v4152
    %v4154 = vrot.slane %v4153, 1
    %v4155 = vadd.f32 %v4153, %v4154
    %v4156 = vrot.slane %v4132, 4
    %v4157 = vadd.f32 %v4132, %v4156
    %v4158 = vrot.slane %v4157, 2
    %v4159 = vadd.f32 %v4157, %v4158
    %v4160 = vrot.slane %v4159, 1
    %v4161 = vadd.f32 %v4159, %v4160
    %v4162 = vmul.f32 %v4143, %v3138
    %v4163 = vmul.f32 %v4149, %v3138
    %v4164 = vmul.f32 %v4155, %v3138
    %v4165 = vmul.f32 %v4161, %v3138
    %v4166 = vsub.f32 %v3966, %v4162
    %v4167 = vsub.f32 %v3968, %v4163
    %v4168 = vsub.f32 %v4130, %v4164
    %v4169 = vsub.f32 %v4132, %v4165
    %v4170 = vmul.f32 %v4166, %v4166
    %v4171 = vmul.f32 %v4167, %v4167
    %v4172 = vmul.f32 %v4168, %v4168
    %v4173 = vmul.f32 %v4169, %v4169
    %v4174 = vrot.slane %v4170, 4
    %v4175 = vadd.f32 %v4170, %v4174
    %v4176 = vrot.slane %v4175, 2
    %v4177 = vadd.f32 %v4175, %v4176
    %v4178 = vrot.slane %v4177, 1
    %v4179 = vadd.f32 %v4177, %v4178
    %v4180 = vrot.slane %v4171, 4
    %v4181 = vadd.f32 %v4171, %v4180
    %v4182 = vrot.slane %v4181, 2
    %v4183 = vadd.f32 %v4181, %v4182
    %v4184 = vrot.slane %v4183, 1
    %v4185 = vadd.f32 %v4183, %v4184
    %v4186 = vrot.slane %v4172, 4
    %v4187 = vadd.f32 %v4172, %v4186
    %v4188 = vrot.slane %v4187, 2
    %v4189 = vadd.f32 %v4187, %v4188
    %v4190 = vrot.slane %v4189, 1
    %v4191 = vadd.f32 %v4189, %v4190
    %v4192 = vrot.slane %v4173, 4
    %v4193 = vadd.f32 %v4173, %v4192
    %v4194 = vrot.slane %v4193, 2
    %v4195 = vadd.f32 %v4193, %v4194
    %v4196 = vrot.slane %v4195, 1
    %v4197 = vadd.f32 %v4195, %v4196
    %v4198 = vmul.f32 %v4179, %v3138
    %v4199 = vmul.f32 %v4185, %v3138
    %v4200 = vmul.f32 %v4191, %v3138
    %v4201 = vmul.f32 %v4197, %v3138
    %v4202 = vadd.f32 %v4198, 1e-05
    %v4203 = vadd.f32 %v4199, 1e-05
    %v4204 = vadd.f32 %v4200, 1e-05
    %v4205 = vadd.f32 %v4201, 1e-05
    %v4206 = vrsqrt.pop %v4202
    %v4207 = vrsqrt.pop %v4203
    %v4208 = vrsqrt.pop %v4204
    %v4209 = vrsqrt.pop %v4205
    %v4214 = vcombine.low %v4206, %v4207
    %v4215 = vcombine.low %v4208, %v4209
    %v4217 = vunpack.c.l.s4 1966171168
    %v4218 = vunpack.c.0.s8 %v4217
    %v4219 = vlaneseq
    %v4220 = vshrl.u32 %v4219, 7
    %v4221 = vsub.s32 %v4218, %v4220
    %v4222 = vrot.slane %v4214, %v4221
    %v4224 = vunpack.c.l.s4 1966171168
    %v4225 = vunpack.c.0.s8 %v4224
    %v4226 = vlaneseq
    %v4227 = vshrl.u32 %v4226, 7
    %v4228 = vsub.s32 %v4225, %v4227
    %v4229 = vrot.slane %v4215, %v4228
    %v4230 = vcombine.low %v4222, %v4229
    %v4232 = vunpack.c.l.s4 1966171168
    %v4233 = vunpack.c.0.s8 %v4232
    %v4234 = vlaneseq
    %v4235 = vshrl.u32 %v4234, 7
    %v4236 = vsub.s32 %v4233, %v4235
    %v4237 = vrot.slane %v4230, %v4236
    %v4239 = vmul.f32 %v4136, %v4237
    %v4241 = vlaneseq
    %v4242 = vshrl.u32 %v4241, 7
    %v4243 = vsub.s32 0, %v4242
    %v4244 = vrot.slane %v4239, %v4243
    %v4245 = vlaneseq
    %v4246 = vshrl.u32 %v4245, 7
    %v4247 = vsub.s32 1, %v4246
    %v4248 = vrot.slane %v4239, %v4247
    %v4249 = vlaneseq
    %v4250 = vshrl.u32 %v4249, 7
    %v4251 = vsub.s32 2, %v4250
    %v4252 = vrot.slane %v4239, %v4251
    %v4253 = vlaneseq
    %v4254 = vshrl.u32 %v4253, 7
    %v4255 = vsub.s32 3, %v4254
    %v4256 = vrot.slane %v4239, %v4255
    %v4261 = vmul.f32 %v4166, %v4244
    %v4262 = vmul.f32 %v4167, %v4248
    %v4263 = vmul.f32 %v4168, %v4252
    %v4264 = vmul.f32 %v4169, %v4256
    %v4266 = vlaneseq
    %v4267 = vshrl.u32 %v4266, 7
    %v4268 = vsub.s32 0, %v4267
    %v4269 = vrot.slane %v4137, %v4268
    %v4270 = vlaneseq
    %v4271 = vshrl.u32 %v4270, 7
    %v4272 = vsub.s32 1, %v4271
    %v4273 = vrot.slane %v4137, %v4272
    %v4274 = vlaneseq
    %v4275 = vshrl.u32 %v4274, 7
    %v4276 = vsub.s32 2, %v4275
    %v4277 = vrot.slane %v4137, %v4276
    %v4278 = vlaneseq
    %v4279 = vshrl.u32 %v4278, 7
    %v4280 = vsub.s32 3, %v4279
    %v4281 = vrot.slane %v4137, %v4280
    %v4286 = vadd.f32 %v4261, %v4269
    %v4287 = vadd.f32 %v4262, %v4273
    %v4288 = vadd.f32 %v4263, %v4277
    %v4289 = vadd.f32 %v4264, %v4281
    %vm4290 = vcmp.gt.f32.partialorder %v4286, 0.0
    %vm4291 = vcmp.gt.f32.partialorder %v4287, 0.0
    %vm4292 = vcmp.gt.f32.partialorder %v4288, 0.0
    %vm4293 = vcmp.gt.f32.partialorder %v4289, 0.0
    %v4294 = vmul.f32 %v4286, 0.01
    %v4295 = vmul.f32 %v4287, 0.01
    %v4296 = vmul.f32 %v4288, 0.01
    %v4297 = vmul.f32 %v4289, 0.01
    %v4298 = vsel %vm4290, %v4286, %v4294
    %v4299 = vsel %vm4291, %v4287, %v4295
    %v4300 = vsel %vm4292, %v4288, %v4296
    %v4301 = vsel %vm4293, %v4289, %v4297
    %v4302 = vpack.c.bf16 %v4298, %v4298
    %v4303 = vpack.c.bf16 %v4299, %v4299
    %v4304 = vpack.c.bf16 %v4300, %v4300
    %v4305 = vpack.c.bf16 %v4301, %v4301
    %v4306 = vld [vmem:[%s7] sm:$0xff]
    %v4307 = vld [vmem:[%s7 + $0x8] sm:$0xff]
    %v4308 = vld [vmem:[%s7 + $0x10] sm:$0xff]
    %v4309 = vld [vmem:[%s7 + $0x18] sm:$0xff]
    %v4310 = vld [vmem:[%s7 + $0x20] sm:$0xff]
    %v4311 = vld [vmem:[%s7 + $0x28] sm:$0xff]
    %v4312 = vld [vmem:[%s7 + $0x30] sm:$0xff]
    %v4313 = vld [vmem:[%s7 + $0x38] sm:$0xff]
    %v4314 = vld [vmem:[%s7 + $0x40] sm:$0xff]
    %v4315 = vld [vmem:[%s7 + $0x48] sm:$0xff]
    %v4316 = vld [vmem:[%s7 + $0x50] sm:$0xff]
    %v4317 = vld [vmem:[%s7 + $0x58] sm:$0xff]
    %v4318 = vld [vmem:[%s7 + $0x60] sm:$0xff]
    %v4319 = vld [vmem:[%s7 + $0x68] sm:$0xff]
    %v4320 = vld [vmem:[%s7 + $0x70] sm:$0xff]
    %v4321 = vld [vmem:[%s7 + $0x78] sm:$0xff]
    %v4322 = vunpack.c.l.s8.bf16 %v4306
    %v4323 = vunpack.c.h.s8.bf16 %v4306
    %v4324 = vunpack.c.l.s8.bf16 %v4307
    %v4325 = vunpack.c.h.s8.bf16 %v4307
    %v4326 = vunpack.c.l.s8.bf16 %v4308
    %v4327 = vunpack.c.h.s8.bf16 %v4308
    %v4328 = vunpack.c.l.s8.bf16 %v4309
    %v4329 = vunpack.c.h.s8.bf16 %v4309
    %v4330 = vunpack.c.l.s8.bf16 %v4310
    %v4331 = vunpack.c.h.s8.bf16 %v4310
    %v4332 = vunpack.c.l.s8.bf16 %v4311
    %v4333 = vunpack.c.h.s8.bf16 %v4311
    %v4334 = vunpack.c.l.s8.bf16 %v4312
    %v4335 = vunpack.c.h.s8.bf16 %v4312
    %v4336 = vunpack.c.l.s8.bf16 %v4313
    %v4337 = vunpack.c.h.s8.bf16 %v4313
    %v4338 = vunpack.c.l.s8.bf16 %v4314
    %v4339 = vunpack.c.h.s8.bf16 %v4314
    %v4340 = vunpack.c.l.s8.bf16 %v4315
    %v4341 = vunpack.c.h.s8.bf16 %v4315
    %v4342 = vunpack.c.l.s8.bf16 %v4316
    %v4343 = vunpack.c.h.s8.bf16 %v4316
    %v4344 = vunpack.c.l.s8.bf16 %v4317
    %v4345 = vunpack.c.h.s8.bf16 %v4317
    %v4346 = vunpack.c.l.s8.bf16 %v4318
    %v4347 = vunpack.c.h.s8.bf16 %v4318
    %v4348 = vunpack.c.l.s8.bf16 %v4319
    %v4349 = vunpack.c.h.s8.bf16 %v4319
    %v4350 = vunpack.c.l.s8.bf16 %v4320
    %v4351 = vunpack.c.h.s8.bf16 %v4320
    %v4352 = vunpack.c.l.s8.bf16 %v4321
    %v4353 = vunpack.c.h.s8.bf16 %v4321
    %4354 = vmatprep.subr.bf16.mxu0 0
    %4355 = vmatpush1.bf16.msra.mxu0 %v4322
    %4356 = vmatprep.subr.bf16.mxu0 0
    %4357 = vmatpush1.bf16.msra.mxu0 %v4323
    %4358 = vmatprep.subr.bf16.mxu0 0
    %4359 = vmatpush1.bf16.msra.mxu0 %v4324
    %4360 = vmatprep.subr.bf16.mxu0 0
    %4361 = vmatpush1.bf16.msra.mxu0 %v4325
    %4362 = vmatprep.subr.bf16.mxu0 0
    %4363 = vmatpush1.bf16.msra.mxu0 %v4326
    %4364 = vmatprep.subr.bf16.mxu0 0
    %4365 = vmatpush1.bf16.msra.mxu0 %v4327
    %4366 = vmatprep.subr.bf16.mxu0 0
    %4367 = vmatpush1.bf16.msra.mxu0 %v4328
    %4368 = vmatprep.subr.bf16.mxu0 0
    %4369 = vmatpush1.bf16.msra.mxu0 %v4329
    %4370 = vmatprep.subr.bf16.mxu0 0
    %4371 = vmatpush1.bf16.msra.mxu0 %v4330
    %4372 = vmatprep.subr.bf16.mxu0 0
    %4373 = vmatpush1.bf16.msra.mxu0 %v4331
    %4374 = vmatprep.subr.bf16.mxu0 0
    %4375 = vmatpush1.bf16.msra.mxu0 %v4332
    %4376 = vmatprep.subr.bf16.mxu0 0
    %4377 = vmatpush1.bf16.msra.mxu0 %v4333
    %4378 = vmatprep.subr.bf16.mxu0 0
    %4379 = vmatpush1.bf16.msra.mxu0 %v4334
    %4380 = vmatprep.subr.bf16.mxu0 0
    %4381 = vmatpush1.bf16.msra.mxu0 %v4335
    %4382 = vmatprep.subr.bf16.mxu0 0
    %4383 = vmatpush1.bf16.msra.mxu0 %v4336
    %4384 = vmatprep.subr.bf16.mxu0 0
    %4385 = vmatpush1.bf16.msra.mxu0 %v4337
    %4386 = vmatprep.mubr.bf16.mxu0 %v4303
    %4387 = vmatmul.mubr.bf16.gmra.mrb[0].mxu0 %v4302
    %v4388 = vpop.f32.mrb[0].mxu0
    %v4389 = vadd.f32 0.0, %v4388
    %v4390 = vpop.f32.mrb[0].mxu0
    %v4391 = vpop.f32.mrb[0].mxu0
    %v4392 = vpop.f32.mrb[0].mxu0
    %4393 = vdwg.mxu0
    %4394 = vmatprep.subr.bf16.mxu0 0
    %4395 = vmatpush1.bf16.msra.mxu0 %v4338
    %4396 = vmatprep.subr.bf16.mxu0 0
    %4397 = vmatpush1.bf16.msra.mxu0 %v4339
    %4398 = vmatprep.subr.bf16.mxu0 0
    %4399 = vmatpush1.bf16.msra.mxu0 %v4340
    %4400 = vmatprep.subr.bf16.mxu0 0
    %4401 = vmatpush1.bf16.msra.mxu0 %v4341
    %4402 = vmatprep.subr.bf16.mxu0 0
    %4403 = vmatpush1.bf16.msra.mxu0 %v4342
    %4404 = vmatprep.subr.bf16.mxu0 0
    %4405 = vmatpush1.bf16.msra.mxu0 %v4343
    %4406 = vmatprep.subr.bf16.mxu0 0
    %4407 = vmatpush1.bf16.msra.mxu0 %v4344
    %4408 = vmatprep.subr.bf16.mxu0 0
    %4409 = vmatpush1.bf16.msra.mxu0 %v4345
    %4410 = vmatprep.subr.bf16.mxu0 0
    %4411 = vmatpush1.bf16.msra.mxu0 %v4346
    %4412 = vmatprep.subr.bf16.mxu0 0
    %4413 = vmatpush1.bf16.msra.mxu0 %v4347
    %4414 = vmatprep.subr.bf16.mxu0 0
    %4415 = vmatpush1.bf16.msra.mxu0 %v4348
    %4416 = vmatprep.subr.bf16.mxu0 0
    %4417 = vmatpush1.bf16.msra.mxu0 %v4349
    %4418 = vmatprep.subr.bf16.mxu0 0
    %4419 = vmatpush1.bf16.msra.mxu0 %v4350
    %4420 = vmatprep.subr.bf16.mxu0 0
    %4421 = vmatpush1.bf16.msra.mxu0 %v4351
    %4422 = vmatprep.subr.bf16.mxu0 0
    %4423 = vmatpush1.bf16.msra.mxu0 %v4352
    %4424 = vmatprep.subr.bf16.mxu0 0
    %4425 = vmatpush1.bf16.msra.mxu0 %v4353
    %4426 = vmatprep.mubr.bf16.mxu0 %v4305
    %4427 = vmatmul.mubr.bf16.gmra.mrb[0].mxu0 %v4304
    %v4428 = vpop.f32.mrb[0].mxu0
    %v4429 = vadd.f32 %v4389, %v4428
    %v4430 = vpop.f32.mrb[0].mxu0
    %v4431 = vpop.f32.mrb[0].mxu0
    %v4432 = vpop.f32.mrb[0].mxu0
    %4433 = vdwg.mxu0
    %v4434 = vld [vmem:[#allocation14] sm:$0x1]
    %v4435 = vld [vmem:[#allocation16] sm:$0x1]
    %vm4436 = vcmask 523264
    %v4437 = vsel %vm4436, %v4429, 0.0
    %v4438 = vrot.slane %v4437, 4
    %v4439 = vadd.f32 %v4437, %v4438
    %v4440 = vrot.slane %v4439, 2
    %v4441 = vadd.f32 %v4439, %v4440
    %v4442 = vrot.slane %v4441, 1
    %v4443 = vadd.f32 %v4441, %v4442
    %v4444 = vmul.f32 %v4443, %v3138
    %v4445 = vsub.f32 %v4429, %v4444
    %v4446 = vmul.f32 %v4445, %v4445
    %v4447 = vsel %vm4436, %v4446, 0.0
    %v4448 = vrot.slane %v4447, 4
    %v4449 = vadd.f32 %v4447, %v4448
    %v4450 = vrot.slane %v4449, 2
    %v4451 = vadd.f32 %v4449, %v4450
    %v4452 = vrot.slane %v4451, 1
    %v4453 = vadd.f32 %v4451, %v4452
    %v4454 = vmul.f32 %v4453, %v3138
    %v4455 = vadd.f32 %v4454, 1e-05
    %v4456 = vrsqrt.pop %v4455
    %v4457 = vmul.f32 %v4434, %v4456
    %v4459 = vlaneseq
    %v4460 = vshrl.u32 %v4459, 7
    %v4461 = vsub.s32 0, %v4460
    %v4462 = vrot.slane %v4457, %v4461
    %v4464 = vmul.f32 %v4445, %v4462
    %v4466 = vlaneseq
    %v4467 = vshrl.u32 %v4466, 7
    %v4468 = vsub.s32 0, %v4467
    %v4469 = vrot.slane %v4435, %v4468
    %v4471 = vadd.f32 %v4464, %v4469
    %vm4472 = vcmp.gt.f32.partialorder %v4471, 0.0
    %v4473 = vmul.f32 %v4471, 0.01
    %v4474 = vsel %vm4472, %v4471, %v4473
    %v4475 = vpack.c.bf16 %v4474, %v4474
    %v4476 = vld [vmem:[#allocation17] sm:$0xf]
    %v4477 = vld [vmem:[#allocation17 + $0x4] sm:$0xf]
    %v4478 = vld [vmem:[#allocation17 + $0x8] sm:$0xf]
    %v4479 = vld [vmem:[#allocation17 + $0xc] sm:$0xf]
    %v4480 = vld [vmem:[#allocation17 + $0x10] sm:$0xf]
    %v4481 = vld [vmem:[#allocation17 + $0x14] sm:$0xf]
    %v4482 = vld [vmem:[#allocation17 + $0x18] sm:$0xf]
    %v4483 = vld [vmem:[#allocation17 + $0x1c] sm:$0xf]
    %v4484 = vld [vmem:[#allocation19] sm:$0x1]
    %v4486 = vlaneseq
    %v4487 = vshrl.u32 %v4486, 7
    %v4488 = vsub.s32 0, %v4487
    %v4489 = vrot.slane %v4484, %v4488
    %v4499 = vunpack.c.l.b16 %v4476
    %v4500 = vunpack.c.l.b16 %v4477
    %v4501 = vunpack.c.l.b16 %v4478
    %v4502 = vunpack.c.l.b16 %v4479
    %v4503 = vunpack.c.l.b16 %v4480
    %v4504 = vunpack.c.l.b16 %v4481
    %v4505 = vunpack.c.l.b16 %v4482
    %v4506 = vunpack.c.l.b16 %v4483
    %v4507 = vpack.c.b16 %v4500, %v4499
    %v4508 = vpack.c.b16 %v4502, %v4501
    %v4509 = vpack.c.b16 %v4504, %v4503
    %v4510 = vpack.c.b16 %v4506, %v4505
    %v4516 = vsel %vm4436, %v4475, 0
    %4518 = vmatprep.subr.bf16.mxu0 0
    %4519 = vmatpush1.bf16.msra.mxu0 %v4507
    %4520 = vmatprep.subr.bf16.mxu0 0
    %4521 = vmatpush1.bf16.msra.mxu0 %v4508
    %4522 = vmatprep.subr.bf16.mxu0 0
    %4523 = vmatpush1.bf16.msra.mxu0 %v4509
    %4524 = vmatprep.subr.bf16.mxu0 0
    %4525 = vmatpush1.bf16.msra.mxu0 %v4510
    %4526 = vmatprep.subr.bf16.mxu0 0
    %4527 = vmatpush1.bf16.msra.mxu0 0
    %4528 = vmatprep.subr.bf16.mxu0 0
    %4529 = vmatpush1.bf16.msra.mxu0 0
    %4530 = vmatprep.subr.bf16.mxu0 0
    %4531 = vmatpush1.bf16.msra.mxu0 0
    %4532 = vmatprep.subr.bf16.mxu0 0
    %4533 = vmatpush1.bf16.msra.mxu0 0
    %4534 = vmatprep.subr.bf16.mxu0 0
    %4535 = vmatpush1.bf16.msra.mxu0 0
    %4536 = vmatprep.subr.bf16.mxu0 0
    %4537 = vmatpush1.bf16.msra.mxu0 0
    %4538 = vmatprep.subr.bf16.mxu0 0
    %4539 = vmatpush1.bf16.msra.mxu0 0
    %4540 = vmatprep.subr.bf16.mxu0 0
    %4541 = vmatpush1.bf16.msra.mxu0 0
    %4542 = vmatprep.subr.bf16.mxu0 0
    %4543 = vmatpush1.bf16.msra.mxu0 0
    %4544 = vmatprep.subr.bf16.mxu0 0
    %4545 = vmatpush1.bf16.msra.mxu0 0
    %4546 = vmatprep.subr.bf16.mxu0 0
    %4547 = vmatpush1.bf16.msra.mxu0 0
    %4548 = vmatprep.subr.bf16.mxu0 0
    %4549 = vmatpush1.bf16.msra.mxu0 0
    %4550 = vmatprep.mubr.bf16.mxu0 0
    %4551 = vmatmul.mubr.bf16.gmra.mrb[0].mxu0 %v4516
    %v4552 = vpop.f32.mrb[0].mxu0
    %v4553 = vadd.f32 %v4489, %v4552
    %v4554 = vpop.f32.mrb[0].mxu0
    %v4555 = vpop.f32.mrb[0].mxu0
    %v4556 = vpop.f32.mrb[0].mxu0
    %4557 = vdwg.mxu0
    %v4558 = vsub.f32 0.0, %v4553
    %v4559 = vmul.f32 %v4558, 1.442695
    %v4560 = vpow.pop %v4559
    %v4561 = vadd.f32 %v4560, 1.0
    %v4562 = vrcp.pop %v4561
    %v4563 = vmul.f32 1.0, %v4562
    %4564 = vst [vmem:[#allocation20] sm:$0xff] %v4563
    // Predicated region
    $region94: #{tpu_custom_call.1} parent=1 // pred_check
      _
    $region95: #{tpu_custom_call.1} parent=1 // pred_check_branch
      %4566 = sbr.rel (0) target = $region97
    $region96: #{tpu_custom_call.1} parent=1 // pred_region
      %s4568 = ssub.s32 128, 128
      %4569 = vsyncadd [#allocation4], %s4568
      %s4571 = sshll.u32 [#allocation20], 4
      %s4572 = int_to_ptr.vmem [resolvable:$true] %s4571
      %4574 = dma.vmem_to_hbm [thread:$0]  %s4572, 128, %s12, [#allocation4]
    $region97: #{tpu_custom_call.1} parent=1 // pred_fallthru
      _
    // Predicated region
    $region98: #{tpu_custom_call.1} parent=1 // pred_check
      _
    $region99: #{tpu_custom_call.1} parent=1 // pred_check_branch
      %4576 = sbr.rel (0) target = $region101
    $region100: #{tpu_custom_call.1} parent=1 // pred_region
      %4577 = dma.done [#allocation4], 128
    $region101: #{tpu_custom_call.1} parent=1 // pred_fallthru
      _
    %4578 = vsyncpa [#allocation3], 1
    %4579 = vsyncpa [#allocation6], 1
    %4580 = vsyncpa [#allocation9], 1
    %4581 = vsyncpa [#allocation12], 1
    %4582 = vsyncpa [#allocation15], 1
    %4583 = vsyncpa [#allocation18], 1
    %4584 = vsyncpa [#allocation4], 1

</llo_original>
